<compile_context>
chip_gen: v6e
topology: v6e:2x2x1
jax: 0.10.0
libtpu: 0.0.40
codegen_flags: <defaults>
</compile_context>

<pallas_src>
import functools

import jax
import jax.numpy as jnp
from jax import lax
from jax.experimental import pallas as pl
from jax.experimental.pallas import tpu as pltpu

# ----------------------------------------------------------------------------
# Synthetic, deterministic config (replaces the YAML config of the torch repo).
# ----------------------------------------------------------------------------
CONFIG = {
    "loss": {
        "vote_desc_loss_weight": 1.0,
        "vote_score_loss_weight": 1.0,
        "vote_score_peakness_loss_weight": 1.0,
        "vote_score_consistency_loss_weight": 1.0,
        "vote_desc_anchor_num": 128,
        "vote_desc_neg_num": 128,
        "vote_desc_positive_radius": 0.2,
        "vote_desc_negative_safe_radius": 0.5,
        "symmetric_negative_pair": False,
        "vote_desc_loss_type": "triplet",
        "vote_desc_triplet_margin": 0.3,
        "vote_desc_pos_margin": 0.1,
        "vote_desc_neg_margin": 1.4,
        "vote_score_loss_type": "D3Feat",
        "vote_score_peakness_loss_radius": 0.5,
        "vote_score_peakness_loss_neighbor_max_sample": 16,
        "vote_score_peakness_loss_margin": 0.1,
    },
    "trainer": {"voting_train_start": 0},
}


# ----------------------------------------------------------------------------
# Helpers
# ----------------------------------------------------------------------------
def _full_spec(shape):
    zeros = (0,) * len(shape)
    return pl.BlockSpec(shape, lambda i: zeros)


def _prefix_sum_last(x):
    """Inclusive prefix sum along the last (lane) axis.

    Hillis-Steele doubling: log2(N) rounds of (zero-pad ++ shifted-slice) + add.
    Stays on the VPU and avoids any O(N^3) mask @ tri matmul.
    """
    n = x.shape[-1]
    s = 1
    while s < n:
        pad = jnp.zeros(x.shape[:-1] + (s,), x.dtype)
        x = x + jnp.concatenate([pad, x[..., :-s]], axis=-1)
        s *= 2
    return x


# ----------------------------------------------------------------------------
# Kernel 1: nearest-neighbour matching (fused cdist + min + argmin)
# ----------------------------------------------------------------------------
def _nn_match_kernel(dst_ref, srcT_ref, dist_ref, idx_ref):
    """For every src point (columns) find its nearest dst point (rows).

    dst_ref : [Nd, 3]    srcT_ref : [3, Ns]
    outputs : nn_dist (1, Ns) f32, nn_idx (1, Ns) i32  (lane-dense rows)
    """
    dst = dst_ref[...]
    srcT = srcT_ref[...]
    # VPU-only squared distance (contraction dim 3 would waste the MXU).
    d2 = ((dst[:, 0:1] - srcT[0:1, :]) ** 2
          + (dst[:, 1:2] - srcT[1:2, :]) ** 2
          + (dst[:, 2:3] - srcT[2:3, :]) ** 2)                      # [Nd, Ns]
    nn_d2 = jnp.min(d2, axis=0, keepdims=True)                      # [1, Ns]
    rows = lax.broadcasted_iota(jnp.int32, d2.shape, 0).astype(jnp.float32)
    big = jnp.float32(d2.shape[0])
    nn_row = jnp.min(jnp.where(d2 <= nn_d2, rows, big), axis=0, keepdims=True)
    dist_ref[...] = jnp.sqrt(nn_d2)
    idx_ref[...] = nn_row.astype(jnp.int32)


def pallas_nn_match(src_xyz, dst_xyz):
    ns = src_xyz.shape[0]
    nd = dst_xyz.shape[0]
    dist, idx = pl.pallas_call(
        _nn_match_kernel,
        out_shape=(jax.ShapeDtypeStruct((1, ns), jnp.float32),
                   jax.ShapeDtypeStruct((1, ns), jnp.int32)),
        grid=(1,),
        in_specs=[_full_spec((nd, 3)), _full_spec((3, ns))],
        out_specs=(_full_spec((1, ns)), _full_spec((1, ns))),
    )(dst_xyz.astype(jnp.float32), src_xyz.T.astype(jnp.float32))
    return dist[0], idx[0]


# ----------------------------------------------------------------------------
# Kernel 2: fused geometric+descriptor cdist, hard-negative mining, per-anchor
#           stats packed into one lane-dense (4, M) output.
# ----------------------------------------------------------------------------
def _desc_stats_kernel(neg_radius,
                       pc_dst_ref, pc_ancT_ref, desc_dst_ref, ancT_ref,
                       posT_ref, stats_ref):
    """stats : (4, M) = [p_n_diff; positive_max; negative_min; average_negative]"""
    k = pc_dst_ref.shape[0]

    # geometric squared distance dst x anchors, VPU-only (contraction dim 3).
    pc_dst = pc_dst_ref[...]                                        # [K, 3]
    pc_ancT = pc_ancT_ref[...]                                      # [3, M]
    geo_d2 = ((pc_dst[:, 0:1] - pc_ancT[0:1, :]) ** 2
              + (pc_dst[:, 1:2] - pc_ancT[1:2, :]) ** 2
              + (pc_dst[:, 2:3] - pc_ancT[2:3, :]) ** 2)            # [K, M]

    # descriptor Euclidean distance dst x anchors via MXU Gram matrix.
    desc_dst = desc_dst_ref[...]                                    # [K, C]
    ancT = ancT_ref[...]                                            # [C, M]
    posT = posT_ref[...]                                            # [C, M]
    ab = jnp.dot(desc_dst, ancT, preferred_element_type=jnp.float32)  # [K, M]
    a2 = jnp.sum(desc_dst * desc_dst, axis=1, keepdims=True)        # [K, 1]
    b2 = jnp.sum(ancT * ancT, axis=0, keepdims=True)                # [1, M]
    desc_diff = jnp.sqrt(jnp.maximum(a2 - 2.0 * ab + b2, 0.0))      # [K, M]

    # hard-negative mining with geometric safe radius (compare squared dist).
    r2 = neg_radius * neg_radius
    masked = desc_diff + jnp.where(geo_d2 < r2, 1e10, 0.0)
    negative_min = jnp.min(masked, axis=0, keepdims=True)           # [1, M]

    dpp = ancT - posT
    positive_max = jnp.sqrt(jnp.sum(dpp * dpp, axis=0, keepdims=True) + 1e-12)
    p_n_diff = positive_max - negative_min                          # [1, M]
    average_negative = (jnp.sum(desc_diff, axis=0, keepdims=True)
                        - positive_max) / float(k - 1)              # [1, M]

    row = lax.broadcasted_iota(jnp.int32, stats_ref.shape, 0)
    stats_ref[...] = (jnp.where(row == 0, p_n_diff, 0.0)
                      + jnp.where(row == 1, positive_max, 0.0)
                      + jnp.where(row == 2, negative_min, 0.0)
                      + jnp.where(row == 3, average_negative, 0.0))


def pallas_desc_stats(pc_dst, pc_anc, desc_dst, anc_desc, pos_desc, neg_radius):
    k = pc_dst.shape[0]
    m, c = anc_desc.shape
    kern = functools.partial(_desc_stats_kernel, float(neg_radius))
    stats = pl.pallas_call(
        kern,
        out_shape=jax.ShapeDtypeStruct((4, m), jnp.float32),
        grid=(1,),
        in_specs=[_full_spec((k, 3)), _full_spec((3, m)), _full_spec((k, c)),
                  _full_spec((c, m)), _full_spec((c, m))],
        out_specs=_full_spec((4, m)),
    )(pc_dst.astype(jnp.float32), pc_anc.T.astype(jnp.float32),
      desc_dst.astype(jnp.float32), anc_desc.T.astype(jnp.float32),
      pos_desc.T.astype(jnp.float32))
    return stats


# ----------------------------------------------------------------------------
# Kernel 3: peakness loss (ball query first-K + relu(mean - max + margin).mean)
# ----------------------------------------------------------------------------
def _peakness_kernel(r2, max_sample, margin, inv_n,
                     anc_ref, xyzT_ref, sc_ref, out_ref):
    @pl.when(pl.program_id(0) == 0)
    def _():
        out_ref[...] = jnp.zeros_like(out_ref)

    anc = anc_ref[...]                                              # [TR, 3]
    xyzT = xyzT_ref[...]                                            # [3, N]
    sc = sc_ref[...]                                                # [1, N]
    d2 = ((anc[:, 0:1] - xyzT[0:1, :]) ** 2
          + (anc[:, 1:2] - xyzT[1:2, :]) ** 2
          + (anc[:, 2:3] - xyzT[2:3, :]) ** 2)                      # [TR, N]
    mask = (d2 < r2).astype(jnp.float32)
    # first `max_sample` in-radius candidates in index order (= ball_query).
    rank = _prefix_sum_last(mask)                                   # inclusive count
    sel = mask * (rank <= float(max_sample)).astype(jnp.float32)
    cnt = jnp.sum(sel, axis=1, keepdims=True)                       # neighbour_num
    # torch divides by the count of valid (>=0) neighbour slots, clamped at 1.
    mean_sc = jnp.sum(sel * sc, axis=1, keepdims=True) / jnp.maximum(cnt, 1.0)
    neg_inf = jnp.float32(-1e30)
    max_real = jnp.max(jnp.where(sel > 0.0, sc, neg_inf), axis=1, keepdims=True)
    # empty slots index the zero "shadow" score in the torch implementation.
    max_sc = jnp.maximum(max_real, jnp.where(cnt < float(max_sample), 0.0, neg_inf))
    per_pt = jnp.maximum(mean_sc - max_sc + margin, 0.0)            # [TR, 1]
    out_ref[...] += jnp.sum(per_pt, axis=0, keepdims=True) * inv_n


def pallas_peakness(xyz, scores, radius, max_sample, margin, block_rows=256):
    n = xyz.shape[0]
    tr = n if n <= block_rows else block_rows
    # TODO(synk): pad n to a multiple of block_rows for very large point clouds.
    assert n % tr == 0
    kern = functools.partial(_peakness_kernel, float(radius) ** 2,
                             int(max_sample), float(margin), 1.0 / float(n))
    out = pl.pallas_call(
        kern,
        out_shape=jax.ShapeDtypeStruct((1, 1), jnp.float32),
        grid=(n // tr,),
        in_specs=[pl.BlockSpec((tr, 3), lambda i: (i, 0)),
                  pl.BlockSpec((3, n), lambda i: (0, 0)),
                  pl.BlockSpec((1, n), lambda i: (0, 0))],
        out_specs=pl.BlockSpec((1, 1), lambda i: (0, 0)),
        compiler_params=pltpu.CompilerParams(dimension_semantics=("arbitrary",)),
    )(xyz.astype(jnp.float32), xyz.T.astype(jnp.float32),
      scores.reshape(1, n).astype(jnp.float32))
    return out[0, 0]


# ----------------------------------------------------------------------------
# Loss assembly — a single jit, no host syncs between kernels.
# ----------------------------------------------------------------------------
@functools.partial(jax.jit, static_argnames=("compute_desc",))
def _vote_loss_impl(pc_src, pc_dst, desc_src, desc_dst, sigma_src, sigma_dst,
                    *, compute_desc):
    cfg = CONFIG["loss"]
    losses, loss_dict, extra = [], {}, {}

    desc_branch = compute_desc and cfg["vote_desc_loss_weight"] > 0
    need_match = desc_branch or cfg["vote_score_consistency_loss_weight"] > 0

    anc_idx = pos_idx = None
    if need_match:
        _, pos_idx = pallas_nn_match(pc_src, pc_dst)
        anc_idx = jnp.arange(pc_src.shape[0], dtype=jnp.int32)
        # TODO(synk): torch keeps only src points whose NN lies within the
        # positive radius (variable-length list); synthetic inputs guarantee
        # every point matches, so all points are kept to preserve static shapes.

    cons_loss = None
    if desc_branch:
        pc_anc = jnp.take(pc_src, anc_idx, axis=0)
        anc_desc = jnp.take(desc_src, anc_idx, axis=0)
        pos_desc = jnp.take(desc_dst, pos_idx, axis=0)
        sigma_anc = jnp.take(sigma_src, anc_idx)
        sigma_pos = jnp.take(sigma_dst, pos_idx)

        stats = pallas_desc_stats(
            pc_dst, pc_anc, desc_dst, anc_desc, pos_desc,
            cfg["vote_desc_negative_safe_radius"])
        p_n_diff = stats[0]
        positive_max = stats[1]
        negative_min = stats[2]
        average_negative = stats[3]
        m = p_n_diff.shape[0]

        # tiny O(M) scalar reductions: leave them to XLA outside the kernel.
        desc_loss = jnp.mean(
            jnp.maximum(p_n_diff + cfg["vote_desc_triplet_margin"], 0.0))
        sigma = (sigma_anc + sigma_pos) * 0.5
        score_loss = jnp.mean(sigma * p_n_diff)          # D3Feat variant
        cons_loss = jnp.mean((sigma_anc - sigma_pos) ** 2)

        # TODO(synk): the torch valid_pair_mask assert (negative_min < 1e5), the
        # symmetric_negative_pair path and the 'contrastive'/rank score-loss
        # variants are not exercised by this config and are omitted here.
        extra["vote_desc_accuracy"] = jnp.sum(p_n_diff < 0) * 100.0 / m
        extra["vote_desc_pos_mean"] = jnp.mean(positive_max)
        extra["vote_desc_neg_mean"] = jnp.mean(negative_min)
        extra["vote_desc_average_negative"] = jnp.mean(average_negative)

        loss_dict["vote_desc_loss"] = desc_loss
        losses.append(cfg["vote_desc_loss_weight"] * desc_loss)

        if cfg["vote_score_loss_weight"] > 0 and m > 3:
            # vote_score_loss_type == 'D3Feat'
            loss_dict["vote_score_loss"] = score_loss
            losses.append(cfg["vote_score_loss_weight"] * score_loss)

    if cfg["vote_score_peakness_loss_weight"] > 0:
        pk = pallas_peakness(pc_dst, sigma_dst,
                             cfg["vote_score_peakness_loss_radius"],
                             cfg["vote_score_peakness_loss_neighbor_max_sample"],
                             cfg["vote_score_peakness_loss_margin"])
        loss_dict["vote_score_peakness_loss"] = pk
        losses.append(cfg["vote_score_peakness_loss_weight"] * pk)

    if cfg["vote_score_consistency_loss_weight"] > 0:
        if cons_loss is None:
            cons_loss = jnp.mean((jnp.take(sigma_src, anc_idx)
                                  - jnp.take(sigma_dst, pos_idx)) ** 2)
        loss_dict["vote_score_consistency_loss"] = cons_loss
        losses.append(cfg["vote_score_consistency_loss_weight"] * cons_loss)

    extra["mean_score"] = (jnp.mean(sigma_src) + jnp.mean(sigma_dst)) / 2
    extra["std_score"] = (jnp.std(sigma_src, ddof=1) + jnp.std(sigma_dst, ddof=1)) / 2
    extra["min_score"] = jnp.minimum(jnp.min(sigma_src), jnp.min(sigma_dst))
    extra["max_score"] = jnp.maximum(jnp.max(sigma_src), jnp.max(sigma_dst))

    total = sum(losses) if losses else jnp.zeros((), jnp.float32)
    return total, loss_dict, extra


def vote_loss_forward(epoch, loss_input, config=CONFIG):
    # Note: numeric loss constants are baked from module-level CONFIG at trace
    # time; `config` controls only the static branching here (as in the demo).
    compute_desc = bool(config["loss"]["vote_desc_loss_weight"] > 0
                        and epoch > config["trainer"]["voting_train_start"])
    return _vote_loss_impl(
        loss_input[0]["vote_xyz"], loss_input[1]["vote_xyz"],
        loss_input[0]["vote_features"], loss_input[1]["vote_features"],
        loss_input[0]["vote_scores"], loss_input[1]["vote_scores"],
        compute_desc=compute_desc)


# ----------------------------------------------------------------------------
# Demo
# ----------------------------------------------------------------------------
if __name__ == "__main__":
    key = jax.random.PRNGKey(0)
    k = jax.random.split(key, 6)
    # N = 128 keeps the candidate / anchor dims lane-dense (full 128-lane vregs)
    # and matches vote_desc_anchor_num / vote_desc_neg_num in the config.
    N, C = 128, 32

    xyz_src = jax.random.uniform(k[0], (N, 3), jnp.float32) * 8.0
    # per-coordinate noise in [-0.05, 0.05] -> displacement < positive radius 0.2
    noise = (jax.random.uniform(k[1], (N, 3), jnp.float32) - 0.5) * 0.1
    xyz_dst = xyz_src + noise
    desc_src = jax.random.normal(k[2], (N, C), jnp.float32)
    desc_dst = desc_src + 0.1 * jax.random.normal(k[3], (N, C), jnp.float32)
    scores_src = jax.random.uniform(k[4], (N,), jnp.float32)
    scores_dst = jax.random.uniform(k[5], (N,), jnp.float32)

    loss_input = (
        {"vote_xyz": xyz_src, "vote_features": desc_src, "vote_scores": scores_src},
        {"vote_xyz": xyz_dst, "vote_features": desc_dst, "vote_scores": scores_dst},
    )

    total, loss_dict, extra_info = vote_loss_forward(epoch=5, loss_input=loss_input,
                                                     config=CONFIG)
    jax.block_until_ready(total)
    print("KERNEL_OK")
</pallas_src>

<mosaic_0001>
module attributes {stable_mosaic.version = 11 : i64} {
  func.func @_nn_match_kernel(%arg0: i32, %arg1: memref<128x3xf32, #tpu.memory_space<vmem>>, %arg2: memref<3x128xf32, #tpu.memory_space<vmem>>, %arg3: memref<1x128xf32, #tpu.memory_space<vmem>>, %arg4: memref<1x128xi32, #tpu.memory_space<vmem>>) attributes {dimension_semantics = [#tpu.dimension_semantics<arbitrary>], iteration_bounds = array<i64: 1>, scalar_prefetch = 0 : i64, scratch_operands = 0 : i64, tpu.core_type = #tpu.core_type<tc>, window_params = [{pipeline_mode = #tpu.pipeline_mode<synchronous>, transform_indices = @transform_0, window_bounds = array<i64: 128, 3>}, {pipeline_mode = #tpu.pipeline_mode<synchronous>, transform_indices = @transform_1, window_bounds = array<i64: 3, 128>}, {pipeline_mode = #tpu.pipeline_mode<synchronous>, transform_indices = @transform_2, window_bounds = array<i64: 1, 128>}, {pipeline_mode = #tpu.pipeline_mode<synchronous>, transform_indices = @transform_3, window_bounds = array<i64: 1, 128>}]} {
    %c0 = arith.constant 0 : index
    %c0_0 = arith.constant 0 : index
    %0 = vector.load %arg1[%c0, %c0_0] : memref<128x3xf32, #tpu.memory_space<vmem>>, vector<128x3xf32>
    %c0_1 = arith.constant 0 : index
    %c0_2 = arith.constant 0 : index
    %1 = vector.load %arg2[%c0_1, %c0_2] : memref<3x128xf32, #tpu.memory_space<vmem>>, vector<3x128xf32>
    %2 = vector.extract_strided_slice %0 {offsets = [0, 0], sizes = [128, 1], strides = [1, 1]} : vector<128x3xf32> to vector<128x1xf32>
    %3 = vector.extract_strided_slice %1 {offsets = [0, 0], sizes = [1, 128], strides = [1, 1]} : vector<3x128xf32> to vector<1x128xf32>
    %4 = vector.broadcast %2 : vector<128x1xf32> to vector<128x128xf32>
    %5 = vector.broadcast %3 : vector<1x128xf32> to vector<128x128xf32>
    %6 = arith.subf %4, %5 : vector<128x128xf32>
    %7 = arith.mulf %6, %6 : vector<128x128xf32>
    %8 = vector.extract_strided_slice %0 {offsets = [0, 1], sizes = [128, 1], strides = [1, 1]} : vector<128x3xf32> to vector<128x1xf32>
    %9 = vector.extract_strided_slice %1 {offsets = [1, 0], sizes = [1, 128], strides = [1, 1]} : vector<3x128xf32> to vector<1x128xf32>
    %10 = vector.broadcast %8 : vector<128x1xf32> to vector<128x128xf32>
    %11 = vector.broadcast %9 : vector<1x128xf32> to vector<128x128xf32>
    %12 = arith.subf %10, %11 : vector<128x128xf32>
    %13 = arith.mulf %12, %12 : vector<128x128xf32>
    %14 = arith.addf %7, %13 : vector<128x128xf32>
    %15 = vector.extract_strided_slice %0 {offsets = [0, 2], sizes = [128, 1], strides = [1, 1]} : vector<128x3xf32> to vector<128x1xf32>
    %16 = vector.extract_strided_slice %1 {offsets = [2, 0], sizes = [1, 128], strides = [1, 1]} : vector<3x128xf32> to vector<1x128xf32>
    %17 = vector.broadcast %15 : vector<128x1xf32> to vector<128x128xf32>
    %18 = vector.broadcast %16 : vector<1x128xf32> to vector<128x128xf32>
    %19 = arith.subf %17, %18 : vector<128x128xf32>
    %20 = arith.mulf %19, %19 : vector<128x128xf32>
    %21 = arith.addf %14, %20 : vector<128x128xf32>
    %cst = arith.constant dense<0x7F800000> : vector<128xf32>
    %22 = vector.multi_reduction <minimumf>, %21, %cst [0] : vector<128x128xf32> to vector<128xf32>
    %23 = vector.shape_cast %22 : vector<128xf32> to vector<1x128xf32>
    %24 = tpu.iota {dimensions = array<i32: 0>} : vector<128x128xi32>
    %25 = arith.sitofp %24 : vector<128x128xi32> to vector<128x128xf32>
    %26 = vector.broadcast %23 : vector<1x128xf32> to vector<128x128xf32>
    %27 = arith.cmpf ole, %21, %26 : vector<128x128xf32>
    %cst_3 = arith.constant 1.280000e+02 : f32
    %28 = vector.broadcast %cst_3 : f32 to vector<128x128xf32>
    %29 = arith.select %27, %25, %28 : vector<128x128xi1>, vector<128x128xf32>
    %cst_4 = arith.constant dense<0x7F800000> : vector<128xf32>
    %30 = vector.multi_reduction <minimumf>, %29, %cst_4 [0] : vector<128x128xf32> to vector<128xf32>
    %31 = vector.shape_cast %30 : vector<128xf32> to vector<1x128xf32>
    %32 = math.sqrt %23 : vector<1x128xf32>
    %c0_5 = arith.constant 0 : index
    %c0_6 = arith.constant 0 : index
    %33 = vector.load %arg3[%c0_5, %c0_6] : memref<1x128xf32, #tpu.memory_space<vmem>>, vector<1x128xf32>
    tpu.vector_store %arg3[%c0_5, %c0_6], %32 {strides = array<i32>} : memref<1x128xf32, #tpu.memory_space<vmem>>, vector<1x128xf32>,
    %34 = arith.fptosi %31 : vector<1x128xf32> to vector<1x128xi32>
    %c0_7 = arith.constant 0 : index
    %c0_8 = arith.constant 0 : index
    %35 = vector.load %arg4[%c0_7, %c0_8] : memref<1x128xi32, #tpu.memory_space<vmem>>, vector<1x128xi32>
    tpu.vector_store %arg4[%c0_7, %c0_8], %34 {strides = array<i32>} : memref<1x128xi32, #tpu.memory_space<vmem>>, vector<1x128xi32>,
    return
  }
  func.func @transform_0(%arg0: i32) -> (i32, i32) {
    %c0_i32 = arith.constant 0 : i32
    %c0_i32_0 = arith.constant 0 : i32
    %c0_i32_1 = arith.constant 0 : i32
    return %c0_i32, %c0_i32_0 : i32, i32
  }
  func.func @transform_1(%arg0: i32) -> (i32, i32) {
    %c0_i32 = arith.constant 0 : i32
    %c0_i32_0 = arith.constant 0 : i32
    %c0_i32_1 = arith.constant 0 : i32
    return %c0_i32, %c0_i32_0 : i32, i32
  }
  func.func @transform_2(%arg0: i32) -> (i32, i32) {
    %c0_i32 = arith.constant 0 : i32
    %c0_i32_0 = arith.constant 0 : i32
    %c0_i32_1 = arith.constant 0 : i32
    return %c0_i32, %c0_i32_0 : i32, i32
  }
  func.func @transform_3(%arg0: i32) -> (i32, i32) {
    %c0_i32 = arith.constant 0 : i32
    %c0_i32_0 = arith.constant 0 : i32
    %c0_i32_1 = arith.constant 0 : i32
    return %c0_i32, %c0_i32_0 : i32, i32
  }
}

module attributes {stable_mosaic.version = 11 : i64} {
  func.func @_desc_stats_kernel(%arg0: i32, %arg1: memref<128x3xf32, #tpu.memory_space<vmem>>, %arg2: memref<3x128xf32, #tpu.memory_space<vmem>>, %arg3: memref<128x32xf32, #tpu.memory_space<vmem>>, %arg4: memref<32x128xf32, #tpu.memory_space<vmem>>, %arg5: memref<32x128xf32, #tpu.memory_space<vmem>>, %arg6: memref<4x128xf32, #tpu.memory_space<vmem>>) attributes {dimension_semantics = [#tpu.dimension_semantics<arbitrary>], iteration_bounds = array<i64: 1>, scalar_prefetch = 0 : i64, scratch_operands = 0 : i64, tpu.core_type = #tpu.core_type<tc>, window_params = [{pipeline_mode = #tpu.pipeline_mode<synchronous>, transform_indices = @transform_0, window_bounds = array<i64: 128, 3>}, {pipeline_mode = #tpu.pipeline_mode<synchronous>, transform_indices = @transform_1, window_bounds = array<i64: 3, 128>}, {pipeline_mode = #tpu.pipeline_mode<synchronous>, transform_indices = @transform_2, window_bounds = array<i64: 128, 32>}, {pipeline_mode = #tpu.pipeline_mode<synchronous>, transform_indices = @transform_3, window_bounds = array<i64: 32, 128>}, {pipeline_mode = #tpu.pipeline_mode<synchronous>, transform_indices = @transform_4, window_bounds = array<i64: 32, 128>}, {pipeline_mode = #tpu.pipeline_mode<synchronous>, transform_indices = @transform_5, window_bounds = array<i64: 4, 128>}]} {
    %c0 = arith.constant 0 : index
    %c0_0 = arith.constant 0 : index
    %0 = vector.load %arg1[%c0, %c0_0] : memref<128x3xf32, #tpu.memory_space<vmem>>, vector<128x3xf32>
    %c0_1 = arith.constant 0 : index
    %c0_2 = arith.constant 0 : index
    %1 = vector.load %arg2[%c0_1, %c0_2] : memref<3x128xf32, #tpu.memory_space<vmem>>, vector<3x128xf32>
    %2 = vector.extract_strided_slice %0 {offsets = [0, 0], sizes = [128, 1], strides = [1, 1]} : vector<128x3xf32> to vector<128x1xf32>
    %3 = vector.extract_strided_slice %1 {offsets = [0, 0], sizes = [1, 128], strides = [1, 1]} : vector<3x128xf32> to vector<1x128xf32>
    %4 = vector.broadcast %2 : vector<128x1xf32> to vector<128x128xf32>
    %5 = vector.broadcast %3 : vector<1x128xf32> to vector<128x128xf32>
    %6 = arith.subf %4, %5 : vector<128x128xf32>
    %7 = arith.mulf %6, %6 : vector<128x128xf32>
    %8 = vector.extract_strided_slice %0 {offsets = [0, 1], sizes = [128, 1], strides = [1, 1]} : vector<128x3xf32> to vector<128x1xf32>
    %9 = vector.extract_strided_slice %1 {offsets = [1, 0], sizes = [1, 128], strides = [1, 1]} : vector<3x128xf32> to vector<1x128xf32>
    %10 = vector.broadcast %8 : vector<128x1xf32> to vector<128x128xf32>
    %11 = vector.broadcast %9 : vector<1x128xf32> to vector<128x128xf32>
    %12 = arith.subf %10, %11 : vector<128x128xf32>
    %13 = arith.mulf %12, %12 : vector<128x128xf32>
    %14 = arith.addf %7, %13 : vector<128x128xf32>
    %15 = vector.extract_strided_slice %0 {offsets = [0, 2], sizes = [128, 1], strides = [1, 1]} : vector<128x3xf32> to vector<128x1xf32>
    %16 = vector.extract_strided_slice %1 {offsets = [2, 0], sizes = [1, 128], strides = [1, 1]} : vector<3x128xf32> to vector<1x128xf32>
    %17 = vector.broadcast %15 : vector<128x1xf32> to vector<128x128xf32>
    %18 = vector.broadcast %16 : vector<1x128xf32> to vector<128x128xf32>
    %19 = arith.subf %17, %18 : vector<128x128xf32>
    %20 = arith.mulf %19, %19 : vector<128x128xf32>
    %21 = arith.addf %14, %20 : vector<128x128xf32>
    %c0_3 = arith.constant 0 : index
    %c0_4 = arith.constant 0 : index
    %22 = vector.load %arg3[%c0_3, %c0_4] : memref<128x32xf32, #tpu.memory_space<vmem>>, vector<128x32xf32>
    %c0_5 = arith.constant 0 : index
    %c0_6 = arith.constant 0 : index
    %23 = vector.load %arg4[%c0_5, %c0_6] : memref<32x128xf32, #tpu.memory_space<vmem>>, vector<32x128xf32>
    %c0_7 = arith.constant 0 : index
    %c0_8 = arith.constant 0 : index
    %24 = vector.load %arg5[%c0_7, %c0_8] : memref<32x128xf32, #tpu.memory_space<vmem>>, vector<32x128xf32>
    %cst = arith.constant dense<0.000000e+00> : vector<128x128xf32>
    %25 = tpu.matmul %22, %23, %cst {dimension_numbers = #tpu.dot_dimension_numbers<[1], [0], [0], [1], [0, 0, 1, 1], [], []>} : vector<128x32xf32>, vector<32x128xf32>, vector<128x128xf32> -> vector<128x128xf32>
    %26 = arith.mulf %22, %22 : vector<128x32xf32>
    %cst_9 = arith.constant dense<0.000000e+00> : vector<128xf32>
    %27 = vector.multi_reduction <add>, %26, %cst_9 [1] : vector<128x32xf32> to vector<128xf32>
    %28 = vector.shape_cast %27 : vector<128xf32> to vector<128x1xf32>
    %29 = arith.mulf %23, %23 : vector<32x128xf32>
    %cst_10 = arith.constant dense<0.000000e+00> : vector<128xf32>
    %30 = vector.multi_reduction <add>, %29, %cst_10 [0] : vector<32x128xf32> to vector<128xf32>
    %31 = vector.shape_cast %30 : vector<128xf32> to vector<1x128xf32>
    %cst_11 = arith.constant 2.000000e+00 : f32
    %32 = vector.broadcast %cst_11 : f32 to vector<128x128xf32>
    %33 = arith.mulf %32, %25 : vector<128x128xf32>
    %34 = vector.broadcast %28 : vector<128x1xf32> to vector<128x128xf32>
    %35 = arith.subf %34, %33 : vector<128x128xf32>
    %36 = vector.broadcast %31 : vector<1x128xf32> to vector<128x128xf32>
    %37 = arith.addf %35, %36 : vector<128x128xf32>
    %cst_12 = arith.constant 0.000000e+00 : f32
    %38 = vector.broadcast %cst_12 : f32 to vector<128x128xf32>
    %39 = arith.maximumf %37, %38 : vector<128x128xf32>
    %40 = math.sqrt %39 : vector<128x128xf32>
    %cst_13 = arith.constant 2.500000e-01 : f32
    %41 = vector.broadcast %cst_13 : f32 to vector<128x128xf32>
    %42 = arith.cmpf olt, %21, %41 : vector<128x128xf32>
    %cst_14 = arith.constant 1.000000e+10 : f32
    %cst_15 = arith.constant 0.000000e+00 : f32
    %43 = vector.broadcast %cst_14 : f32 to vector<128x128xf32>
    %44 = vector.broadcast %cst_15 : f32 to vector<128x128xf32>
    %45 = arith.select %42, %43, %44 : vector<128x128xi1>, vector<128x128xf32>
    %46 = arith.addf %40, %45 : vector<128x128xf32>
    %cst_16 = arith.constant dense<0x7F800000> : vector<128xf32>
    %47 = vector.multi_reduction <minimumf>, %46, %cst_16 [0] : vector<128x128xf32> to vector<128xf32>
    %48 = vector.shape_cast %47 : vector<128xf32> to vector<1x128xf32>
    %49 = arith.subf %23, %24 : vector<32x128xf32>
    %50 = arith.mulf %49, %49 : vector<32x128xf32>
    %cst_17 = arith.constant dense<0.000000e+00> : vector<128xf32>
    %51 = vector.multi_reduction <add>, %50, %cst_17 [0] : vector<32x128xf32> to vector<128xf32>
    %52 = vector.shape_cast %51 : vector<128xf32> to vector<1x128xf32>
    %cst_18 = arith.constant 9.99999996E-13 : f32
    %53 = vector.broadcast %cst_18 : f32 to vector<1x128xf32>
    %54 = arith.addf %52, %53 : vector<1x128xf32>
    %55 = math.sqrt %54 : vector<1x128xf32>
    %56 = arith.subf %55, %48 : vector<1x128xf32>
    %cst_19 = arith.constant dense<0.000000e+00> : vector<128xf32>
    %57 = vector.multi_reduction <add>, %40, %cst_19 [0] : vector<128x128xf32> to vector<128xf32>
    %58 = vector.shape_cast %57 : vector<128xf32> to vector<1x128xf32>
    %59 = arith.subf %58, %55 : vector<1x128xf32>
    %cst_20 = arith.constant 1.270000e+02 : f32
    %60 = vector.broadcast %cst_20 : f32 to vector<1x128xf32>
    %61 = arith.divf %59, %60 : vector<1x128xf32>
    %62 = tpu.iota {dimensions = array<i32: 0>} : vector<4x128xi32>
    %c0_i32 = arith.constant 0 : i32
    %63 = vector.broadcast %c0_i32 : i32 to vector<4x128xi32>
    %64 = arith.cmpi eq, %62, %63 : vector<4x128xi32>
    %cst_21 = arith.constant 0.000000e+00 : f32
    %65 = vector.shape_cast %56 : vector<1x128xf32> to vector<1x128xf32>
    %66 = vector.broadcast %65 : vector<1x128xf32> to vector<4x128xf32>
    %67 = vector.broadcast %cst_21 : f32 to vector<4x128xf32>
    %68 = arith.select %64, %66, %67 : vector<4x128xi1>, vector<4x128xf32>
    %c1_i32 = arith.constant 1 : i32
    %69 = vector.broadcast %c1_i32 : i32 to vector<4x128xi32>
    %70 = arith.cmpi eq, %62, %69 : vector<4x128xi32>
    %cst_22 = arith.constant 0.000000e+00 : f32
    %71 = vector.shape_cast %55 : vector<1x128xf32> to vector<1x128xf32>
    %72 = vector.broadcast %71 : vector<1x128xf32> to vector<4x128xf32>
    %73 = vector.broadcast %cst_22 : f32 to vector<4x128xf32>
    %74 = arith.select %70, %72, %73 : vector<4x128xi1>, vector<4x128xf32>
    %75 = arith.addf %68, %74 : vector<4x128xf32>
    %c2_i32 = arith.constant 2 : i32
    %76 = vector.broadcast %c2_i32 : i32 to vector<4x128xi32>
    %77 = arith.cmpi eq, %62, %76 : vector<4x128xi32>
    %cst_23 = arith.constant 0.000000e+00 : f32
    %78 = vector.shape_cast %48 : vector<1x128xf32> to vector<1x128xf32>
    %79 = vector.broadcast %78 : vector<1x128xf32> to vector<4x128xf32>
    %80 = vector.broadcast %cst_23 : f32 to vector<4x128xf32>
    %81 = arith.select %77, %79, %80 : vector<4x128xi1>, vector<4x128xf32>
    %82 = arith.addf %75, %81 : vector<4x128xf32>
    %c3_i32 = arith.constant 3 : i32
    %83 = vector.broadcast %c3_i32 : i32 to vector<4x128xi32>
    %84 = arith.cmpi eq, %62, %83 : vector<4x128xi32>
    %cst_24 = arith.constant 0.000000e+00 : f32
    %85 = vector.shape_cast %61 : vector<1x128xf32> to vector<1x128xf32>
    %86 = vector.broadcast %85 : vector<1x128xf32> to vector<4x128xf32>
    %87 = vector.broadcast %cst_24 : f32 to vector<4x128xf32>
    %88 = arith.select %84, %86, %87 : vector<4x128xi1>, vector<4x128xf32>
    %89 = arith.addf %82, %88 : vector<4x128xf32>
    %c0_25 = arith.constant 0 : index
    %c0_26 = arith.constant 0 : index
    %90 = vector.load %arg6[%c0_25, %c0_26] : memref<4x128xf32, #tpu.memory_space<vmem>>, vector<4x128xf32>
    tpu.vector_store %arg6[%c0_25, %c0_26], %89 {strides = array<i32>} : memref<4x128xf32, #tpu.memory_space<vmem>>, vector<4x128xf32>,
    return
  }
  func.func @transform_0(%arg0: i32) -> (i32, i32) {
    %c0_i32 = arith.constant 0 : i32
    %c0_i32_0 = arith.constant 0 : i32
    %c0_i32_1 = arith.constant 0 : i32
    return %c0_i32, %c0_i32_0 : i32, i32
  }
  func.func @transform_1(%arg0: i32) -> (i32, i32) {
    %c0_i32 = arith.constant 0 : i32
    %c0_i32_0 = arith.constant 0 : i32
    %c0_i32_1 = arith.constant 0 : i32
    return %c0_i32, %c0_i32_0 : i32, i32
  }
  func.func @transform_2(%arg0: i32) -> (i32, i32) {
    %c0_i32 = arith.constant 0 : i32
    %c0_i32_0 = arith.constant 0 : i32
    %c0_i32_1 = arith.constant 0 : i32
    return %c0_i32, %c0_i32_0 : i32, i32
  }
  func.func @transform_3(%arg0: i32) -> (i32, i32) {
    %c0_i32 = arith.constant 0 : i32
    %c0_i32_0 = arith.constant 0 : i32
    %c0_i32_1 = arith.constant 0 : i32
    return %c0_i32, %c0_i32_0 : i32, i32
  }
  func.func @transform_4(%arg0: i32) -> (i32, i32) {
    %c0_i32 = arith.constant 0 : i32
    %c0_i32_0 = arith.constant 0 : i32
    %c0_i32_1 = arith.constant 0 : i32
    return %c0_i32, %c0_i32_0 : i32, i32
  }
  func.func @transform_5(%arg0: i32) -> (i32, i32) {
    %c0_i32 = arith.constant 0 : i32
    %c0_i32_0 = arith.constant 0 : i32
    %c0_i32_1 = arith.constant 0 : i32
    return %c0_i32, %c0_i32_0 : i32, i32
  }
}

module attributes {stable_mosaic.version = 11 : i64} {
  func.func @_peakness_kernel(%arg0: i32, %arg1: memref<128x3xf32, #tpu.memory_space<vmem>>, %arg2: memref<3x128xf32, #tpu.memory_space<vmem>>, %arg3: memref<1x128xf32, #tpu.memory_space<vmem>>, %arg4: memref<1x1xf32, #tpu.memory_space<vmem>>) attributes {dimension_semantics = [#tpu.dimension_semantics<arbitrary>], iteration_bounds = array<i64: 1>, scalar_prefetch = 0 : i64, scratch_operands = 0 : i64, tpu.core_type = #tpu.core_type<tc>, window_params = [{transform_indices = @transform_0, window_bounds = array<i64: 128, 3>}, {pipeline_mode = #tpu.pipeline_mode<synchronous>, transform_indices = @transform_1, window_bounds = array<i64: 3, 128>}, {pipeline_mode = #tpu.pipeline_mode<synchronous>, transform_indices = @transform_2, window_bounds = array<i64: 1, 128>}, {pipeline_mode = #tpu.pipeline_mode<synchronous>, transform_indices = @transform_3, window_bounds = array<i64: 1, 1>}]} {
    %c0_i32 = arith.constant 0 : i32
    %0 = arith.cmpi eq, %arg0, %c0_i32 : i32
    %1 = arith.extui %0 : i1 to i32
    %c0_i32_0 = arith.constant 0 : i32
    %2 = arith.cmpi ne, %1, %c0_i32_0 : i32
    scf.if %2 {
      %cst_31 = arith.constant 0.000000e+00 : f32
      %98 = vector.broadcast %cst_31 : f32 to vector<1x1xf32>
      %c0_32 = arith.constant 0 : index
      %c0_33 = arith.constant 0 : index
      %99 = vector.load %arg4[%c0_32, %c0_33] : memref<1x1xf32, #tpu.memory_space<vmem>>, vector<1x1xf32>
      tpu.vector_store %arg4[%c0_32, %c0_33], %98 {strides = array<i32>} : memref<1x1xf32, #tpu.memory_space<vmem>>, vector<1x1xf32>,
    } else {
    }
    %c0 = arith.constant 0 : index
    %c0_1 = arith.constant 0 : index
    %3 = vector.load %arg1[%c0, %c0_1] : memref<128x3xf32, #tpu.memory_space<vmem>>, vector<128x3xf32>
    %c0_2 = arith.constant 0 : index
    %c0_3 = arith.constant 0 : index
    %4 = vector.load %arg2[%c0_2, %c0_3] : memref<3x128xf32, #tpu.memory_space<vmem>>, vector<3x128xf32>
    %c0_4 = arith.constant 0 : index
    %c0_5 = arith.constant 0 : index
    %5 = vector.load %arg3[%c0_4, %c0_5] : memref<1x128xf32, #tpu.memory_space<vmem>>, vector<1x128xf32>
    %6 = vector.extract_strided_slice %3 {offsets = [0, 0], sizes = [128, 1], strides = [1, 1]} : vector<128x3xf32> to vector<128x1xf32>
    %7 = vector.extract_strided_slice %4 {offsets = [0, 0], sizes = [1, 128], strides = [1, 1]} : vector<3x128xf32> to vector<1x128xf32>
    %8 = vector.broadcast %6 : vector<128x1xf32> to vector<128x128xf32>
    %9 = vector.broadcast %7 : vector<1x128xf32> to vector<128x128xf32>
    %10 = arith.subf %8, %9 : vector<128x128xf32>
    %11 = arith.mulf %10, %10 : vector<128x128xf32>
    %12 = vector.extract_strided_slice %3 {offsets = [0, 1], sizes = [128, 1], strides = [1, 1]} : vector<128x3xf32> to vector<128x1xf32>
    %13 = vector.extract_strided_slice %4 {offsets = [1, 0], sizes = [1, 128], strides = [1, 1]} : vector<3x128xf32> to vector<1x128xf32>
    %14 = vector.broadcast %12 : vector<128x1xf32> to vector<128x128xf32>
    %15 = vector.broadcast %13 : vector<1x128xf32> to vector<128x128xf32>
    %16 = arith.subf %14, %15 : vector<128x128xf32>
    %17 = arith.mulf %16, %16 : vector<128x128xf32>
    %18 = arith.addf %11, %17 : vector<128x128xf32>
    %19 = vector.extract_strided_slice %3 {offsets = [0, 2], sizes = [128, 1], strides = [1, 1]} : vector<128x3xf32> to vector<128x1xf32>
    %20 = vector.extract_strided_slice %4 {offsets = [2, 0], sizes = [1, 128], strides = [1, 1]} : vector<3x128xf32> to vector<1x128xf32>
    %21 = vector.broadcast %19 : vector<128x1xf32> to vector<128x128xf32>
    %22 = vector.broadcast %20 : vector<1x128xf32> to vector<128x128xf32>
    %23 = arith.subf %21, %22 : vector<128x128xf32>
    %24 = arith.mulf %23, %23 : vector<128x128xf32>
    %25 = arith.addf %18, %24 : vector<128x128xf32>
    %cst = arith.constant 2.500000e-01 : f32
    %26 = vector.broadcast %cst : f32 to vector<128x128xf32>
    %27 = arith.cmpf olt, %25, %26 : vector<128x128xf32>
    %28 = arith.extui %27 : vector<128x128xi1> to vector<128x128xi32>
    %29 = arith.sitofp %28 : vector<128x128xi32> to vector<128x128xf32>
    %cst_6 = arith.constant 0.000000e+00 : f32
    %30 = vector.broadcast %cst_6 : f32 to vector<128x1xf32>
    %31 = vector.extract_strided_slice %29 {offsets = [0, 0], sizes = [128, 127], strides = [1, 1]} : vector<128x128xf32> to vector<128x127xf32>
    %32 = tpu.concatenate %30, %31 in 1 : vector<128x1xf32>, vector<128x127xf32> -> vector<128x128xf32>
    %33 = arith.addf %29, %32 : vector<128x128xf32>
    %cst_7 = arith.constant 0.000000e+00 : f32
    %34 = vector.broadcast %cst_7 : f32 to vector<128x2xf32>
    %35 = vector.extract_strided_slice %33 {offsets = [0, 0], sizes = [128, 126], strides = [1, 1]} : vector<128x128xf32> to vector<128x126xf32>
    %36 = tpu.concatenate %34, %35 in 1 : vector<128x2xf32>, vector<128x126xf32> -> vector<128x128xf32>
    %37 = arith.addf %33, %36 : vector<128x128xf32>
    %cst_8 = arith.constant 0.000000e+00 : f32
    %38 = vector.broadcast %cst_8 : f32 to vector<128x4xf32>
    %39 = vector.extract_strided_slice %37 {offsets = [0, 0], sizes = [128, 124], strides = [1, 1]} : vector<128x128xf32> to vector<128x124xf32>
    %40 = tpu.concatenate %38, %39 in 1 : vector<128x4xf32>, vector<128x124xf32> -> vector<128x128xf32>
    %41 = arith.addf %37, %40 : vector<128x128xf32>
    %cst_9 = arith.constant 0.000000e+00 : f32
    %42 = vector.broadcast %cst_9 : f32 to vector<128x8xf32>
    %43 = vector.extract_strided_slice %41 {offsets = [0, 0], sizes = [128, 120], strides = [1, 1]} : vector<128x128xf32> to vector<128x120xf32>
    %44 = tpu.concatenate %42, %43 in 1 : vector<128x8xf32>, vector<128x120xf32> -> vector<128x128xf32>
    %45 = arith.addf %41, %44 : vector<128x128xf32>
    %cst_10 = arith.constant 0.000000e+00 : f32
    %46 = vector.broadcast %cst_10 : f32 to vector<128x16xf32>
    %47 = vector.extract_strided_slice %45 {offsets = [0, 0], sizes = [128, 112], strides = [1, 1]} : vector<128x128xf32> to vector<128x112xf32>
    %48 = tpu.concatenate %46, %47 in 1 : vector<128x16xf32>, vector<128x112xf32> -> vector<128x128xf32>
    %49 = arith.addf %45, %48 : vector<128x128xf32>
    %cst_11 = arith.constant 0.000000e+00 : f32
    %50 = vector.broadcast %cst_11 : f32 to vector<128x32xf32>
    %51 = vector.extract_strided_slice %49 {offsets = [0, 0], sizes = [128, 96], strides = [1, 1]} : vector<128x128xf32> to vector<128x96xf32>
    %52 = tpu.concatenate %50, %51 in 1 : vector<128x32xf32>, vector<128x96xf32> -> vector<128x128xf32>
    %53 = arith.addf %49, %52 : vector<128x128xf32>
    %cst_12 = arith.constant 0.000000e+00 : f32
    %54 = vector.broadcast %cst_12 : f32 to vector<128x64xf32>
    %55 = vector.extract_strided_slice %53 {offsets = [0, 0], sizes = [128, 64], strides = [1, 1]} : vector<128x128xf32> to vector<128x64xf32>
    %56 = tpu.concatenate %54, %55 in 1 : vector<128x64xf32>, vector<128x64xf32> -> vector<128x128xf32>
    %57 = arith.addf %53, %56 : vector<128x128xf32>
    %cst_13 = arith.constant 1.600000e+01 : f32
    %58 = vector.broadcast %cst_13 : f32 to vector<128x128xf32>
    %59 = arith.cmpf ole, %57, %58 : vector<128x128xf32>
    %60 = arith.extui %59 : vector<128x128xi1> to vector<128x128xi32>
    %61 = arith.sitofp %60 : vector<128x128xi32> to vector<128x128xf32>
    %62 = arith.mulf %29, %61 : vector<128x128xf32>
    %cst_14 = arith.constant dense<0.000000e+00> : vector<128xf32>
    %63 = vector.multi_reduction <add>, %62, %cst_14 [1] : vector<128x128xf32> to vector<128xf32>
    %64 = vector.shape_cast %63 : vector<128xf32> to vector<128x1xf32>
    %65 = vector.broadcast %5 : vector<1x128xf32> to vector<128x128xf32>
    %66 = arith.mulf %62, %65 : vector<128x128xf32>
    %cst_15 = arith.constant dense<0.000000e+00> : vector<128xf32>
    %67 = vector.multi_reduction <add>, %66, %cst_15 [1] : vector<128x128xf32> to vector<128xf32>
    %68 = vector.shape_cast %67 : vector<128xf32> to vector<128x1xf32>
    %cst_16 = arith.constant 1.000000e+00 : f32
    %69 = vector.broadcast %cst_16 : f32 to vector<128x1xf32>
    %70 = arith.maximumf %64, %69 : vector<128x1xf32>
    %71 = arith.divf %68, %70 : vector<128x1xf32>
    %cst_17 = arith.constant 0.000000e+00 : f32
    %72 = vector.broadcast %cst_17 : f32 to vector<128x128xf32>
    %73 = arith.cmpf ogt, %62, %72 : vector<128x128xf32>
    %cst_18 = arith.constant -1.000000e+30 : f32
    %74 = vector.shape_cast %5 : vector<1x128xf32> to vector<1x128xf32>
    %75 = vector.broadcast %74 : vector<1x128xf32> to vector<128x128xf32>
    %76 = vector.broadcast %cst_18 : f32 to vector<128x128xf32>
    %77 = arith.select %73, %75, %76 : vector<128x128xi1>, vector<128x128xf32>
    %cst_19 = arith.constant dense<0xFF800000> : vector<128xf32>
    %78 = vector.multi_reduction <maximumf>, %77, %cst_19 [1] : vector<128x128xf32> to vector<128xf32>
    %79 = vector.shape_cast %78 : vector<128xf32> to vector<128x1xf32>
    %cst_20 = arith.constant 1.600000e+01 : f32
    %80 = vector.broadcast %cst_20 : f32 to vector<128x1xf32>
    %81 = arith.cmpf olt, %64, %80 : vector<128x1xf32>
    %cst_21 = arith.constant 0.000000e+00 : f32
    %cst_22 = arith.constant -1.000000e+30 : f32
    %82 = vector.broadcast %cst_21 : f32 to vector<128x1xf32>
    %83 = vector.broadcast %cst_22 : f32 to vector<128x1xf32>
    %84 = arith.select %81, %82, %83 : vector<128x1xi1>, vector<128x1xf32>
    %85 = arith.maximumf %79, %84 : vector<128x1xf32>
    %86 = arith.subf %71, %85 : vector<128x1xf32>
    %cst_23 = arith.constant 1.000000e-01 : f32
    %87 = vector.broadcast %cst_23 : f32 to vector<128x1xf32>
    %88 = arith.addf %86, %87 : vector<128x1xf32>
    %cst_24 = arith.constant 0.000000e+00 : f32
    %89 = vector.broadcast %cst_24 : f32 to vector<128x1xf32>
    %90 = arith.maximumf %88, %89 : vector<128x1xf32>
    %c0_25 = arith.constant 0 : index
    %c0_26 = arith.constant 0 : index
    %91 = vector.load %arg4[%c0_25, %c0_26] : memref<1x1xf32, #tpu.memory_space<vmem>>, vector<1x1xf32>
    %cst_27 = arith.constant dense<0.000000e+00> : vector<1xf32>
    %92 = vector.multi_reduction <add>, %90, %cst_27 [0] : vector<128x1xf32> to vector<1xf32>
    %93 = vector.shape_cast %92 : vector<1xf32> to vector<1x1xf32>
    %cst_28 = arith.constant 7.812500e-03 : f32
    %94 = vector.broadcast %cst_28 : f32 to vector<1x1xf32>
    %95 = arith.mulf %93, %94 : vector<1x1xf32>
    %96 = arith.addf %91, %95 : vector<1x1xf32>
    %c0_29 = arith.constant 0 : index
    %c0_30 = arith.constant 0 : index
    %97 = vector.load %arg4[%c0_29, %c0_30] : memref<1x1xf32, #tpu.memory_space<vmem>>, vector<1x1xf32>
    tpu.vector_store %arg4[%c0_29, %c0_30], %96 {strides = array<i32>} : memref<1x1xf32, #tpu.memory_space<vmem>>, vector<1x1xf32>,
    return
  }
  func.func @transform_0(%arg0: i32) -> (i32, i32) {
    %c0_i32 = arith.constant 0 : i32
    %c0_i32_0 = arith.constant 0 : i32
    return %arg0, %c0_i32 : i32, i32
  }
  func.func @transform_1(%arg0: i32) -> (i32, i32) {
    %c0_i32 = arith.constant 0 : i32
    %c0_i32_0 = arith.constant 0 : i32
    %c0_i32_1 = arith.constant 0 : i32
    return %c0_i32, %c0_i32_0 : i32, i32
  }
  func.func @transform_2(%arg0: i32) -> (i32, i32) {
    %c0_i32 = arith.constant 0 : i32
    %c0_i32_0 = arith.constant 0 : i32
    %c0_i32_1 = arith.constant 0 : i32
    return %c0_i32, %c0_i32_0 : i32, i32
  }
  func.func @transform_3(%arg0: i32) -> (i32, i32) {
    %c0_i32 = arith.constant 0 : i32
    %c0_i32_0 = arith.constant 0 : i32
    %c0_i32_1 = arith.constant 0 : i32
    return %c0_i32, %c0_i32_0 : i32, i32
  }
}

</mosaic_0001>

<llo_original>
// kernel: _vote_loss_impl.3
$region0: #{_vote_loss_impl.3}
  #allocation0 [shape = 'u32[]', space=smem, size = 0x4, offset = 0x4, fixed_abs, tag = 'smem constant byte address 0x4 - core index']
  #allocation1 [shape = 'u32[144,128]{1,0:T(1,128)}', space=vmem, size = 0x12000, scoped, tag = 'internal scratch']
  %s0 = inlined_call_operand.vmem [shape: f32[128,3], index: 0, kind: input, shape index: {}]
  %s1 = inlined_call_operand.vmem [shape: f32[3,128], index: 1, kind: input, shape index: {}]
  %s2 = inlined_call_operand.hbm [shape: f32[1,128], index: 2, kind: output, shape index: {0}]
  %s3 = inlined_call_operand.vmem [shape: s32[1,128], index: 3, kind: output, shape index: {1}]
  %4 = xla_tuple %s2, %s3
  %s5 = sld [smem:[#allocation0]]
  $region26: #{_vote_loss_impl.3} parent=0
    _
  %s7 = ssub.s32 1, %s5
  %s8 = scalar_select 0, %s7, %s5
  $region1: #{_vote_loss_impl.3} parent=0
    #allocation2 [shape = 'u8[512]{0}', space=vmem, size = 0x400, scoped, tag = 'output window, operand 0, single buffered']
    #allocation3 [shape = 's32[1]{0}', space=sflag, size = 0x4, scoped, tag = 'scoped memory for _vote_loss_impl.3']
    %9 = vsyncpa [#allocation3], 0
    // Predicated region
    $region2: #{_vote_loss_impl.3} parent=1 // pred_check
      _
    $region3: #{_vote_loss_impl.3} parent=1 // pred_check_branch
      %11 = sbr.rel (0) target = $region5
    $region4: #{_vote_loss_impl.3} parent=1 // pred_region
      _
    $region5: #{_vote_loss_impl.3} parent=1 // pred_fallthru
      _
    // Predicated region
    $region6: #{_vote_loss_impl.3} parent=1 // pred_check
      _
    $region7: #{_vote_loss_impl.3} parent=1 // pred_check_branch
      %13 = sbr.rel (0) target = $region9
    $region8: #{_vote_loss_impl.3} parent=1 // pred_region
      _
    $region9: #{_vote_loss_impl.3} parent=1 // pred_fallthru
      _
    %v14 = vld [vmem:[%s0] sm:$0xff]
    %v15 = vld [vmem:[%s0 + $0x8] sm:$0xff]
    %v16 = vld [vmem:[%s0 + $0x10] sm:$0xff]
    %v17 = vld [vmem:[%s0 + $0x18] sm:$0xff]
    %v18 = vld [vmem:[%s0 + $0x20] sm:$0xff]
    %v19 = vld [vmem:[%s0 + $0x28] sm:$0xff]
    %v20 = vld [vmem:[%s0 + $0x30] sm:$0xff]
    %v21 = vld [vmem:[%s0 + $0x38] sm:$0xff]
    %v22 = vld [vmem:[%s0 + $0x40] sm:$0xff]
    %v23 = vld [vmem:[%s0 + $0x48] sm:$0xff]
    %v24 = vld [vmem:[%s0 + $0x50] sm:$0xff]
    %v25 = vld [vmem:[%s0 + $0x58] sm:$0xff]
    %v26 = vld [vmem:[%s0 + $0x60] sm:$0xff]
    %v27 = vld [vmem:[%s0 + $0x68] sm:$0xff]
    %v28 = vld [vmem:[%s0 + $0x70] sm:$0xff]
    %v29 = vld [vmem:[%s0 + $0x78] sm:$0xff]
    %v30 = vld [vmem:[%s1] sm:$0x7]
    %32 = vset.pattern.permute.xlu0 0
    %33 = vperm.xlu0 %32, %v14
    %v34 = vpop.permute.xlu0 %33
    %37 = vset.pattern.permute.xlu0 0
    %38 = vperm.xlu0 %37, %v15
    %v39 = vpop.permute.xlu0 %38
    %42 = vset.pattern.permute.xlu0 0
    %43 = vperm.xlu0 %42, %v16
    %v44 = vpop.permute.xlu0 %43
    %47 = vset.pattern.permute.xlu0 0
    %48 = vperm.xlu0 %47, %v17
    %v49 = vpop.permute.xlu0 %48
    %52 = vset.pattern.permute.xlu0 0
    %53 = vperm.xlu0 %52, %v18
    %v54 = vpop.permute.xlu0 %53
    %57 = vset.pattern.permute.xlu0 0
    %58 = vperm.xlu0 %57, %v19
    %v59 = vpop.permute.xlu0 %58
    %62 = vset.pattern.permute.xlu0 0
    %63 = vperm.xlu0 %62, %v20
    %v64 = vpop.permute.xlu0 %63
    %67 = vset.pattern.permute.xlu0 0
    %68 = vperm.xlu0 %67, %v21
    %v69 = vpop.permute.xlu0 %68
    %72 = vset.pattern.permute.xlu0 0
    %73 = vperm.xlu0 %72, %v22
    %v74 = vpop.permute.xlu0 %73
    %77 = vset.pattern.permute.xlu0 0
    %78 = vperm.xlu0 %77, %v23
    %v79 = vpop.permute.xlu0 %78
    %82 = vset.pattern.permute.xlu0 0
    %83 = vperm.xlu0 %82, %v24
    %v84 = vpop.permute.xlu0 %83
    %87 = vset.pattern.permute.xlu0 0
    %88 = vperm.xlu0 %87, %v25
    %v89 = vpop.permute.xlu0 %88
    %92 = vset.pattern.permute.xlu0 0
    %93 = vperm.xlu0 %92, %v26
    %v94 = vpop.permute.xlu0 %93
    %97 = vset.pattern.permute.xlu0 0
    %98 = vperm.xlu0 %97, %v27
    %v99 = vpop.permute.xlu0 %98
    %102 = vset.pattern.permute.xlu0 0
    %103 = vperm.xlu0 %102, %v28
    %v104 = vpop.permute.xlu0 %103
    %107 = vset.pattern.permute.xlu0 0
    %108 = vperm.xlu0 %107, %v29
    %v109 = vpop.permute.xlu0 %108
    %v111 = vlaneseq
    %v112 = vshrl.u32 %v111, 7
    %v113 = vsub.s32 0, %v112
    %v114 = vrot.slane %v30, %v113
    %v115 = vsub.f32 %v34, %v114
    %v116 = vsub.f32 %v39, %v114
    %v117 = vsub.f32 %v44, %v114
    %v118 = vsub.f32 %v49, %v114
    %v119 = vsub.f32 %v54, %v114
    %v120 = vsub.f32 %v59, %v114
    %v121 = vsub.f32 %v64, %v114
    %v122 = vsub.f32 %v69, %v114
    %v123 = vsub.f32 %v74, %v114
    %v124 = vsub.f32 %v79, %v114
    %v125 = vsub.f32 %v84, %v114
    %v126 = vsub.f32 %v89, %v114
    %v127 = vsub.f32 %v94, %v114
    %v128 = vsub.f32 %v99, %v114
    %v129 = vsub.f32 %v104, %v114
    %v130 = vsub.f32 %v109, %v114
    %v131 = vmul.f32 %v115, %v115
    %v132 = vmul.f32 %v116, %v116
    %v133 = vmul.f32 %v117, %v117
    %v134 = vmul.f32 %v118, %v118
    %v135 = vmul.f32 %v119, %v119
    %v136 = vmul.f32 %v120, %v120
    %v137 = vmul.f32 %v121, %v121
    %v138 = vmul.f32 %v122, %v122
    %v139 = vmul.f32 %v123, %v123
    %v140 = vmul.f32 %v124, %v124
    %v141 = vmul.f32 %v125, %v125
    %v142 = vmul.f32 %v126, %v126
    %v143 = vmul.f32 %v127, %v127
    %v144 = vmul.f32 %v128, %v128
    %v145 = vmul.f32 %v129, %v129
    %v146 = vmul.f32 %v130, %v130
    %147 = vset.pattern.permute.xlu0 1
    %148 = vperm.xlu0 %147, %v14
    %v149 = vpop.permute.xlu0 %148
    %151 = vset.pattern.permute.xlu0 1
    %152 = vperm.xlu0 %151, %v15
    %v153 = vpop.permute.xlu0 %152
    %155 = vset.pattern.permute.xlu0 1
    %156 = vperm.xlu0 %155, %v16
    %v157 = vpop.permute.xlu0 %156
    %159 = vset.pattern.permute.xlu0 1
    %160 = vperm.xlu0 %159, %v17
    %v161 = vpop.permute.xlu0 %160
    %163 = vset.pattern.permute.xlu0 1
    %164 = vperm.xlu0 %163, %v18
    %v165 = vpop.permute.xlu0 %164
    %167 = vset.pattern.permute.xlu0 1
    %168 = vperm.xlu0 %167, %v19
    %v169 = vpop.permute.xlu0 %168
    %171 = vset.pattern.permute.xlu0 1
    %172 = vperm.xlu0 %171, %v20
    %v173 = vpop.permute.xlu0 %172
    %175 = vset.pattern.permute.xlu0 1
    %176 = vperm.xlu0 %175, %v21
    %v177 = vpop.permute.xlu0 %176
    %179 = vset.pattern.permute.xlu0 1
    %180 = vperm.xlu0 %179, %v22
    %v181 = vpop.permute.xlu0 %180
    %183 = vset.pattern.permute.xlu0 1
    %184 = vperm.xlu0 %183, %v23
    %v185 = vpop.permute.xlu0 %184
    %187 = vset.pattern.permute.xlu0 1
    %188 = vperm.xlu0 %187, %v24
    %v189 = vpop.permute.xlu0 %188
    %191 = vset.pattern.permute.xlu0 1
    %192 = vperm.xlu0 %191, %v25
    %v193 = vpop.permute.xlu0 %192
    %195 = vset.pattern.permute.xlu0 1
    %196 = vperm.xlu0 %195, %v26
    %v197 = vpop.permute.xlu0 %196
    %199 = vset.pattern.permute.xlu0 1
    %200 = vperm.xlu0 %199, %v27
    %v201 = vpop.permute.xlu0 %200
    %203 = vset.pattern.permute.xlu0 1
    %204 = vperm.xlu0 %203, %v28
    %v205 = vpop.permute.xlu0 %204
    %207 = vset.pattern.permute.xlu0 1
    %208 = vperm.xlu0 %207, %v29
    %v209 = vpop.permute.xlu0 %208
    %v211 = vlaneseq
    %v212 = vshrl.u32 %v211, 7
    %v213 = vsub.s32 1, %v212
    %v214 = vrot.slane %v30, %v213
    %v215 = vsub.f32 %v149, %v214
    %v216 = vsub.f32 %v153, %v214
    %v217 = vsub.f32 %v157, %v214
    %v218 = vsub.f32 %v161, %v214
    %v219 = vsub.f32 %v165, %v214
    %v220 = vsub.f32 %v169, %v214
    %v221 = vsub.f32 %v173, %v214
    %v222 = vsub.f32 %v177, %v214
    %v223 = vsub.f32 %v181, %v214
    %v224 = vsub.f32 %v185, %v214
    %v225 = vsub.f32 %v189, %v214
    %v226 = vsub.f32 %v193, %v214
    %v227 = vsub.f32 %v197, %v214
    %v228 = vsub.f32 %v201, %v214
    %v229 = vsub.f32 %v205, %v214
    %v230 = vsub.f32 %v209, %v214
    %v231 = vmul.f32 %v215, %v215
    %v232 = vmul.f32 %v216, %v216
    %v233 = vmul.f32 %v217, %v217
    %v234 = vmul.f32 %v218, %v218
    %v235 = vmul.f32 %v219, %v219
    %v236 = vmul.f32 %v220, %v220
    %v237 = vmul.f32 %v221, %v221
    %v238 = vmul.f32 %v222, %v222
    %v239 = vmul.f32 %v223, %v223
    %v240 = vmul.f32 %v224, %v224
    %v241 = vmul.f32 %v225, %v225
    %v242 = vmul.f32 %v226, %v226
    %v243 = vmul.f32 %v227, %v227
    %v244 = vmul.f32 %v228, %v228
    %v245 = vmul.f32 %v229, %v229
    %v246 = vmul.f32 %v230, %v230
    %v247 = vadd.f32 %v131, %v231
    %v248 = vadd.f32 %v132, %v232
    %v249 = vadd.f32 %v133, %v233
    %v250 = vadd.f32 %v134, %v234
    %v251 = vadd.f32 %v135, %v235
    %v252 = vadd.f32 %v136, %v236
    %v253 = vadd.f32 %v137, %v237
    %v254 = vadd.f32 %v138, %v238
    %v255 = vadd.f32 %v139, %v239
    %v256 = vadd.f32 %v140, %v240
    %v257 = vadd.f32 %v141, %v241
    %v258 = vadd.f32 %v142, %v242
    %v259 = vadd.f32 %v143, %v243
    %v260 = vadd.f32 %v144, %v244
    %v261 = vadd.f32 %v145, %v245
    %v262 = vadd.f32 %v146, %v246
    %263 = vset.pattern.permute.xlu0 2
    %264 = vperm.xlu0 %263, %v14
    %v265 = vpop.permute.xlu0 %264
    %267 = vset.pattern.permute.xlu0 2
    %268 = vperm.xlu0 %267, %v15
    %v269 = vpop.permute.xlu0 %268
    %271 = vset.pattern.permute.xlu0 2
    %272 = vperm.xlu0 %271, %v16
    %v273 = vpop.permute.xlu0 %272
    %275 = vset.pattern.permute.xlu0 2
    %276 = vperm.xlu0 %275, %v17
    %v277 = vpop.permute.xlu0 %276
    %279 = vset.pattern.permute.xlu0 2
    %280 = vperm.xlu0 %279, %v18
    %v281 = vpop.permute.xlu0 %280
    %283 = vset.pattern.permute.xlu0 2
    %284 = vperm.xlu0 %283, %v19
    %v285 = vpop.permute.xlu0 %284
    %287 = vset.pattern.permute.xlu0 2
    %288 = vperm.xlu0 %287, %v20
    %v289 = vpop.permute.xlu0 %288
    %291 = vset.pattern.permute.xlu0 2
    %292 = vperm.xlu0 %291, %v21
    %v293 = vpop.permute.xlu0 %292
    %295 = vset.pattern.permute.xlu0 2
    %296 = vperm.xlu0 %295, %v22
    %v297 = vpop.permute.xlu0 %296
    %299 = vset.pattern.permute.xlu0 2
    %300 = vperm.xlu0 %299, %v23
    %v301 = vpop.permute.xlu0 %300
    %303 = vset.pattern.permute.xlu0 2
    %304 = vperm.xlu0 %303, %v24
    %v305 = vpop.permute.xlu0 %304
    %307 = vset.pattern.permute.xlu0 2
    %308 = vperm.xlu0 %307, %v25
    %v309 = vpop.permute.xlu0 %308
    %311 = vset.pattern.permute.xlu0 2
    %312 = vperm.xlu0 %311, %v26
    %v313 = vpop.permute.xlu0 %312
    %315 = vset.pattern.permute.xlu0 2
    %316 = vperm.xlu0 %315, %v27
    %v317 = vpop.permute.xlu0 %316
    %319 = vset.pattern.permute.xlu0 2
    %320 = vperm.xlu0 %319, %v28
    %v321 = vpop.permute.xlu0 %320
    %323 = vset.pattern.permute.xlu0 2
    %324 = vperm.xlu0 %323, %v29
    %v325 = vpop.permute.xlu0 %324
    %v327 = vlaneseq
    %v328 = vshrl.u32 %v327, 7
    %v329 = vsub.s32 2, %v328
    %v330 = vrot.slane %v30, %v329
    %v331 = vsub.f32 %v265, %v330
    %v332 = vsub.f32 %v269, %v330
    %v333 = vsub.f32 %v273, %v330
    %v334 = vsub.f32 %v277, %v330
    %v335 = vsub.f32 %v281, %v330
    %v336 = vsub.f32 %v285, %v330
    %v337 = vsub.f32 %v289, %v330
    %v338 = vsub.f32 %v293, %v330
    %v339 = vsub.f32 %v297, %v330
    %v340 = vsub.f32 %v301, %v330
    %v341 = vsub.f32 %v305, %v330
    %v342 = vsub.f32 %v309, %v330
    %v343 = vsub.f32 %v313, %v330
    %v344 = vsub.f32 %v317, %v330
    %v345 = vsub.f32 %v321, %v330
    %v346 = vsub.f32 %v325, %v330
    %v347 = vmul.f32 %v331, %v331
    %v348 = vmul.f32 %v332, %v332
    %v349 = vmul.f32 %v333, %v333
    %v350 = vmul.f32 %v334, %v334
    %v351 = vmul.f32 %v335, %v335
    %v352 = vmul.f32 %v336, %v336
    %v353 = vmul.f32 %v337, %v337
    %v354 = vmul.f32 %v338, %v338
    %v355 = vmul.f32 %v339, %v339
    %v356 = vmul.f32 %v340, %v340
    %v357 = vmul.f32 %v341, %v341
    %v358 = vmul.f32 %v342, %v342
    %v359 = vmul.f32 %v343, %v343
    %v360 = vmul.f32 %v344, %v344
    %v361 = vmul.f32 %v345, %v345
    %v362 = vmul.f32 %v346, %v346
    %v363 = vadd.f32 %v247, %v347
    %v364 = vadd.f32 %v248, %v348
    %v365 = vadd.f32 %v249, %v349
    %v366 = vadd.f32 %v250, %v350
    %v367 = vadd.f32 %v251, %v351
    %v368 = vadd.f32 %v252, %v352
    %v369 = vadd.f32 %v253, %v353
    %v370 = vadd.f32 %v254, %v354
    %v371 = vadd.f32 %v255, %v355
    %v372 = vadd.f32 %v256, %v356
    %v373 = vadd.f32 %v257, %v357
    %v374 = vadd.f32 %v258, %v358
    %v375 = vadd.f32 %v259, %v359
    %v376 = vadd.f32 %v260, %v360
    %v377 = vadd.f32 %v261, %v361
    %v378 = vadd.f32 %v262, %v362
    %v379 = vmin.f32 %v363, %v367
    %v380 = vmin.f32 %v364, %v368
    %v381 = vmin.f32 %v365, %v369
    %v382 = vmin.f32 %v366, %v370
    %v383 = vmin.f32 %v379, %v371
    %v384 = vmin.f32 %v380, %v372
    %v385 = vmin.f32 %v381, %v373
    %v386 = vmin.f32 %v382, %v374
    %v387 = vmin.f32 %v383, %v375
    %v388 = vmin.f32 %v384, %v376
    %v389 = vmin.f32 %v385, %v377
    %v390 = vmin.f32 %v386, %v378
    %v391 = vmin.f32 %v387, %v388
    %v392 = vmin.f32 %v389, %v390
    %v393 = vmin.f32 %v391, %v392
    %v394 = vrot.slane %v393, 4
    %v395 = vmin.f32 %v393, %v394
    %v396 = vrot.slane %v395, 2
    %v397 = vmin.f32 %v395, %v396
    %v398 = vrot.slane %v397, 1
    %v399 = vmin.f32 %v397, %v398
    %v400 = vlaneseq
    %v401 = vshrl.u32 %v400, 7
    %v402 = vadd.s32 %v401, 8
    %v403 = vadd.s32 %v401, 16
    %v404 = vadd.s32 %v401, 24
    %v405 = vadd.s32 %v401, 32
    %v406 = vadd.s32 %v401, 40
    %v407 = vadd.s32 %v401, 48
    %v408 = vadd.s32 %v401, 56
    %v409 = vadd.s32 %v401, 64
    %v410 = vadd.s32 %v401, 72
    %v411 = vadd.s32 %v401, 80
    %v412 = vadd.s32 %v401, 88
    %v413 = vadd.s32 %v401, 96
    %v414 = vadd.s32 %v401, 104
    %v415 = vadd.s32 %v401, 112
    %v416 = vadd.s32 %v401, 120
    %v417 = vcvt.s32.f32 %v401
    %v418 = vcvt.s32.f32 %v402
    %v419 = vcvt.s32.f32 %v403
    %v420 = vcvt.s32.f32 %v404
    %v421 = vcvt.s32.f32 %v405
    %v422 = vcvt.s32.f32 %v406
    %v423 = vcvt.s32.f32 %v407
    %v424 = vcvt.s32.f32 %v408
    %v425 = vcvt.s32.f32 %v409
    %v426 = vcvt.s32.f32 %v410
    %v427 = vcvt.s32.f32 %v411
    %v428 = vcvt.s32.f32 %v412
    %v429 = vcvt.s32.f32 %v413
    %v430 = vcvt.s32.f32 %v414
    %v431 = vcvt.s32.f32 %v415
    %v432 = vcvt.s32.f32 %v416
    %vm433 = vcmp.le.f32.partialorder %v363, %v399
    %vm434 = vcmp.le.f32.partialorder %v364, %v399
    %vm435 = vcmp.le.f32.partialorder %v365, %v399
    %vm436 = vcmp.le.f32.partialorder %v366, %v399
    %vm437 = vcmp.le.f32.partialorder %v367, %v399
    %vm438 = vcmp.le.f32.partialorder %v368, %v399
    %vm439 = vcmp.le.f32.partialorder %v369, %v399
    %vm440 = vcmp.le.f32.partialorder %v370, %v399
    %vm441 = vcmp.le.f32.partialorder %v371, %v399
    %vm442 = vcmp.le.f32.partialorder %v372, %v399
    %vm443 = vcmp.le.f32.partialorder %v373, %v399
    %vm444 = vcmp.le.f32.partialorder %v374, %v399
    %vm445 = vcmp.le.f32.partialorder %v375, %v399
    %vm446 = vcmp.le.f32.partialorder %v376, %v399
    %vm447 = vcmp.le.f32.partialorder %v377, %v399
    %vm448 = vcmp.le.f32.partialorder %v378, %v399
    %v449 = vsel %vm433, %v417, 128.0
    %v450 = vsel %vm434, %v418, 128.0
    %v451 = vsel %vm435, %v419, 128.0
    %v452 = vsel %vm436, %v420, 128.0
    %v453 = vsel %vm437, %v421, 128.0
    %v454 = vsel %vm438, %v422, 128.0
    %v455 = vsel %vm439, %v423, 128.0
    %v456 = vsel %vm440, %v424, 128.0
    %v457 = vsel %vm441, %v425, 128.0
    %v458 = vsel %vm442, %v426, 128.0
    %v459 = vsel %vm443, %v427, 128.0
    %v460 = vsel %vm444, %v428, 128.0
    %v461 = vsel %vm445, %v429, 128.0
    %v462 = vsel %vm446, %v430, 128.0
    %v463 = vsel %vm447, %v431, 128.0
    %v464 = vsel %vm448, %v432, 128.0
    %v465 = vmin.f32 %v449, %v453
    %v466 = vmin.f32 %v450, %v454
    %v467 = vmin.f32 %v451, %v455
    %v468 = vmin.f32 %v452, %v456
    %v469 = vmin.f32 %v465, %v457
    %v470 = vmin.f32 %v466, %v458
    %v471 = vmin.f32 %v467, %v459
    %v472 = vmin.f32 %v468, %v460
    %v473 = vmin.f32 %v469, %v461
    %v474 = vmin.f32 %v470, %v462
    %v475 = vmin.f32 %v471, %v463
    %v476 = vmin.f32 %v472, %v464
    %v477 = vmin.f32 %v473, %v474
    %v478 = vmin.f32 %v475, %v476
    %v479 = vmin.f32 %v477, %v478
    %v480 = vrot.slane %v479, 4
    %v481 = vmin.f32 %v479, %v480
    %v482 = vrot.slane %v481, 2
    %v483 = vmin.f32 %v481, %v482
    %v484 = vrot.slane %v483, 1
    %v485 = vmin.f32 %v483, %v484
    %v486 = vrsqrt.pop %v399
    %v487 = vmul.f32 %v399, %v486
    %vm488 = vcmp.eq.f32.partialorder %v399, inf
    %v489 = vsel %vm488, %v399, %v487
    %vm490 = vcmp.eq.f32.partialorder %v399, 0.0
    %v491 = vand.u32 %v399, 2147483648
    %v492 = vsel %vm490, %v491, %v489
    %493 = vst [vmem:[#allocation2] sm:$0x1] %v492
    %v494 = vcvt.f32.s32.to.zero.pseudo %v485
    %495 = vst [vmem:[%s3] sm:$0x1] %v494
    // Predicated region
    $region10: #{_vote_loss_impl.3} parent=1 // pred_check
      _
    $region11: #{_vote_loss_impl.3} parent=1 // pred_check_branch
      %497 = sbr.rel (0) target = $region13
    $region12: #{_vote_loss_impl.3} parent=1 // pred_region
      %s499 = ssub.s32 16, 16
      %500 = vsyncadd [#allocation3], %s499
      %s502 = sshll.u32 [#allocation2], 4
      %s503 = int_to_ptr.vmem [resolvable:$true] %s502
      %505 = dma.vmem_to_hbm [thread:$0]  %s503, 16, %s2, [#allocation3]
    $region13: #{_vote_loss_impl.3} parent=1 // pred_fallthru
      _
    // Predicated region
    $region14: #{_vote_loss_impl.3} parent=1 // pred_check
      _
    $region15: #{_vote_loss_impl.3} parent=1 // pred_check_branch
      %507 = sbr.rel (0) target = $region17
    $region16: #{_vote_loss_impl.3} parent=1 // pred_region
      _
    $region17: #{_vote_loss_impl.3} parent=1 // pred_fallthru
      _
    // Predicated region
    $region18: #{_vote_loss_impl.3} parent=1 // pred_check
      _
    $region19: #{_vote_loss_impl.3} parent=1 // pred_check_branch
      %509 = sbr.rel (0) target = $region21
    $region20: #{_vote_loss_impl.3} parent=1 // pred_region
      %510 = dma.done [#allocation3], 16
    $region21: #{_vote_loss_impl.3} parent=1 // pred_fallthru
      _
    // Predicated region
    $region22: #{_vote_loss_impl.3} parent=1 // pred_check
      _
    $region23: #{_vote_loss_impl.3} parent=1 // pred_check_branch
      %512 = sbr.rel (0) target = $region25
    $region24: #{_vote_loss_impl.3} parent=1 // pred_region
      _
    $region25: #{_vote_loss_impl.3} parent=1 // pred_fallthru
      _
    %513 = vsyncpa [#allocation3], 1

// kernel: _vote_loss_impl.4
$region0: #{_vote_loss_impl.4}
  #allocation0 [shape = 'u32[]', space=smem, size = 0x4, offset = 0x4, fixed_abs, tag = 'smem constant byte address 0x4 - core index']
  #allocation1 [shape = 'u32[144,128]{1,0:T(1,128)}', space=vmem, size = 0x12000, scoped, tag = 'internal scratch']
  %s0 = inlined_call_operand.vmem [shape: f32[128,3], index: 0, kind: input, shape index: {}]
  %s1 = inlined_call_operand.vmem [shape: f32[3,128], index: 1, kind: input, shape index: {}]
  %s2 = inlined_call_operand.vmem [shape: f32[128,32], index: 2, kind: input, shape index: {}]
  %s3 = inlined_call_operand.vmem [shape: f32[32,128], index: 3, kind: input, shape index: {}]
  %s4 = inlined_call_operand.vmem [shape: f32[32,128], index: 4, kind: input, shape index: {}]
  %s5 = inlined_call_operand.vmem [shape: f32[4,128], index: 5, kind: output, shape index: {}]
  %s6 = sld [smem:[#allocation0]]
  $region30: #{_vote_loss_impl.4} parent=0
    _
  %s8 = ssub.s32 1, %s6
  %s9 = scalar_select 0, %s8, %s6
  // Predicated region
  $region2: #{_vote_loss_impl.4} parent=0 // pred_check
    _
  $region3: #{_vote_loss_impl.4} parent=0 // pred_check_branch
    %11 = sbr.rel (0) target = $region5
  $region4: #{_vote_loss_impl.4} parent=0 // pred_region
    _
  $region5: #{_vote_loss_impl.4} parent=0 // pred_fallthru
    _
  // Predicated region
  $region6: #{_vote_loss_impl.4} parent=0 // pred_check
    _
  $region7: #{_vote_loss_impl.4} parent=0 // pred_check_branch
    %13 = sbr.rel (0) target = $region9
  $region8: #{_vote_loss_impl.4} parent=0 // pred_region
    _
  $region9: #{_vote_loss_impl.4} parent=0 // pred_fallthru
    _
  // Predicated region
  $region10: #{_vote_loss_impl.4} parent=0 // pred_check
    _
  $region11: #{_vote_loss_impl.4} parent=0 // pred_check_branch
    %15 = sbr.rel (0) target = $region13
  $region12: #{_vote_loss_impl.4} parent=0 // pred_region
    _
  $region13: #{_vote_loss_impl.4} parent=0 // pred_fallthru
    _
  // Predicated region
  $region14: #{_vote_loss_impl.4} parent=0 // pred_check
    _
  $region15: #{_vote_loss_impl.4} parent=0 // pred_check_branch
    %17 = sbr.rel (0) target = $region17
  $region16: #{_vote_loss_impl.4} parent=0 // pred_region
    _
  $region17: #{_vote_loss_impl.4} parent=0 // pred_fallthru
    _
  // Predicated region
  $region18: #{_vote_loss_impl.4} parent=0 // pred_check
    _
  $region19: #{_vote_loss_impl.4} parent=0 // pred_check_branch
    %19 = sbr.rel (0) target = $region21
  $region20: #{_vote_loss_impl.4} parent=0 // pred_region
    _
  $region21: #{_vote_loss_impl.4} parent=0 // pred_fallthru
    _
  %v20 = vld [vmem:[%s0] sm:$0xff]
  %v21 = vld [vmem:[%s0 + $0x8] sm:$0xff]
  %v22 = vld [vmem:[%s0 + $0x10] sm:$0xff]
  %v23 = vld [vmem:[%s0 + $0x18] sm:$0xff]
  %v24 = vld [vmem:[%s0 + $0x20] sm:$0xff]
  %v25 = vld [vmem:[%s0 + $0x28] sm:$0xff]
  %v26 = vld [vmem:[%s0 + $0x30] sm:$0xff]
  %v27 = vld [vmem:[%s0 + $0x38] sm:$0xff]
  %v28 = vld [vmem:[%s0 + $0x40] sm:$0xff]
  %v29 = vld [vmem:[%s0 + $0x48] sm:$0xff]
  %v30 = vld [vmem:[%s0 + $0x50] sm:$0xff]
  %v31 = vld [vmem:[%s0 + $0x58] sm:$0xff]
  %v32 = vld [vmem:[%s0 + $0x60] sm:$0xff]
  %v33 = vld [vmem:[%s0 + $0x68] sm:$0xff]
  %v34 = vld [vmem:[%s0 + $0x70] sm:$0xff]
  %v35 = vld [vmem:[%s0 + $0x78] sm:$0xff]
  %v36 = vld [vmem:[%s1] sm:$0x7]
  %38 = vset.pattern.permute.xlu0 0
  %39 = vperm.xlu0 %38, %v20
  %v40 = vpop.permute.xlu0 %39
  %43 = vset.pattern.permute.xlu0 0
  %44 = vperm.xlu0 %43, %v21
  %v45 = vpop.permute.xlu0 %44
  %48 = vset.pattern.permute.xlu0 0
  %49 = vperm.xlu0 %48, %v22
  %v50 = vpop.permute.xlu0 %49
  %53 = vset.pattern.permute.xlu0 0
  %54 = vperm.xlu0 %53, %v23
  %v55 = vpop.permute.xlu0 %54
  %58 = vset.pattern.permute.xlu0 0
  %59 = vperm.xlu0 %58, %v24
  %v60 = vpop.permute.xlu0 %59
  %63 = vset.pattern.permute.xlu0 0
  %64 = vperm.xlu0 %63, %v25
  %v65 = vpop.permute.xlu0 %64
  %68 = vset.pattern.permute.xlu0 0
  %69 = vperm.xlu0 %68, %v26
  %v70 = vpop.permute.xlu0 %69
  %73 = vset.pattern.permute.xlu0 0
  %74 = vperm.xlu0 %73, %v27
  %v75 = vpop.permute.xlu0 %74
  %78 = vset.pattern.permute.xlu0 0
  %79 = vperm.xlu0 %78, %v28
  %v80 = vpop.permute.xlu0 %79
  %83 = vset.pattern.permute.xlu0 0
  %84 = vperm.xlu0 %83, %v29
  %v85 = vpop.permute.xlu0 %84
  %88 = vset.pattern.permute.xlu0 0
  %89 = vperm.xlu0 %88, %v30
  %v90 = vpop.permute.xlu0 %89
  %93 = vset.pattern.permute.xlu0 0
  %94 = vperm.xlu0 %93, %v31
  %v95 = vpop.permute.xlu0 %94
  %98 = vset.pattern.permute.xlu0 0
  %99 = vperm.xlu0 %98, %v32
  %v100 = vpop.permute.xlu0 %99
  %103 = vset.pattern.permute.xlu0 0
  %104 = vperm.xlu0 %103, %v33
  %v105 = vpop.permute.xlu0 %104
  %108 = vset.pattern.permute.xlu0 0
  %109 = vperm.xlu0 %108, %v34
  %v110 = vpop.permute.xlu0 %109
  %113 = vset.pattern.permute.xlu0 0
  %114 = vperm.xlu0 %113, %v35
  %v115 = vpop.permute.xlu0 %114
  %v117 = vlaneseq
  %v118 = vshrl.u32 %v117, 7
  %v119 = vsub.s32 0, %v118
  %v120 = vrot.slane %v36, %v119
  %v121 = vsub.f32 %v40, %v120
  %v122 = vsub.f32 %v45, %v120
  %v123 = vsub.f32 %v50, %v120
  %v124 = vsub.f32 %v55, %v120
  %v125 = vsub.f32 %v60, %v120
  %v126 = vsub.f32 %v65, %v120
  %v127 = vsub.f32 %v70, %v120
  %v128 = vsub.f32 %v75, %v120
  %v129 = vsub.f32 %v80, %v120
  %v130 = vsub.f32 %v85, %v120
  %v131 = vsub.f32 %v90, %v120
  %v132 = vsub.f32 %v95, %v120
  %v133 = vsub.f32 %v100, %v120
  %v134 = vsub.f32 %v105, %v120
  %v135 = vsub.f32 %v110, %v120
  %v136 = vsub.f32 %v115, %v120
  %v137 = vmul.f32 %v121, %v121
  %v138 = vmul.f32 %v122, %v122
  %v139 = vmul.f32 %v123, %v123
  %v140 = vmul.f32 %v124, %v124
  %v141 = vmul.f32 %v125, %v125
  %v142 = vmul.f32 %v126, %v126
  %v143 = vmul.f32 %v127, %v127
  %v144 = vmul.f32 %v128, %v128
  %v145 = vmul.f32 %v129, %v129
  %v146 = vmul.f32 %v130, %v130
  %v147 = vmul.f32 %v131, %v131
  %v148 = vmul.f32 %v132, %v132
  %v149 = vmul.f32 %v133, %v133
  %v150 = vmul.f32 %v134, %v134
  %v151 = vmul.f32 %v135, %v135
  %v152 = vmul.f32 %v136, %v136
  %153 = vset.pattern.permute.xlu0 1
  %154 = vperm.xlu0 %153, %v20
  %v155 = vpop.permute.xlu0 %154
  %157 = vset.pattern.permute.xlu0 1
  %158 = vperm.xlu0 %157, %v21
  %v159 = vpop.permute.xlu0 %158
  %161 = vset.pattern.permute.xlu0 1
  %162 = vperm.xlu0 %161, %v22
  %v163 = vpop.permute.xlu0 %162
  %165 = vset.pattern.permute.xlu0 1
  %166 = vperm.xlu0 %165, %v23
  %v167 = vpop.permute.xlu0 %166
  %169 = vset.pattern.permute.xlu0 1
  %170 = vperm.xlu0 %169, %v24
  %v171 = vpop.permute.xlu0 %170
  %173 = vset.pattern.permute.xlu0 1
  %174 = vperm.xlu0 %173, %v25
  %v175 = vpop.permute.xlu0 %174
  %177 = vset.pattern.permute.xlu0 1
  %178 = vperm.xlu0 %177, %v26
  %v179 = vpop.permute.xlu0 %178
  %181 = vset.pattern.permute.xlu0 1
  %182 = vperm.xlu0 %181, %v27
  %v183 = vpop.permute.xlu0 %182
  %185 = vset.pattern.permute.xlu0 1
  %186 = vperm.xlu0 %185, %v28
  %v187 = vpop.permute.xlu0 %186
  %189 = vset.pattern.permute.xlu0 1
  %190 = vperm.xlu0 %189, %v29
  %v191 = vpop.permute.xlu0 %190
  %193 = vset.pattern.permute.xlu0 1
  %194 = vperm.xlu0 %193, %v30
  %v195 = vpop.permute.xlu0 %194
  %197 = vset.pattern.permute.xlu0 1
  %198 = vperm.xlu0 %197, %v31
  %v199 = vpop.permute.xlu0 %198
  %201 = vset.pattern.permute.xlu0 1
  %202 = vperm.xlu0 %201, %v32
  %v203 = vpop.permute.xlu0 %202
  %205 = vset.pattern.permute.xlu0 1
  %206 = vperm.xlu0 %205, %v33
  %v207 = vpop.permute.xlu0 %206
  %209 = vset.pattern.permute.xlu0 1
  %210 = vperm.xlu0 %209, %v34
  %v211 = vpop.permute.xlu0 %210
  %213 = vset.pattern.permute.xlu0 1
  %214 = vperm.xlu0 %213, %v35
  %v215 = vpop.permute.xlu0 %214
  %v217 = vlaneseq
  %v218 = vshrl.u32 %v217, 7
  %v219 = vsub.s32 1, %v218
  %v220 = vrot.slane %v36, %v219
  %v221 = vsub.f32 %v155, %v220
  %v222 = vsub.f32 %v159, %v220
  %v223 = vsub.f32 %v163, %v220
  %v224 = vsub.f32 %v167, %v220
  %v225 = vsub.f32 %v171, %v220
  %v226 = vsub.f32 %v175, %v220
  %v227 = vsub.f32 %v179, %v220
  %v228 = vsub.f32 %v183, %v220
  %v229 = vsub.f32 %v187, %v220
  %v230 = vsub.f32 %v191, %v220
  %v231 = vsub.f32 %v195, %v220
  %v232 = vsub.f32 %v199, %v220
  %v233 = vsub.f32 %v203, %v220
  %v234 = vsub.f32 %v207, %v220
  %v235 = vsub.f32 %v211, %v220
  %v236 = vsub.f32 %v215, %v220
  %v237 = vmul.f32 %v221, %v221
  %v238 = vmul.f32 %v222, %v222
  %v239 = vmul.f32 %v223, %v223
  %v240 = vmul.f32 %v224, %v224
  %v241 = vmul.f32 %v225, %v225
  %v242 = vmul.f32 %v226, %v226
  %v243 = vmul.f32 %v227, %v227
  %v244 = vmul.f32 %v228, %v228
  %v245 = vmul.f32 %v229, %v229
  %v246 = vmul.f32 %v230, %v230
  %v247 = vmul.f32 %v231, %v231
  %v248 = vmul.f32 %v232, %v232
  %v249 = vmul.f32 %v233, %v233
  %v250 = vmul.f32 %v234, %v234
  %v251 = vmul.f32 %v235, %v235
  %v252 = vmul.f32 %v236, %v236
  %v253 = vadd.f32 %v137, %v237
  %v254 = vadd.f32 %v138, %v238
  %v255 = vadd.f32 %v139, %v239
  %v256 = vadd.f32 %v140, %v240
  %v257 = vadd.f32 %v141, %v241
  %v258 = vadd.f32 %v142, %v242
  %v259 = vadd.f32 %v143, %v243
  %v260 = vadd.f32 %v144, %v244
  %v261 = vadd.f32 %v145, %v245
  %v262 = vadd.f32 %v146, %v246
  %v263 = vadd.f32 %v147, %v247
  %v264 = vadd.f32 %v148, %v248
  %v265 = vadd.f32 %v149, %v249
  %v266 = vadd.f32 %v150, %v250
  %v267 = vadd.f32 %v151, %v251
  %v268 = vadd.f32 %v152, %v252
  %269 = vset.pattern.permute.xlu0 2
  %270 = vperm.xlu0 %269, %v20
  %v271 = vpop.permute.xlu0 %270
  %273 = vset.pattern.permute.xlu0 2
  %274 = vperm.xlu0 %273, %v21
  %v275 = vpop.permute.xlu0 %274
  %277 = vset.pattern.permute.xlu0 2
  %278 = vperm.xlu0 %277, %v22
  %v279 = vpop.permute.xlu0 %278
  %281 = vset.pattern.permute.xlu0 2
  %282 = vperm.xlu0 %281, %v23
  %v283 = vpop.permute.xlu0 %282
  %285 = vset.pattern.permute.xlu0 2
  %286 = vperm.xlu0 %285, %v24
  %v287 = vpop.permute.xlu0 %286
  %289 = vset.pattern.permute.xlu0 2
  %290 = vperm.xlu0 %289, %v25
  %v291 = vpop.permute.xlu0 %290
  %293 = vset.pattern.permute.xlu0 2
  %294 = vperm.xlu0 %293, %v26
  %v295 = vpop.permute.xlu0 %294
  %297 = vset.pattern.permute.xlu0 2
  %298 = vperm.xlu0 %297, %v27
  %v299 = vpop.permute.xlu0 %298
  %301 = vset.pattern.permute.xlu0 2
  %302 = vperm.xlu0 %301, %v28
  %v303 = vpop.permute.xlu0 %302
  %305 = vset.pattern.permute.xlu0 2
  %306 = vperm.xlu0 %305, %v29
  %v307 = vpop.permute.xlu0 %306
  %309 = vset.pattern.permute.xlu0 2
  %310 = vperm.xlu0 %309, %v30
  %v311 = vpop.permute.xlu0 %310
  %313 = vset.pattern.permute.xlu0 2
  %314 = vperm.xlu0 %313, %v31
  %v315 = vpop.permute.xlu0 %314
  %317 = vset.pattern.permute.xlu0 2
  %318 = vperm.xlu0 %317, %v32
  %v319 = vpop.permute.xlu0 %318
  %321 = vset.pattern.permute.xlu0 2
  %322 = vperm.xlu0 %321, %v33
  %v323 = vpop.permute.xlu0 %322
  %325 = vset.pattern.permute.xlu0 2
  %326 = vperm.xlu0 %325, %v34
  %v327 = vpop.permute.xlu0 %326
  %329 = vset.pattern.permute.xlu0 2
  %330 = vperm.xlu0 %329, %v35
  %v331 = vpop.permute.xlu0 %330
  %v333 = vlaneseq
  %v334 = vshrl.u32 %v333, 7
  %v335 = vsub.s32 2, %v334
  %v336 = vrot.slane %v36, %v335
  %v337 = vsub.f32 %v271, %v336
  %v338 = vsub.f32 %v275, %v336
  %v339 = vsub.f32 %v279, %v336
  %v340 = vsub.f32 %v283, %v336
  %v341 = vsub.f32 %v287, %v336
  %v342 = vsub.f32 %v291, %v336
  %v343 = vsub.f32 %v295, %v336
  %v344 = vsub.f32 %v299, %v336
  %v345 = vsub.f32 %v303, %v336
  %v346 = vsub.f32 %v307, %v336
  %v347 = vsub.f32 %v311, %v336
  %v348 = vsub.f32 %v315, %v336
  %v349 = vsub.f32 %v319, %v336
  %v350 = vsub.f32 %v323, %v336
  %v351 = vsub.f32 %v327, %v336
  %v352 = vsub.f32 %v331, %v336
  %v353 = vmul.f32 %v337, %v337
  %v354 = vmul.f32 %v338, %v338
  %v355 = vmul.f32 %v339, %v339
  %v356 = vmul.f32 %v340, %v340
  %v357 = vmul.f32 %v341, %v341
  %v358 = vmul.f32 %v342, %v342
  %v359 = vmul.f32 %v343, %v343
  %v360 = vmul.f32 %v344, %v344
  %v361 = vmul.f32 %v345, %v345
  %v362 = vmul.f32 %v346, %v346
  %v363 = vmul.f32 %v347, %v347
  %v364 = vmul.f32 %v348, %v348
  %v365 = vmul.f32 %v349, %v349
  %v366 = vmul.f32 %v350, %v350
  %v367 = vmul.f32 %v351, %v351
  %v368 = vmul.f32 %v352, %v352
  %v369 = vadd.f32 %v253, %v353
  %v370 = vadd.f32 %v254, %v354
  %v371 = vadd.f32 %v255, %v355
  %v372 = vadd.f32 %v256, %v356
  %v373 = vadd.f32 %v257, %v357
  %v374 = vadd.f32 %v258, %v358
  %v375 = vadd.f32 %v259, %v359
  %v376 = vadd.f32 %v260, %v360
  %v377 = vadd.f32 %v261, %v361
  %v378 = vadd.f32 %v262, %v362
  %v379 = vadd.f32 %v263, %v363
  %v380 = vadd.f32 %v264, %v364
  %v381 = vadd.f32 %v265, %v365
  %v382 = vadd.f32 %v266, %v366
  %v383 = vadd.f32 %v267, %v367
  %v384 = vadd.f32 %v268, %v368
  %v385 = vld [vmem:[%s2] sm:$0xff]
  %v386 = vld [vmem:[%s2 + $0x8] sm:$0xff]
  %v387 = vld [vmem:[%s2 + $0x10] sm:$0xff]
  %v388 = vld [vmem:[%s2 + $0x18] sm:$0xff]
  %v389 = vld [vmem:[%s2 + $0x20] sm:$0xff]
  %v390 = vld [vmem:[%s2 + $0x28] sm:$0xff]
  %v391 = vld [vmem:[%s2 + $0x30] sm:$0xff]
  %v392 = vld [vmem:[%s2 + $0x38] sm:$0xff]
  %v393 = vld [vmem:[%s2 + $0x40] sm:$0xff]
  %v394 = vld [vmem:[%s2 + $0x48] sm:$0xff]
  %v395 = vld [vmem:[%s2 + $0x50] sm:$0xff]
  %v396 = vld [vmem:[%s2 + $0x58] sm:$0xff]
  %v397 = vld [vmem:[%s2 + $0x60] sm:$0xff]
  %v398 = vld [vmem:[%s2 + $0x68] sm:$0xff]
  %v399 = vld [vmem:[%s2 + $0x70] sm:$0xff]
  %v400 = vld [vmem:[%s2 + $0x78] sm:$0xff]
  %v401 = vld [vmem:[%s3] sm:$0xff]
  %v402 = vld [vmem:[%s3 + $0x8] sm:$0xff]
  %v403 = vld [vmem:[%s3 + $0x10] sm:$0xff]
  %v404 = vld [vmem:[%s3 + $0x18] sm:$0xff]
  %v405 = vld [vmem:[%s4] sm:$0xff]
  %v406 = vld [vmem:[%s4 + $0x8] sm:$0xff]
  %v407 = vld [vmem:[%s4 + $0x10] sm:$0xff]
  %v408 = vld [vmem:[%s4 + $0x18] sm:$0xff]
  %vm409 = vcmask 261120
  %v411 = vsel %vm409, %v385, 0
  %v414 = vsel %vm409, %v386, 0
  %v417 = vsel %vm409, %v387, 0
  %v420 = vsel %vm409, %v388, 0
  %v423 = vsel %vm409, %v389, 0
  %v426 = vsel %vm409, %v390, 0
  %v429 = vsel %vm409, %v391, 0
  %v432 = vsel %vm409, %v392, 0
  %v435 = vsel %vm409, %v393, 0
  %v438 = vsel %vm409, %v394, 0
  %v441 = vsel %vm409, %v395, 0
  %v444 = vsel %vm409, %v396, 0
  %v447 = vsel %vm409, %v397, 0
  %v450 = vsel %vm409, %v398, 0
  %v453 = vsel %vm409, %v399, 0
  %v456 = vsel %vm409, %v400, 0
  %458 = vmatprep.subr.mxu0 0.0
  %459 = vmatpush1.msra.mxu0 0.0
  %460 = vmatprep.subr.mxu0 0.0
  %461 = vmatpush1.msra.mxu0 0.0
  %462 = vmatprep.subr.mxu0 0.0
  %463 = vmatpush1.msra.mxu0 0.0
  %464 = vmatprep.subr.mxu0 0.0
  %465 = vmatpush1.msra.mxu0 0.0
  %466 = vmatprep.subr.mxu0 0.0
  %467 = vmatpush1.msra.mxu0 0.0
  %468 = vmatprep.subr.mxu0 0.0
  %469 = vmatpush1.msra.mxu0 0.0
  %470 = vmatprep.subr.mxu0 0.0
  %471 = vmatpush1.msra.mxu0 0.0
  %472 = vmatprep.subr.mxu0 0.0
  %473 = vmatpush1.msra.mxu0 0.0
  %474 = vmatprep.subr.mxu0 0.0
  %475 = vmatpush1.msra.mxu0 0.0
  %476 = vmatprep.subr.mxu0 0.0
  %477 = vmatpush1.msra.mxu0 0.0
  %478 = vmatprep.subr.mxu0 0.0
  %479 = vmatpush1.msra.mxu0 0.0
  %480 = vmatprep.subr.mxu0 0.0
  %481 = vmatpush1.msra.mxu0 0.0
  %482 = vmatprep.subr.mxu0 0.0
  %483 = vmatpush1.msra.mxu0 %v404
  %484 = vmatprep.subr.mxu0 0.0
  %485 = vmatpush1.msra.mxu0 %v403
  %486 = vmatprep.subr.mxu0 0.0
  %487 = vmatpush1.msra.mxu0 %v402
  %488 = vmatprep.subr.mxu0 0.0
  %489 = vmatpush1.msra.mxu0 %v401
  %490 = vmatprep.subr.mxu0 0.0
  %491 = vmatpush2.msra.mxu0 0.0
  %492 = vmatprep.subr.mxu0 0.0
  %493 = vmatpush2.msra.mxu0 0.0
  %494 = vmatprep.subr.mxu0 0.0
  %495 = vmatpush2.msra.mxu0 0.0
  %496 = vmatprep.subr.mxu0 0.0
  %497 = vmatpush2.msra.mxu0 0.0
  %498 = vmatprep.subr.mxu0 0.0
  %499 = vmatpush2.msra.mxu0 0.0
  %500 = vmatprep.subr.mxu0 0.0
  %501 = vmatpush2.msra.mxu0 0.0
  %502 = vmatprep.subr.mxu0 0.0
  %503 = vmatpush2.msra.mxu0 0.0
  %504 = vmatprep.subr.mxu0 0.0
  %505 = vmatpush2.msra.mxu0 0.0
  %506 = vmatprep.subr.mxu0 0.0
  %507 = vmatpush2.msra.mxu0 0.0
  %508 = vmatprep.subr.mxu0 0.0
  %509 = vmatpush2.msra.mxu0 0.0
  %510 = vmatprep.subr.mxu0 0.0
  %511 = vmatpush2.msra.mxu0 0.0
  %512 = vmatprep.subr.mxu0 0.0
  %513 = vmatpush2.msra.mxu0 0.0
  %514 = vmatprep.subr.mxu0 0.0
  %515 = vmatpush2.msra.mxu0 0.0
  %516 = vmatprep.subr.mxu0 0.0
  %517 = vmatpush2.msra.mxu0 0.0
  %518 = vmatprep.subr.mxu0 0.0
  %519 = vmatpush2.msra.mxu0 0.0
  %520 = vmatprep.subr.mxu0 0.0
  %521 = vmatpush2.msra.mxu0 0.0
  %522 = vmatprep.mubr.f32.mxu0 0.0
  %523 = vmatmul.mubr.f32.gmra.mxu0 %v411
  %v524 = vpop.f32.mrf.mxu0
  %v525 = vadd.f32 0.0, %v524
  %v526 = vpop.f32.mrf.mxu0
  %527 = vmatprep.mubr.f32.mxu0 0.0
  %528 = vmatmul.mubr.f32.gmra.mxu0 %v414
  %v529 = vpop.f32.mrf.mxu0
  %v530 = vadd.f32 0.0, %v529
  %v531 = vpop.f32.mrf.mxu0
  %532 = vmatprep.mubr.f32.mxu0 0.0
  %533 = vmatmul.mubr.f32.gmra.mxu0 %v417
  %v534 = vpop.f32.mrf.mxu0
  %v535 = vadd.f32 0.0, %v534
  %v536 = vpop.f32.mrf.mxu0
  %537 = vmatprep.mubr.f32.mxu0 0.0
  %538 = vmatmul.mubr.f32.gmra.mxu0 %v420
  %v539 = vpop.f32.mrf.mxu0
  %v540 = vadd.f32 0.0, %v539
  %v541 = vpop.f32.mrf.mxu0
  %542 = vmatprep.mubr.f32.mxu0 0.0
  %543 = vmatmul.mubr.f32.gmra.mxu0 %v423
  %v544 = vpop.f32.mrf.mxu0
  %v545 = vadd.f32 0.0, %v544
  %v546 = vpop.f32.mrf.mxu0
  %547 = vmatprep.mubr.f32.mxu0 0.0
  %548 = vmatmul.mubr.f32.gmra.mxu0 %v426
  %v549 = vpop.f32.mrf.mxu0
  %v550 = vadd.f32 0.0, %v549
  %v551 = vpop.f32.mrf.mxu0
  %552 = vmatprep.mubr.f32.mxu0 0.0
  %553 = vmatmul.mubr.f32.gmra.mxu0 %v429
  %v554 = vpop.f32.mrf.mxu0
  %v555 = vadd.f32 0.0, %v554
  %v556 = vpop.f32.mrf.mxu0
  %557 = vmatprep.mubr.f32.mxu0 0.0
  %558 = vmatmul.mubr.f32.gmra.mxu0 %v432
  %v559 = vpop.f32.mrf.mxu0
  %v560 = vadd.f32 0.0, %v559
  %v561 = vpop.f32.mrf.mxu0
  %562 = vmatprep.mubr.f32.mxu0 0.0
  %563 = vmatmul.mubr.f32.gmra.mxu0 %v435
  %v564 = vpop.f32.mrf.mxu0
  %v565 = vadd.f32 0.0, %v564
  %v566 = vpop.f32.mrf.mxu0
  %567 = vmatprep.mubr.f32.mxu0 0.0
  %568 = vmatmul.mubr.f32.gmra.mxu0 %v438
  %v569 = vpop.f32.mrf.mxu0
  %v570 = vadd.f32 0.0, %v569
  %v571 = vpop.f32.mrf.mxu0
  %572 = vmatprep.mubr.f32.mxu0 0.0
  %573 = vmatmul.mubr.f32.gmra.mxu0 %v441
  %v574 = vpop.f32.mrf.mxu0
  %v575 = vadd.f32 0.0, %v574
  %v576 = vpop.f32.mrf.mxu0
  %577 = vmatprep.mubr.f32.mxu0 0.0
  %578 = vmatmul.mubr.f32.gmra.mxu0 %v444
  %v579 = vpop.f32.mrf.mxu0
  %v580 = vadd.f32 0.0, %v579
  %v581 = vpop.f32.mrf.mxu0
  %582 = vmatprep.mubr.f32.mxu0 0.0
  %583 = vmatmul.mubr.f32.gmra.mxu0 %v447
  %v584 = vpop.f32.mrf.mxu0
  %v585 = vadd.f32 0.0, %v584
  %v586 = vpop.f32.mrf.mxu0
  %587 = vmatprep.mubr.f32.mxu0 0.0
  %588 = vmatmul.mubr.f32.gmra.mxu0 %v450
  %v589 = vpop.f32.mrf.mxu0
  %v590 = vadd.f32 0.0, %v589
  %v591 = vpop.f32.mrf.mxu0
  %592 = vmatprep.mubr.f32.mxu0 0.0
  %593 = vmatmul.mubr.f32.gmra.mxu0 %v453
  %v594 = vpop.f32.mrf.mxu0
  %v595 = vadd.f32 0.0, %v594
  %v596 = vpop.f32.mrf.mxu0
  %597 = vmatprep.mubr.f32.mxu0 0.0
  %598 = vmatmul.mubr.f32.gmra.mxu0 %v456
  %v599 = vpop.f32.mrf.mxu0
  %v600 = vadd.f32 0.0, %v599
  %v601 = vpop.f32.mrf.mxu0
  %602 = vdwg.mxu0
  %v603 = vmul.f32 %v385, %v385
  %v604 = vmul.f32 %v386, %v386
  %v605 = vmul.f32 %v387, %v387
  %v606 = vmul.f32 %v388, %v388
  %v607 = vmul.f32 %v389, %v389
  %v608 = vmul.f32 %v390, %v390
  %v609 = vmul.f32 %v391, %v391
  %v610 = vmul.f32 %v392, %v392
  %v611 = vmul.f32 %v393, %v393
  %v612 = vmul.f32 %v394, %v394
  %v613 = vmul.f32 %v395, %v395
  %v614 = vmul.f32 %v396, %v396
  %v615 = vmul.f32 %v397, %v397
  %v616 = vmul.f32 %v398, %v398
  %v617 = vmul.f32 %v399, %v399
  %v618 = vmul.f32 %v400, %v400
  %v619 = vsel %vm409, %v603, 0.0
  %620 = vadd.xlane.f32.xlu0 %v619
  %v621 = vpop.xlane.xlu0 %620
  %v622 = vsel %vm409, %v604, 0.0
  %623 = vadd.xlane.f32.xlu0 %v622
  %v624 = vpop.xlane.xlu0 %623
  %v625 = vsel %vm409, %v605, 0.0
  %626 = vadd.xlane.f32.xlu0 %v625
  %v627 = vpop.xlane.xlu0 %626
  %v628 = vsel %vm409, %v606, 0.0
  %629 = vadd.xlane.f32.xlu0 %v628
  %v630 = vpop.xlane.xlu0 %629
  %v631 = vsel %vm409, %v607, 0.0
  %632 = vadd.xlane.f32.xlu0 %v631
  %v633 = vpop.xlane.xlu0 %632
  %v634 = vsel %vm409, %v608, 0.0
  %635 = vadd.xlane.f32.xlu0 %v634
  %v636 = vpop.xlane.xlu0 %635
  %v637 = vsel %vm409, %v609, 0.0
  %638 = vadd.xlane.f32.xlu0 %v637
  %v639 = vpop.xlane.xlu0 %638
  %v640 = vsel %vm409, %v610, 0.0
  %641 = vadd.xlane.f32.xlu0 %v640
  %v642 = vpop.xlane.xlu0 %641
  %v643 = vsel %vm409, %v611, 0.0
  %644 = vadd.xlane.f32.xlu0 %v643
  %v645 = vpop.xlane.xlu0 %644
  %v646 = vsel %vm409, %v612, 0.0
  %647 = vadd.xlane.f32.xlu0 %v646
  %v648 = vpop.xlane.xlu0 %647
  %v649 = vsel %vm409, %v613, 0.0
  %650 = vadd.xlane.f32.xlu0 %v649
  %v651 = vpop.xlane.xlu0 %650
  %v652 = vsel %vm409, %v614, 0.0
  %653 = vadd.xlane.f32.xlu0 %v652
  %v654 = vpop.xlane.xlu0 %653
  %v655 = vsel %vm409, %v615, 0.0
  %656 = vadd.xlane.f32.xlu0 %v655
  %v657 = vpop.xlane.xlu0 %656
  %v658 = vsel %vm409, %v616, 0.0
  %659 = vadd.xlane.f32.xlu0 %v658
  %v660 = vpop.xlane.xlu0 %659
  %v661 = vsel %vm409, %v617, 0.0
  %662 = vadd.xlane.f32.xlu0 %v661
  %v663 = vpop.xlane.xlu0 %662
  %v664 = vsel %vm409, %v618, 0.0
  %665 = vadd.xlane.f32.xlu0 %v664
  %v666 = vpop.xlane.xlu0 %665
  %v667 = vmul.f32 %v401, %v401
  %v668 = vmul.f32 %v402, %v402
  %v669 = vmul.f32 %v403, %v403
  %v670 = vmul.f32 %v404, %v404
  %v671 = vadd.f32 %v667, %v668
  %v672 = vadd.f32 %v671, %v669
  %v673 = vadd.f32 %v672, %v670
  %v674 = vrot.slane %v673, 4
  %v675 = vadd.f32 %v673, %v674
  %v676 = vrot.slane %v675, 2
  %v677 = vadd.f32 %v675, %v676
  %v678 = vrot.slane %v677, 1
  %v679 = vadd.f32 %v677, %v678
  %v680 = vmul.f32 %v525, 2.0
  %v681 = vmul.f32 %v530, 2.0
  %v682 = vmul.f32 %v535, 2.0
  %v683 = vmul.f32 %v540, 2.0
  %v684 = vmul.f32 %v545, 2.0
  %v685 = vmul.f32 %v550, 2.0
  %v686 = vmul.f32 %v555, 2.0
  %v687 = vmul.f32 %v560, 2.0
  %v688 = vmul.f32 %v565, 2.0
  %v689 = vmul.f32 %v570, 2.0
  %v690 = vmul.f32 %v575, 2.0
  %v691 = vmul.f32 %v580, 2.0
  %v692 = vmul.f32 %v585, 2.0
  %v693 = vmul.f32 %v590, 2.0
  %v694 = vmul.f32 %v595, 2.0
  %v695 = vmul.f32 %v600, 2.0
  %v696 = vsub.f32 %v621, %v680
  %v697 = vsub.f32 %v624, %v681
  %v698 = vsub.f32 %v627, %v682
  %v699 = vsub.f32 %v630, %v683
  %v700 = vsub.f32 %v633, %v684
  %v701 = vsub.f32 %v636, %v685
  %v702 = vsub.f32 %v639, %v686
  %v703 = vsub.f32 %v642, %v687
  %v704 = vsub.f32 %v645, %v688
  %v705 = vsub.f32 %v648, %v689
  %v706 = vsub.f32 %v651, %v690
  %v707 = vsub.f32 %v654, %v691
  %v708 = vsub.f32 %v657, %v692
  %v709 = vsub.f32 %v660, %v693
  %v710 = vsub.f32 %v663, %v694
  %v711 = vsub.f32 %v666, %v695
  %v712 = vadd.f32 %v696, %v679
  %v713 = vadd.f32 %v697, %v679
  %v714 = vadd.f32 %v698, %v679
  %v715 = vadd.f32 %v699, %v679
  %v716 = vadd.f32 %v700, %v679
  %v717 = vadd.f32 %v701, %v679
  %v718 = vadd.f32 %v702, %v679
  %v719 = vadd.f32 %v703, %v679
  %v720 = vadd.f32 %v704, %v679
  %v721 = vadd.f32 %v705, %v679
  %v722 = vadd.f32 %v706, %v679
  %v723 = vadd.f32 %v707, %v679
  %v724 = vadd.f32 %v708, %v679
  %v725 = vadd.f32 %v709, %v679
  %v726 = vadd.f32 %v710, %v679
  %v727 = vadd.f32 %v711, %v679
  %v728 = vmax.f32 %v712, 0.0
  %v729 = vmax.f32 %v713, 0.0
  %v730 = vmax.f32 %v714, 0.0
  %v731 = vmax.f32 %v715, 0.0
  %v732 = vmax.f32 %v716, 0.0
  %v733 = vmax.f32 %v717, 0.0
  %v734 = vmax.f32 %v718, 0.0
  %v735 = vmax.f32 %v719, 0.0
  %v736 = vmax.f32 %v720, 0.0
  %v737 = vmax.f32 %v721, 0.0
  %v738 = vmax.f32 %v722, 0.0
  %v739 = vmax.f32 %v723, 0.0
  %v740 = vmax.f32 %v724, 0.0
  %v741 = vmax.f32 %v725, 0.0
  %v742 = vmax.f32 %v726, 0.0
  %v743 = vmax.f32 %v727, 0.0
  %v744 = vrsqrt.pop %v728
  %v745 = vmul.f32 %v728, %v744
  %vm746 = vcmp.eq.f32.partialorder %v728, inf
  %v747 = vsel %vm746, %v728, %v745
  %vm748 = vcmp.eq.f32.partialorder %v728, 0.0
  %v749 = vand.u32 %v728, 2147483648
  %v750 = vsel %vm748, %v749, %v747
  %v751 = vrsqrt.pop %v729
  %v752 = vmul.f32 %v729, %v751
  %vm753 = vcmp.eq.f32.partialorder %v729, inf
  %v754 = vsel %vm753, %v729, %v752
  %vm755 = vcmp.eq.f32.partialorder %v729, 0.0
  %v756 = vand.u32 %v729, 2147483648
  %v757 = vsel %vm755, %v756, %v754
  %v758 = vrsqrt.pop %v730
  %v759 = vmul.f32 %v730, %v758
  %vm760 = vcmp.eq.f32.partialorder %v730, inf
  %v761 = vsel %vm760, %v730, %v759
  %vm762 = vcmp.eq.f32.partialorder %v730, 0.0
  %v763 = vand.u32 %v730, 2147483648
  %v764 = vsel %vm762, %v763, %v761
  %v765 = vrsqrt.pop %v731
  %v766 = vmul.f32 %v731, %v765
  %vm767 = vcmp.eq.f32.partialorder %v731, inf
  %v768 = vsel %vm767, %v731, %v766
  %vm769 = vcmp.eq.f32.partialorder %v731, 0.0
  %v770 = vand.u32 %v731, 2147483648
  %v771 = vsel %vm769, %v770, %v768
  %v772 = vrsqrt.pop %v732
  %v773 = vmul.f32 %v732, %v772
  %vm774 = vcmp.eq.f32.partialorder %v732, inf
  %v775 = vsel %vm774, %v732, %v773
  %vm776 = vcmp.eq.f32.partialorder %v732, 0.0
  %v777 = vand.u32 %v732, 2147483648
  %v778 = vsel %vm776, %v777, %v775
  %v779 = vrsqrt.pop %v733
  %v780 = vmul.f32 %v733, %v779
  %vm781 = vcmp.eq.f32.partialorder %v733, inf
  %v782 = vsel %vm781, %v733, %v780
  %vm783 = vcmp.eq.f32.partialorder %v733, 0.0
  %v784 = vand.u32 %v733, 2147483648
  %v785 = vsel %vm783, %v784, %v782
  %v786 = vrsqrt.pop %v734
  %v787 = vmul.f32 %v734, %v786
  %vm788 = vcmp.eq.f32.partialorder %v734, inf
  %v789 = vsel %vm788, %v734, %v787
  %vm790 = vcmp.eq.f32.partialorder %v734, 0.0
  %v791 = vand.u32 %v734, 2147483648
  %v792 = vsel %vm790, %v791, %v789
  %v793 = vrsqrt.pop %v735
  %v794 = vmul.f32 %v735, %v793
  %vm795 = vcmp.eq.f32.partialorder %v735, inf
  %v796 = vsel %vm795, %v735, %v794
  %vm797 = vcmp.eq.f32.partialorder %v735, 0.0
  %v798 = vand.u32 %v735, 2147483648
  %v799 = vsel %vm797, %v798, %v796
  %v800 = vrsqrt.pop %v736
  %v801 = vmul.f32 %v736, %v800
  %vm802 = vcmp.eq.f32.partialorder %v736, inf
  %v803 = vsel %vm802, %v736, %v801
  %vm804 = vcmp.eq.f32.partialorder %v736, 0.0
  %v805 = vand.u32 %v736, 2147483648
  %v806 = vsel %vm804, %v805, %v803
  %v807 = vrsqrt.pop %v737
  %v808 = vmul.f32 %v737, %v807
  %vm809 = vcmp.eq.f32.partialorder %v737, inf
  %v810 = vsel %vm809, %v737, %v808
  %vm811 = vcmp.eq.f32.partialorder %v737, 0.0
  %v812 = vand.u32 %v737, 2147483648
  %v813 = vsel %vm811, %v812, %v810
  %v814 = vrsqrt.pop %v738
  %v815 = vmul.f32 %v738, %v814
  %vm816 = vcmp.eq.f32.partialorder %v738, inf
  %v817 = vsel %vm816, %v738, %v815
  %vm818 = vcmp.eq.f32.partialorder %v738, 0.0
  %v819 = vand.u32 %v738, 2147483648
  %v820 = vsel %vm818, %v819, %v817
  %v821 = vrsqrt.pop %v739
  %v822 = vmul.f32 %v739, %v821
  %vm823 = vcmp.eq.f32.partialorder %v739, inf
  %v824 = vsel %vm823, %v739, %v822
  %vm825 = vcmp.eq.f32.partialorder %v739, 0.0
  %v826 = vand.u32 %v739, 2147483648
  %v827 = vsel %vm825, %v826, %v824
  %v828 = vrsqrt.pop %v740
  %v829 = vmul.f32 %v740, %v828
  %vm830 = vcmp.eq.f32.partialorder %v740, inf
  %v831 = vsel %vm830, %v740, %v829
  %vm832 = vcmp.eq.f32.partialorder %v740, 0.0
  %v833 = vand.u32 %v740, 2147483648
  %v834 = vsel %vm832, %v833, %v831
  %v835 = vrsqrt.pop %v741
  %v836 = vmul.f32 %v741, %v835
  %vm837 = vcmp.eq.f32.partialorder %v741, inf
  %v838 = vsel %vm837, %v741, %v836
  %vm839 = vcmp.eq.f32.partialorder %v741, 0.0
  %v840 = vand.u32 %v741, 2147483648
  %v841 = vsel %vm839, %v840, %v838
  %v842 = vrsqrt.pop %v742
  %v843 = vmul.f32 %v742, %v842
  %vm844 = vcmp.eq.f32.partialorder %v742, inf
  %v845 = vsel %vm844, %v742, %v843
  %vm846 = vcmp.eq.f32.partialorder %v742, 0.0
  %v847 = vand.u32 %v742, 2147483648
  %v848 = vsel %vm846, %v847, %v845
  %v849 = vrsqrt.pop %v743
  %v850 = vmul.f32 %v743, %v849
  %vm851 = vcmp.eq.f32.partialorder %v743, inf
  %v852 = vsel %vm851, %v743, %v850
  %vm853 = vcmp.eq.f32.partialorder %v743, 0.0
  %v854 = vand.u32 %v743, 2147483648
  %v855 = vsel %vm853, %v854, %v852
  %vm856 = vcmp.lt.f32.partialorder %v369, 0.25
  %vm857 = vcmp.lt.f32.partialorder %v370, 0.25
  %vm858 = vcmp.lt.f32.partialorder %v371, 0.25
  %vm859 = vcmp.lt.f32.partialorder %v372, 0.25
  %vm860 = vcmp.lt.f32.partialorder %v373, 0.25
  %vm861 = vcmp.lt.f32.partialorder %v374, 0.25
  %vm862 = vcmp.lt.f32.partialorder %v375, 0.25
  %vm863 = vcmp.lt.f32.partialorder %v376, 0.25
  %vm864 = vcmp.lt.f32.partialorder %v377, 0.25
  %vm865 = vcmp.lt.f32.partialorder %v378, 0.25
  %vm866 = vcmp.lt.f32.partialorder %v379, 0.25
  %vm867 = vcmp.lt.f32.partialorder %v380, 0.25
  %vm868 = vcmp.lt.f32.partialorder %v381, 0.25
  %vm869 = vcmp.lt.f32.partialorder %v382, 0.25
  %vm870 = vcmp.lt.f32.partialorder %v383, 0.25
  %vm871 = vcmp.lt.f32.partialorder %v384, 0.25
  %v872 = vsel %vm856, 1e+10, 0.0
  %v873 = vsel %vm857, 1e+10, 0.0
  %v874 = vsel %vm858, 1e+10, 0.0
  %v875 = vsel %vm859, 1e+10, 0.0
  %v876 = vsel %vm860, 1e+10, 0.0
  %v877 = vsel %vm861, 1e+10, 0.0
  %v878 = vsel %vm862, 1e+10, 0.0
  %v879 = vsel %vm863, 1e+10, 0.0
  %v880 = vsel %vm864, 1e+10, 0.0
  %v881 = vsel %vm865, 1e+10, 0.0
  %v882 = vsel %vm866, 1e+10, 0.0
  %v883 = vsel %vm867, 1e+10, 0.0
  %v884 = vsel %vm868, 1e+10, 0.0
  %v885 = vsel %vm869, 1e+10, 0.0
  %v886 = vsel %vm870, 1e+10, 0.0
  %v887 = vsel %vm871, 1e+10, 0.0
  %v888 = vadd.f32 %v750, %v872
  %v889 = vadd.f32 %v757, %v873
  %v890 = vadd.f32 %v764, %v874
  %v891 = vadd.f32 %v771, %v875
  %v892 = vadd.f32 %v778, %v876
  %v893 = vadd.f32 %v785, %v877
  %v894 = vadd.f32 %v792, %v878
  %v895 = vadd.f32 %v799, %v879
  %v896 = vadd.f32 %v806, %v880
  %v897 = vadd.f32 %v813, %v881
  %v898 = vadd.f32 %v820, %v882
  %v899 = vadd.f32 %v827, %v883
  %v900 = vadd.f32 %v834, %v884
  %v901 = vadd.f32 %v841, %v885
  %v902 = vadd.f32 %v848, %v886
  %v903 = vadd.f32 %v855, %v887
  %v904 = vmin.f32 %v888, %v892
  %v905 = vmin.f32 %v889, %v893
  %v906 = vmin.f32 %v890, %v894
  %v907 = vmin.f32 %v891, %v895
  %v908 = vmin.f32 %v904, %v896
  %v909 = vmin.f32 %v905, %v897
  %v910 = vmin.f32 %v906, %v898
  %v911 = vmin.f32 %v907, %v899
  %v912 = vmin.f32 %v908, %v900
  %v913 = vmin.f32 %v909, %v901
  %v914 = vmin.f32 %v910, %v902
  %v915 = vmin.f32 %v911, %v903
  %v916 = vmin.f32 %v912, %v913
  %v917 = vmin.f32 %v914, %v915
  %v918 = vmin.f32 %v916, %v917
  %v919 = vrot.slane %v918, 4
  %v920 = vmin.f32 %v918, %v919
  %v921 = vrot.slane %v920, 2
  %v922 = vmin.f32 %v920, %v921
  %v923 = vrot.slane %v922, 1
  %v924 = vmin.f32 %v922, %v923
  %v925 = vsub.f32 %v401, %v405
  %v926 = vsub.f32 %v402, %v406
  %v927 = vsub.f32 %v403, %v407
  %v928 = vsub.f32 %v404, %v408
  %v929 = vmul.f32 %v925, %v925
  %v930 = vmul.f32 %v926, %v926
  %v931 = vmul.f32 %v927, %v927
  %v932 = vmul.f32 %v928, %v928
  %v933 = vadd.f32 %v929, %v930
  %v934 = vadd.f32 %v933, %v931
  %v935 = vadd.f32 %v934, %v932
  %v936 = vrot.slane %v935, 4
  %v937 = vadd.f32 %v935, %v936
  %v938 = vrot.slane %v937, 2
  %v939 = vadd.f32 %v937, %v938
  %v940 = vrot.slane %v939, 1
  %v941 = vadd.f32 %v939, %v940
  %v942 = vadd.f32 %v941, 1e-12
  %v943 = vrsqrt.pop %v942
  %v944 = vmul.f32 %v942, %v943
  %vm945 = vcmp.eq.f32.partialorder %v942, inf
  %v946 = vsel %vm945, %v942, %v944
  %vm947 = vcmp.eq.f32.partialorder %v942, 0.0
  %v948 = vand.u32 %v942, 2147483648
  %v949 = vsel %vm947, %v948, %v946
  %v950 = vsub.f32 %v949, %v924
  %v951 = vadd.f32 %v750, %v757
  %v952 = vadd.f32 %v951, %v764
  %v953 = vadd.f32 %v952, %v771
  %v954 = vadd.f32 %v953, %v778
  %v955 = vadd.f32 %v954, %v785
  %v956 = vadd.f32 %v955, %v792
  %v957 = vadd.f32 %v956, %v799
  %v958 = vadd.f32 %v957, %v806
  %v959 = vadd.f32 %v958, %v813
  %v960 = vadd.f32 %v959, %v820
  %v961 = vadd.f32 %v960, %v827
  %v962 = vadd.f32 %v961, %v834
  %v963 = vadd.f32 %v962, %v841
  %v964 = vadd.f32 %v963, %v848
  %v965 = vadd.f32 %v964, %v855
  %v966 = vrot.slane %v965, 4
  %v967 = vadd.f32 %v965, %v966
  %v968 = vrot.slane %v967, 2
  %v969 = vadd.f32 %v967, %v968
  %v970 = vrot.slane %v969, 1
  %v971 = vadd.f32 %v969, %v970
  %v972 = vsub.f32 %v971, %v949
  %v973 = vrcp.pop 127.0
  %v974 = vmul.f32 %v972, %v973
  %v975 = vlaneseq
  %v976 = vshrl.u32 %v975, 7
  %vm977 = vcmp.eq.s32.totalorder %v976, 0
  %v978 = vsel %vm977, %v950, 0.0
  %vm979 = vcmp.eq.s32.totalorder %v976, 1
  %v980 = vsel %vm979, %v949, 0.0
  %v981 = vadd.f32 %v978, %v980
  %vm982 = vcmp.eq.s32.totalorder %v976, 2
  %v983 = vsel %vm982, %v924, 0.0
  %v984 = vadd.f32 %v981, %v983
  %vm985 = vcmp.eq.s32.totalorder %v976, 3
  %v986 = vsel %vm985, %v974, 0.0
  %v987 = vadd.f32 %v984, %v986
  %988 = vst [vmem:[%s5] sm:$0xf] %v987
  // Predicated region
  $region22: #{_vote_loss_impl.4} parent=0 // pred_check
    _
  $region23: #{_vote_loss_impl.4} parent=0 // pred_check_branch
    %990 = sbr.rel (0) target = $region25
  $region24: #{_vote_loss_impl.4} parent=0 // pred_region
    _
  $region25: #{_vote_loss_impl.4} parent=0 // pred_fallthru
    _
  // Predicated region
  $region26: #{_vote_loss_impl.4} parent=0 // pred_check
    _
  $region27: #{_vote_loss_impl.4} parent=0 // pred_check_branch
    %992 = sbr.rel (0) target = $region29
  $region28: #{_vote_loss_impl.4} parent=0 // pred_region
    _
  $region29: #{_vote_loss_impl.4} parent=0 // pred_fallthru
    _

// kernel: _vote_loss_impl.5
$region0: #{_vote_loss_impl.5}
  #allocation0 [shape = 'u32[]', space=smem, size = 0x4, offset = 0x4, fixed_abs, tag = 'smem constant byte address 0x4 - core index']
  #allocation1 [shape = 'u32[144,128]{1,0:T(1,128)}', space=vmem, size = 0x12000, scoped, tag = 'internal scratch']
  %s0 = inlined_call_operand.vmem [shape: f32[128,3], index: 0, kind: input, shape index: {}]
  %s1 = inlined_call_operand.vmem [shape: f32[3,128], index: 1, kind: input, shape index: {}]
  %s2 = inlined_call_operand.vmem [shape: f32[1,128], index: 2, kind: input, shape index: {}]
  %s3 = inlined_call_operand.hbm [shape: f32[1,1], index: 3, kind: output, shape index: {}]
  %s4 = sld [smem:[#allocation0]]
  $region26: #{_vote_loss_impl.5} parent=0
    _
  %s6 = ssub.s32 1, %s4
  %s7 = scalar_select 0, %s6, %s4
  $region1: #{_vote_loss_impl.5} parent=0
    #allocation2 [shape = 'u8[512]{0}', space=vmem, size = 0x400, scoped, tag = 'output window, operand 0, single buffered']
    #allocation3 [shape = 's32[1]{0}', space=sflag, size = 0x4, scoped, tag = 'scoped memory for _vote_loss_impl.5']
    %8 = vsyncpa [#allocation3], 0
    // Predicated region
    $region2: #{_vote_loss_impl.5} parent=1 // pred_check
      _
    $region3: #{_vote_loss_impl.5} parent=1 // pred_check_branch
      %10 = sbr.rel (0) target = $region5
    $region4: #{_vote_loss_impl.5} parent=1 // pred_region
      _
    $region5: #{_vote_loss_impl.5} parent=1 // pred_fallthru
      _
    // Predicated region
    $region6: #{_vote_loss_impl.5} parent=1 // pred_check
      _
    $region7: #{_vote_loss_impl.5} parent=1 // pred_check_branch
      %12 = sbr.rel (0) target = $region9
    $region8: #{_vote_loss_impl.5} parent=1 // pred_region
      _
    $region9: #{_vote_loss_impl.5} parent=1 // pred_fallthru
      _
    // Predicated region
    $region10: #{_vote_loss_impl.5} parent=1 // pred_check
      _
    $region11: #{_vote_loss_impl.5} parent=1 // pred_check_branch
      %14 = sbr.rel (0) target = $region13
    $region12: #{_vote_loss_impl.5} parent=1 // pred_region
      _
    $region13: #{_vote_loss_impl.5} parent=1 // pred_fallthru
      _
    %p15 = scmp.eq.s32.totalorder 0, 0
    // Predicated region
    $region14: #{_vote_loss_impl.5} parent=1 // pred_check
      %p16 = pneg %p15
    $region15: #{_vote_loss_impl.5} parent=1 // pred_check_branch
      %18 = sbr.rel (%p16) target = $region17
    $region16: #{_vote_loss_impl.5} parent=1 // pred_region
      %vm19 = vcmask 0
      %20 = vst.msk [vmem:[#allocation2] sm:$0x1] %vm19, 0.0
    $region17: #{_vote_loss_impl.5} parent=1 // pred_fallthru
      _
    %v21 = vld [vmem:[%s0] sm:$0xff]
    %v22 = vld [vmem:[%s0 + $0x8] sm:$0xff]
    %v23 = vld [vmem:[%s0 + $0x10] sm:$0xff]
    %v24 = vld [vmem:[%s0 + $0x18] sm:$0xff]
    %v25 = vld [vmem:[%s0 + $0x20] sm:$0xff]
    %v26 = vld [vmem:[%s0 + $0x28] sm:$0xff]
    %v27 = vld [vmem:[%s0 + $0x30] sm:$0xff]
    %v28 = vld [vmem:[%s0 + $0x38] sm:$0xff]
    %v29 = vld [vmem:[%s0 + $0x40] sm:$0xff]
    %v30 = vld [vmem:[%s0 + $0x48] sm:$0xff]
    %v31 = vld [vmem:[%s0 + $0x50] sm:$0xff]
    %v32 = vld [vmem:[%s0 + $0x58] sm:$0xff]
    %v33 = vld [vmem:[%s0 + $0x60] sm:$0xff]
    %v34 = vld [vmem:[%s0 + $0x68] sm:$0xff]
    %v35 = vld [vmem:[%s0 + $0x70] sm:$0xff]
    %v36 = vld [vmem:[%s0 + $0x78] sm:$0xff]
    %v37 = vld [vmem:[%s1] sm:$0x7]
    %v38 = vld [vmem:[%s2] sm:$0x1]
    %40 = vset.pattern.permute.xlu0 0
    %41 = vperm.xlu0 %40, %v21
    %v42 = vpop.permute.xlu0 %41
    %45 = vset.pattern.permute.xlu0 0
    %46 = vperm.xlu0 %45, %v22
    %v47 = vpop.permute.xlu0 %46
    %50 = vset.pattern.permute.xlu0 0
    %51 = vperm.xlu0 %50, %v23
    %v52 = vpop.permute.xlu0 %51
    %55 = vset.pattern.permute.xlu0 0
    %56 = vperm.xlu0 %55, %v24
    %v57 = vpop.permute.xlu0 %56
    %60 = vset.pattern.permute.xlu0 0
    %61 = vperm.xlu0 %60, %v25
    %v62 = vpop.permute.xlu0 %61
    %65 = vset.pattern.permute.xlu0 0
    %66 = vperm.xlu0 %65, %v26
    %v67 = vpop.permute.xlu0 %66
    %70 = vset.pattern.permute.xlu0 0
    %71 = vperm.xlu0 %70, %v27
    %v72 = vpop.permute.xlu0 %71
    %75 = vset.pattern.permute.xlu0 0
    %76 = vperm.xlu0 %75, %v28
    %v77 = vpop.permute.xlu0 %76
    %80 = vset.pattern.permute.xlu0 0
    %81 = vperm.xlu0 %80, %v29
    %v82 = vpop.permute.xlu0 %81
    %85 = vset.pattern.permute.xlu0 0
    %86 = vperm.xlu0 %85, %v30
    %v87 = vpop.permute.xlu0 %86
    %90 = vset.pattern.permute.xlu0 0
    %91 = vperm.xlu0 %90, %v31
    %v92 = vpop.permute.xlu0 %91
    %95 = vset.pattern.permute.xlu0 0
    %96 = vperm.xlu0 %95, %v32
    %v97 = vpop.permute.xlu0 %96
    %100 = vset.pattern.permute.xlu0 0
    %101 = vperm.xlu0 %100, %v33
    %v102 = vpop.permute.xlu0 %101
    %105 = vset.pattern.permute.xlu0 0
    %106 = vperm.xlu0 %105, %v34
    %v107 = vpop.permute.xlu0 %106
    %110 = vset.pattern.permute.xlu0 0
    %111 = vperm.xlu0 %110, %v35
    %v112 = vpop.permute.xlu0 %111
    %115 = vset.pattern.permute.xlu0 0
    %116 = vperm.xlu0 %115, %v36
    %v117 = vpop.permute.xlu0 %116
    %v119 = vlaneseq
    %v120 = vshrl.u32 %v119, 7
    %v121 = vsub.s32 0, %v120
    %v122 = vrot.slane %v37, %v121
    %v123 = vsub.f32 %v42, %v122
    %v124 = vsub.f32 %v47, %v122
    %v125 = vsub.f32 %v52, %v122
    %v126 = vsub.f32 %v57, %v122
    %v127 = vsub.f32 %v62, %v122
    %v128 = vsub.f32 %v67, %v122
    %v129 = vsub.f32 %v72, %v122
    %v130 = vsub.f32 %v77, %v122
    %v131 = vsub.f32 %v82, %v122
    %v132 = vsub.f32 %v87, %v122
    %v133 = vsub.f32 %v92, %v122
    %v134 = vsub.f32 %v97, %v122
    %v135 = vsub.f32 %v102, %v122
    %v136 = vsub.f32 %v107, %v122
    %v137 = vsub.f32 %v112, %v122
    %v138 = vsub.f32 %v117, %v122
    %v139 = vmul.f32 %v123, %v123
    %v140 = vmul.f32 %v124, %v124
    %v141 = vmul.f32 %v125, %v125
    %v142 = vmul.f32 %v126, %v126
    %v143 = vmul.f32 %v127, %v127
    %v144 = vmul.f32 %v128, %v128
    %v145 = vmul.f32 %v129, %v129
    %v146 = vmul.f32 %v130, %v130
    %v147 = vmul.f32 %v131, %v131
    %v148 = vmul.f32 %v132, %v132
    %v149 = vmul.f32 %v133, %v133
    %v150 = vmul.f32 %v134, %v134
    %v151 = vmul.f32 %v135, %v135
    %v152 = vmul.f32 %v136, %v136
    %v153 = vmul.f32 %v137, %v137
    %v154 = vmul.f32 %v138, %v138
    %155 = vset.pattern.permute.xlu0 1
    %156 = vperm.xlu0 %155, %v21
    %v157 = vpop.permute.xlu0 %156
    %159 = vset.pattern.permute.xlu0 1
    %160 = vperm.xlu0 %159, %v22
    %v161 = vpop.permute.xlu0 %160
    %163 = vset.pattern.permute.xlu0 1
    %164 = vperm.xlu0 %163, %v23
    %v165 = vpop.permute.xlu0 %164
    %167 = vset.pattern.permute.xlu0 1
    %168 = vperm.xlu0 %167, %v24
    %v169 = vpop.permute.xlu0 %168
    %171 = vset.pattern.permute.xlu0 1
    %172 = vperm.xlu0 %171, %v25
    %v173 = vpop.permute.xlu0 %172
    %175 = vset.pattern.permute.xlu0 1
    %176 = vperm.xlu0 %175, %v26
    %v177 = vpop.permute.xlu0 %176
    %179 = vset.pattern.permute.xlu0 1
    %180 = vperm.xlu0 %179, %v27
    %v181 = vpop.permute.xlu0 %180
    %183 = vset.pattern.permute.xlu0 1
    %184 = vperm.xlu0 %183, %v28
    %v185 = vpop.permute.xlu0 %184
    %187 = vset.pattern.permute.xlu0 1
    %188 = vperm.xlu0 %187, %v29
    %v189 = vpop.permute.xlu0 %188
    %191 = vset.pattern.permute.xlu0 1
    %192 = vperm.xlu0 %191, %v30
    %v193 = vpop.permute.xlu0 %192
    %195 = vset.pattern.permute.xlu0 1
    %196 = vperm.xlu0 %195, %v31
    %v197 = vpop.permute.xlu0 %196
    %199 = vset.pattern.permute.xlu0 1
    %200 = vperm.xlu0 %199, %v32
    %v201 = vpop.permute.xlu0 %200
    %203 = vset.pattern.permute.xlu0 1
    %204 = vperm.xlu0 %203, %v33
    %v205 = vpop.permute.xlu0 %204
    %207 = vset.pattern.permute.xlu0 1
    %208 = vperm.xlu0 %207, %v34
    %v209 = vpop.permute.xlu0 %208
    %211 = vset.pattern.permute.xlu0 1
    %212 = vperm.xlu0 %211, %v35
    %v213 = vpop.permute.xlu0 %212
    %215 = vset.pattern.permute.xlu0 1
    %216 = vperm.xlu0 %215, %v36
    %v217 = vpop.permute.xlu0 %216
    %v219 = vlaneseq
    %v220 = vshrl.u32 %v219, 7
    %v221 = vsub.s32 1, %v220
    %v222 = vrot.slane %v37, %v221
    %v223 = vsub.f32 %v157, %v222
    %v224 = vsub.f32 %v161, %v222
    %v225 = vsub.f32 %v165, %v222
    %v226 = vsub.f32 %v169, %v222
    %v227 = vsub.f32 %v173, %v222
    %v228 = vsub.f32 %v177, %v222
    %v229 = vsub.f32 %v181, %v222
    %v230 = vsub.f32 %v185, %v222
    %v231 = vsub.f32 %v189, %v222
    %v232 = vsub.f32 %v193, %v222
    %v233 = vsub.f32 %v197, %v222
    %v234 = vsub.f32 %v201, %v222
    %v235 = vsub.f32 %v205, %v222
    %v236 = vsub.f32 %v209, %v222
    %v237 = vsub.f32 %v213, %v222
    %v238 = vsub.f32 %v217, %v222
    %v239 = vmul.f32 %v223, %v223
    %v240 = vmul.f32 %v224, %v224
    %v241 = vmul.f32 %v225, %v225
    %v242 = vmul.f32 %v226, %v226
    %v243 = vmul.f32 %v227, %v227
    %v244 = vmul.f32 %v228, %v228
    %v245 = vmul.f32 %v229, %v229
    %v246 = vmul.f32 %v230, %v230
    %v247 = vmul.f32 %v231, %v231
    %v248 = vmul.f32 %v232, %v232
    %v249 = vmul.f32 %v233, %v233
    %v250 = vmul.f32 %v234, %v234
    %v251 = vmul.f32 %v235, %v235
    %v252 = vmul.f32 %v236, %v236
    %v253 = vmul.f32 %v237, %v237
    %v254 = vmul.f32 %v238, %v238
    %v255 = vadd.f32 %v139, %v239
    %v256 = vadd.f32 %v140, %v240
    %v257 = vadd.f32 %v141, %v241
    %v258 = vadd.f32 %v142, %v242
    %v259 = vadd.f32 %v143, %v243
    %v260 = vadd.f32 %v144, %v244
    %v261 = vadd.f32 %v145, %v245
    %v262 = vadd.f32 %v146, %v246
    %v263 = vadd.f32 %v147, %v247
    %v264 = vadd.f32 %v148, %v248
    %v265 = vadd.f32 %v149, %v249
    %v266 = vadd.f32 %v150, %v250
    %v267 = vadd.f32 %v151, %v251
    %v268 = vadd.f32 %v152, %v252
    %v269 = vadd.f32 %v153, %v253
    %v270 = vadd.f32 %v154, %v254
    %271 = vset.pattern.permute.xlu0 2
    %272 = vperm.xlu0 %271, %v21
    %v273 = vpop.permute.xlu0 %272
    %275 = vset.pattern.permute.xlu0 2
    %276 = vperm.xlu0 %275, %v22
    %v277 = vpop.permute.xlu0 %276
    %279 = vset.pattern.permute.xlu0 2
    %280 = vperm.xlu0 %279, %v23
    %v281 = vpop.permute.xlu0 %280
    %283 = vset.pattern.permute.xlu0 2
    %284 = vperm.xlu0 %283, %v24
    %v285 = vpop.permute.xlu0 %284
    %287 = vset.pattern.permute.xlu0 2
    %288 = vperm.xlu0 %287, %v25
    %v289 = vpop.permute.xlu0 %288
    %291 = vset.pattern.permute.xlu0 2
    %292 = vperm.xlu0 %291, %v26
    %v293 = vpop.permute.xlu0 %292
    %295 = vset.pattern.permute.xlu0 2
    %296 = vperm.xlu0 %295, %v27
    %v297 = vpop.permute.xlu0 %296
    %299 = vset.pattern.permute.xlu0 2
    %300 = vperm.xlu0 %299, %v28
    %v301 = vpop.permute.xlu0 %300
    %303 = vset.pattern.permute.xlu0 2
    %304 = vperm.xlu0 %303, %v29
    %v305 = vpop.permute.xlu0 %304
    %307 = vset.pattern.permute.xlu0 2
    %308 = vperm.xlu0 %307, %v30
    %v309 = vpop.permute.xlu0 %308
    %311 = vset.pattern.permute.xlu0 2
    %312 = vperm.xlu0 %311, %v31
    %v313 = vpop.permute.xlu0 %312
    %315 = vset.pattern.permute.xlu0 2
    %316 = vperm.xlu0 %315, %v32
    %v317 = vpop.permute.xlu0 %316
    %319 = vset.pattern.permute.xlu0 2
    %320 = vperm.xlu0 %319, %v33
    %v321 = vpop.permute.xlu0 %320
    %323 = vset.pattern.permute.xlu0 2
    %324 = vperm.xlu0 %323, %v34
    %v325 = vpop.permute.xlu0 %324
    %327 = vset.pattern.permute.xlu0 2
    %328 = vperm.xlu0 %327, %v35
    %v329 = vpop.permute.xlu0 %328
    %331 = vset.pattern.permute.xlu0 2
    %332 = vperm.xlu0 %331, %v36
    %v333 = vpop.permute.xlu0 %332
    %v335 = vlaneseq
    %v336 = vshrl.u32 %v335, 7
    %v337 = vsub.s32 2, %v336
    %v338 = vrot.slane %v37, %v337
    %v339 = vsub.f32 %v273, %v338
    %v340 = vsub.f32 %v277, %v338
    %v341 = vsub.f32 %v281, %v338
    %v342 = vsub.f32 %v285, %v338
    %v343 = vsub.f32 %v289, %v338
    %v344 = vsub.f32 %v293, %v338
    %v345 = vsub.f32 %v297, %v338
    %v346 = vsub.f32 %v301, %v338
    %v347 = vsub.f32 %v305, %v338
    %v348 = vsub.f32 %v309, %v338
    %v349 = vsub.f32 %v313, %v338
    %v350 = vsub.f32 %v317, %v338
    %v351 = vsub.f32 %v321, %v338
    %v352 = vsub.f32 %v325, %v338
    %v353 = vsub.f32 %v329, %v338
    %v354 = vsub.f32 %v333, %v338
    %v355 = vmul.f32 %v339, %v339
    %v356 = vmul.f32 %v340, %v340
    %v357 = vmul.f32 %v341, %v341
    %v358 = vmul.f32 %v342, %v342
    %v359 = vmul.f32 %v343, %v343
    %v360 = vmul.f32 %v344, %v344
    %v361 = vmul.f32 %v345, %v345
    %v362 = vmul.f32 %v346, %v346
    %v363 = vmul.f32 %v347, %v347
    %v364 = vmul.f32 %v348, %v348
    %v365 = vmul.f32 %v349, %v349
    %v366 = vmul.f32 %v350, %v350
    %v367 = vmul.f32 %v351, %v351
    %v368 = vmul.f32 %v352, %v352
    %v369 = vmul.f32 %v353, %v353
    %v370 = vmul.f32 %v354, %v354
    %v371 = vadd.f32 %v255, %v355
    %v372 = vadd.f32 %v256, %v356
    %v373 = vadd.f32 %v257, %v357
    %v374 = vadd.f32 %v258, %v358
    %v375 = vadd.f32 %v259, %v359
    %v376 = vadd.f32 %v260, %v360
    %v377 = vadd.f32 %v261, %v361
    %v378 = vadd.f32 %v262, %v362
    %v379 = vadd.f32 %v263, %v363
    %v380 = vadd.f32 %v264, %v364
    %v381 = vadd.f32 %v265, %v365
    %v382 = vadd.f32 %v266, %v366
    %v383 = vadd.f32 %v267, %v367
    %v384 = vadd.f32 %v268, %v368
    %v385 = vadd.f32 %v269, %v369
    %v386 = vadd.f32 %v270, %v370
    %vm387 = vcmp.lt.f32.partialorder %v371, 0.25
    %vm388 = vcmp.lt.f32.partialorder %v372, 0.25
    %vm389 = vcmp.lt.f32.partialorder %v373, 0.25
    %vm390 = vcmp.lt.f32.partialorder %v374, 0.25
    %vm391 = vcmp.lt.f32.partialorder %v375, 0.25
    %vm392 = vcmp.lt.f32.partialorder %v376, 0.25
    %vm393 = vcmp.lt.f32.partialorder %v377, 0.25
    %vm394 = vcmp.lt.f32.partialorder %v378, 0.25
    %vm395 = vcmp.lt.f32.partialorder %v379, 0.25
    %vm396 = vcmp.lt.f32.partialorder %v380, 0.25
    %vm397 = vcmp.lt.f32.partialorder %v381, 0.25
    %vm398 = vcmp.lt.f32.partialorder %v382, 0.25
    %vm399 = vcmp.lt.f32.partialorder %v383, 0.25
    %vm400 = vcmp.lt.f32.partialorder %v384, 0.25
    %vm401 = vcmp.lt.f32.partialorder %v385, 0.25
    %vm402 = vcmp.lt.f32.partialorder %v386, 0.25
    %v403 = vsel %vm387, 1, 0
    %v404 = vsel %vm388, 1, 0
    %v405 = vsel %vm389, 1, 0
    %v406 = vsel %vm390, 1, 0
    %v407 = vsel %vm391, 1, 0
    %v408 = vsel %vm392, 1, 0
    %v409 = vsel %vm393, 1, 0
    %v410 = vsel %vm394, 1, 0
    %v411 = vsel %vm395, 1, 0
    %v412 = vsel %vm396, 1, 0
    %v413 = vsel %vm397, 1, 0
    %v414 = vsel %vm398, 1, 0
    %v415 = vsel %vm399, 1, 0
    %v416 = vsel %vm400, 1, 0
    %v417 = vsel %vm401, 1, 0
    %v418 = vsel %vm402, 1, 0
    %v419 = vcvt.s32.f32 %v403
    %v420 = vcvt.s32.f32 %v404
    %v421 = vcvt.s32.f32 %v405
    %v422 = vcvt.s32.f32 %v406
    %v423 = vcvt.s32.f32 %v407
    %v424 = vcvt.s32.f32 %v408
    %v425 = vcvt.s32.f32 %v409
    %v426 = vcvt.s32.f32 %v410
    %v427 = vcvt.s32.f32 %v411
    %v428 = vcvt.s32.f32 %v412
    %v429 = vcvt.s32.f32 %v413
    %v430 = vcvt.s32.f32 %v414
    %v431 = vcvt.s32.f32 %v415
    %v432 = vcvt.s32.f32 %v416
    %v433 = vcvt.s32.f32 %v417
    %v434 = vcvt.s32.f32 %v418
    %451 = vrot.lane.b32.xlu0 %v419, 1
    %v452 = vpop.permute.xlu0 %451
    %453 = vrot.lane.b32.xlu0 %v420, 1
    %v454 = vpop.permute.xlu0 %453
    %455 = vrot.lane.b32.xlu0 %v421, 1
    %v456 = vpop.permute.xlu0 %455
    %457 = vrot.lane.b32.xlu0 %v422, 1
    %v458 = vpop.permute.xlu0 %457
    %459 = vrot.lane.b32.xlu0 %v423, 1
    %v460 = vpop.permute.xlu0 %459
    %461 = vrot.lane.b32.xlu0 %v424, 1
    %v462 = vpop.permute.xlu0 %461
    %463 = vrot.lane.b32.xlu0 %v425, 1
    %v464 = vpop.permute.xlu0 %463
    %465 = vrot.lane.b32.xlu0 %v426, 1
    %v466 = vpop.permute.xlu0 %465
    %467 = vrot.lane.b32.xlu0 %v427, 1
    %v468 = vpop.permute.xlu0 %467
    %469 = vrot.lane.b32.xlu0 %v428, 1
    %v470 = vpop.permute.xlu0 %469
    %471 = vrot.lane.b32.xlu0 %v429, 1
    %v472 = vpop.permute.xlu0 %471
    %473 = vrot.lane.b32.xlu0 %v430, 1
    %v474 = vpop.permute.xlu0 %473
    %475 = vrot.lane.b32.xlu0 %v431, 1
    %v476 = vpop.permute.xlu0 %475
    %477 = vrot.lane.b32.xlu0 %v432, 1
    %v478 = vpop.permute.xlu0 %477
    %479 = vrot.lane.b32.xlu0 %v433, 1
    %v480 = vpop.permute.xlu0 %479
    %481 = vrot.lane.b32.xlu0 %v434, 1
    %v482 = vpop.permute.xlu0 %481
    %vm499 = vcmask 7168
    %v500 = vsel %vm499, 0.0, %v452
    %v501 = vsel %vm499, 0.0, %v454
    %v502 = vsel %vm499, 0.0, %v456
    %v503 = vsel %vm499, 0.0, %v458
    %v504 = vsel %vm499, 0.0, %v460
    %v505 = vsel %vm499, 0.0, %v462
    %v506 = vsel %vm499, 0.0, %v464
    %v507 = vsel %vm499, 0.0, %v466
    %v508 = vsel %vm499, 0.0, %v468
    %v509 = vsel %vm499, 0.0, %v470
    %v510 = vsel %vm499, 0.0, %v472
    %v511 = vsel %vm499, 0.0, %v474
    %v512 = vsel %vm499, 0.0, %v476
    %v513 = vsel %vm499, 0.0, %v478
    %v514 = vsel %vm499, 0.0, %v480
    %v515 = vsel %vm499, 0.0, %v482
    %v516 = vadd.f32 %v419, %v500
    %v517 = vadd.f32 %v420, %v501
    %v518 = vadd.f32 %v421, %v502
    %v519 = vadd.f32 %v422, %v503
    %v520 = vadd.f32 %v423, %v504
    %v521 = vadd.f32 %v424, %v505
    %v522 = vadd.f32 %v425, %v506
    %v523 = vadd.f32 %v426, %v507
    %v524 = vadd.f32 %v427, %v508
    %v525 = vadd.f32 %v428, %v509
    %v526 = vadd.f32 %v429, %v510
    %v527 = vadd.f32 %v430, %v511
    %v528 = vadd.f32 %v431, %v512
    %v529 = vadd.f32 %v432, %v513
    %v530 = vadd.f32 %v433, %v514
    %v531 = vadd.f32 %v434, %v515
    %548 = vrot.lane.b32.xlu0 %v516, 2
    %v549 = vpop.permute.xlu0 %548
    %550 = vrot.lane.b32.xlu0 %v517, 2
    %v551 = vpop.permute.xlu0 %550
    %552 = vrot.lane.b32.xlu0 %v518, 2
    %v553 = vpop.permute.xlu0 %552
    %554 = vrot.lane.b32.xlu0 %v519, 2
    %v555 = vpop.permute.xlu0 %554
    %556 = vrot.lane.b32.xlu0 %v520, 2
    %v557 = vpop.permute.xlu0 %556
    %558 = vrot.lane.b32.xlu0 %v521, 2
    %v559 = vpop.permute.xlu0 %558
    %560 = vrot.lane.b32.xlu0 %v522, 2
    %v561 = vpop.permute.xlu0 %560
    %562 = vrot.lane.b32.xlu0 %v523, 2
    %v563 = vpop.permute.xlu0 %562
    %564 = vrot.lane.b32.xlu0 %v524, 2
    %v565 = vpop.permute.xlu0 %564
    %566 = vrot.lane.b32.xlu0 %v525, 2
    %v567 = vpop.permute.xlu0 %566
    %568 = vrot.lane.b32.xlu0 %v526, 2
    %v569 = vpop.permute.xlu0 %568
    %570 = vrot.lane.b32.xlu0 %v527, 2
    %v571 = vpop.permute.xlu0 %570
    %572 = vrot.lane.b32.xlu0 %v528, 2
    %v573 = vpop.permute.xlu0 %572
    %574 = vrot.lane.b32.xlu0 %v529, 2
    %v575 = vpop.permute.xlu0 %574
    %576 = vrot.lane.b32.xlu0 %v530, 2
    %v577 = vpop.permute.xlu0 %576
    %578 = vrot.lane.b32.xlu0 %v531, 2
    %v579 = vpop.permute.xlu0 %578
    %vm596 = vcmask 15360
    %v597 = vsel %vm596, 0.0, %v549
    %v598 = vsel %vm596, 0.0, %v551
    %v599 = vsel %vm596, 0.0, %v553
    %v600 = vsel %vm596, 0.0, %v555
    %v601 = vsel %vm596, 0.0, %v557
    %v602 = vsel %vm596, 0.0, %v559
    %v603 = vsel %vm596, 0.0, %v561
    %v604 = vsel %vm596, 0.0, %v563
    %v605 = vsel %vm596, 0.0, %v565
    %v606 = vsel %vm596, 0.0, %v567
    %v607 = vsel %vm596, 0.0, %v569
    %v608 = vsel %vm596, 0.0, %v571
    %v609 = vsel %vm596, 0.0, %v573
    %v610 = vsel %vm596, 0.0, %v575
    %v611 = vsel %vm596, 0.0, %v577
    %v612 = vsel %vm596, 0.0, %v579
    %v613 = vadd.f32 %v516, %v597
    %v614 = vadd.f32 %v517, %v598
    %v615 = vadd.f32 %v518, %v599
    %v616 = vadd.f32 %v519, %v600
    %v617 = vadd.f32 %v520, %v601
    %v618 = vadd.f32 %v521, %v602
    %v619 = vadd.f32 %v522, %v603
    %v620 = vadd.f32 %v523, %v604
    %v621 = vadd.f32 %v524, %v605
    %v622 = vadd.f32 %v525, %v606
    %v623 = vadd.f32 %v526, %v607
    %v624 = vadd.f32 %v527, %v608
    %v625 = vadd.f32 %v528, %v609
    %v626 = vadd.f32 %v529, %v610
    %v627 = vadd.f32 %v530, %v611
    %v628 = vadd.f32 %v531, %v612
    %645 = vrot.lane.b32.xlu0 %v613, 4
    %v646 = vpop.permute.xlu0 %645
    %647 = vrot.lane.b32.xlu0 %v614, 4
    %v648 = vpop.permute.xlu0 %647
    %649 = vrot.lane.b32.xlu0 %v615, 4
    %v650 = vpop.permute.xlu0 %649
    %651 = vrot.lane.b32.xlu0 %v616, 4
    %v652 = vpop.permute.xlu0 %651
    %653 = vrot.lane.b32.xlu0 %v617, 4
    %v654 = vpop.permute.xlu0 %653
    %655 = vrot.lane.b32.xlu0 %v618, 4
    %v656 = vpop.permute.xlu0 %655
    %657 = vrot.lane.b32.xlu0 %v619, 4
    %v658 = vpop.permute.xlu0 %657
    %659 = vrot.lane.b32.xlu0 %v620, 4
    %v660 = vpop.permute.xlu0 %659
    %661 = vrot.lane.b32.xlu0 %v621, 4
    %v662 = vpop.permute.xlu0 %661
    %663 = vrot.lane.b32.xlu0 %v622, 4
    %v664 = vpop.permute.xlu0 %663
    %665 = vrot.lane.b32.xlu0 %v623, 4
    %v666 = vpop.permute.xlu0 %665
    %667 = vrot.lane.b32.xlu0 %v624, 4
    %v668 = vpop.permute.xlu0 %667
    %669 = vrot.lane.b32.xlu0 %v625, 4
    %v670 = vpop.permute.xlu0 %669
    %671 = vrot.lane.b32.xlu0 %v626, 4
    %v672 = vpop.permute.xlu0 %671
    %673 = vrot.lane.b32.xlu0 %v627, 4
    %v674 = vpop.permute.xlu0 %673
    %675 = vrot.lane.b32.xlu0 %v628, 4
    %v676 = vpop.permute.xlu0 %675
    %vm693 = vcmask 31744
    %v694 = vsel %vm693, 0.0, %v646
    %v695 = vsel %vm693, 0.0, %v648
    %v696 = vsel %vm693, 0.0, %v650
    %v697 = vsel %vm693, 0.0, %v652
    %v698 = vsel %vm693, 0.0, %v654
    %v699 = vsel %vm693, 0.0, %v656
    %v700 = vsel %vm693, 0.0, %v658
    %v701 = vsel %vm693, 0.0, %v660
    %v702 = vsel %vm693, 0.0, %v662
    %v703 = vsel %vm693, 0.0, %v664
    %v704 = vsel %vm693, 0.0, %v666
    %v705 = vsel %vm693, 0.0, %v668
    %v706 = vsel %vm693, 0.0, %v670
    %v707 = vsel %vm693, 0.0, %v672
    %v708 = vsel %vm693, 0.0, %v674
    %v709 = vsel %vm693, 0.0, %v676
    %v710 = vadd.f32 %v613, %v694
    %v711 = vadd.f32 %v614, %v695
    %v712 = vadd.f32 %v615, %v696
    %v713 = vadd.f32 %v616, %v697
    %v714 = vadd.f32 %v617, %v698
    %v715 = vadd.f32 %v618, %v699
    %v716 = vadd.f32 %v619, %v700
    %v717 = vadd.f32 %v620, %v701
    %v718 = vadd.f32 %v621, %v702
    %v719 = vadd.f32 %v622, %v703
    %v720 = vadd.f32 %v623, %v704
    %v721 = vadd.f32 %v624, %v705
    %v722 = vadd.f32 %v625, %v706
    %v723 = vadd.f32 %v626, %v707
    %v724 = vadd.f32 %v627, %v708
    %v725 = vadd.f32 %v628, %v709
    %742 = vrot.lane.b32.xlu0 %v710, 8
    %v743 = vpop.permute.xlu0 %742
    %744 = vrot.lane.b32.xlu0 %v711, 8
    %v745 = vpop.permute.xlu0 %744
    %746 = vrot.lane.b32.xlu0 %v712, 8
    %v747 = vpop.permute.xlu0 %746
    %748 = vrot.lane.b32.xlu0 %v713, 8
    %v749 = vpop.permute.xlu0 %748
    %750 = vrot.lane.b32.xlu0 %v714, 8
    %v751 = vpop.permute.xlu0 %750
    %752 = vrot.lane.b32.xlu0 %v715, 8
    %v753 = vpop.permute.xlu0 %752
    %754 = vrot.lane.b32.xlu0 %v716, 8
    %v755 = vpop.permute.xlu0 %754
    %756 = vrot.lane.b32.xlu0 %v717, 8
    %v757 = vpop.permute.xlu0 %756
    %758 = vrot.lane.b32.xlu0 %v718, 8
    %v759 = vpop.permute.xlu0 %758
    %760 = vrot.lane.b32.xlu0 %v719, 8
    %v761 = vpop.permute.xlu0 %760
    %762 = vrot.lane.b32.xlu0 %v720, 8
    %v763 = vpop.permute.xlu0 %762
    %764 = vrot.lane.b32.xlu0 %v721, 8
    %v765 = vpop.permute.xlu0 %764
    %766 = vrot.lane.b32.xlu0 %v722, 8
    %v767 = vpop.permute.xlu0 %766
    %768 = vrot.lane.b32.xlu0 %v723, 8
    %v769 = vpop.permute.xlu0 %768
    %770 = vrot.lane.b32.xlu0 %v724, 8
    %v771 = vpop.permute.xlu0 %770
    %772 = vrot.lane.b32.xlu0 %v725, 8
    %v773 = vpop.permute.xlu0 %772
    %vm790 = vcmask 64512
    %v791 = vsel %vm790, 0.0, %v743
    %v792 = vsel %vm790, 0.0, %v745
    %v793 = vsel %vm790, 0.0, %v747
    %v794 = vsel %vm790, 0.0, %v749
    %v795 = vsel %vm790, 0.0, %v751
    %v796 = vsel %vm790, 0.0, %v753
    %v797 = vsel %vm790, 0.0, %v755
    %v798 = vsel %vm790, 0.0, %v757
    %v799 = vsel %vm790, 0.0, %v759
    %v800 = vsel %vm790, 0.0, %v761
    %v801 = vsel %vm790, 0.0, %v763
    %v802 = vsel %vm790, 0.0, %v765
    %v803 = vsel %vm790, 0.0, %v767
    %v804 = vsel %vm790, 0.0, %v769
    %v805 = vsel %vm790, 0.0, %v771
    %v806 = vsel %vm790, 0.0, %v773
    %v807 = vadd.f32 %v710, %v791
    %v808 = vadd.f32 %v711, %v792
    %v809 = vadd.f32 %v712, %v793
    %v810 = vadd.f32 %v713, %v794
    %v811 = vadd.f32 %v714, %v795
    %v812 = vadd.f32 %v715, %v796
    %v813 = vadd.f32 %v716, %v797
    %v814 = vadd.f32 %v717, %v798
    %v815 = vadd.f32 %v718, %v799
    %v816 = vadd.f32 %v719, %v800
    %v817 = vadd.f32 %v720, %v801
    %v818 = vadd.f32 %v721, %v802
    %v819 = vadd.f32 %v722, %v803
    %v820 = vadd.f32 %v723, %v804
    %v821 = vadd.f32 %v724, %v805
    %v822 = vadd.f32 %v725, %v806
    %839 = vrot.lane.b32.xlu0 %v807, 16
    %v840 = vpop.permute.xlu0 %839
    %841 = vrot.lane.b32.xlu0 %v808, 16
    %v842 = vpop.permute.xlu0 %841
    %843 = vrot.lane.b32.xlu0 %v809, 16
    %v844 = vpop.permute.xlu0 %843
    %845 = vrot.lane.b32.xlu0 %v810, 16
    %v846 = vpop.permute.xlu0 %845
    %847 = vrot.lane.b32.xlu0 %v811, 16
    %v848 = vpop.permute.xlu0 %847
    %849 = vrot.lane.b32.xlu0 %v812, 16
    %v850 = vpop.permute.xlu0 %849
    %851 = vrot.lane.b32.xlu0 %v813, 16
    %v852 = vpop.permute.xlu0 %851
    %853 = vrot.lane.b32.xlu0 %v814, 16
    %v854 = vpop.permute.xlu0 %853
    %855 = vrot.lane.b32.xlu0 %v815, 16
    %v856 = vpop.permute.xlu0 %855
    %857 = vrot.lane.b32.xlu0 %v816, 16
    %v858 = vpop.permute.xlu0 %857
    %859 = vrot.lane.b32.xlu0 %v817, 16
    %v860 = vpop.permute.xlu0 %859
    %861 = vrot.lane.b32.xlu0 %v818, 16
    %v862 = vpop.permute.xlu0 %861
    %863 = vrot.lane.b32.xlu0 %v819, 16
    %v864 = vpop.permute.xlu0 %863
    %865 = vrot.lane.b32.xlu0 %v820, 16
    %v866 = vpop.permute.xlu0 %865
    %867 = vrot.lane.b32.xlu0 %v821, 16
    %v868 = vpop.permute.xlu0 %867
    %869 = vrot.lane.b32.xlu0 %v822, 16
    %v870 = vpop.permute.xlu0 %869
    %vm887 = vcmask 130048
    %v888 = vsel %vm887, 0.0, %v840
    %v889 = vsel %vm887, 0.0, %v842
    %v890 = vsel %vm887, 0.0, %v844
    %v891 = vsel %vm887, 0.0, %v846
    %v892 = vsel %vm887, 0.0, %v848
    %v893 = vsel %vm887, 0.0, %v850
    %v894 = vsel %vm887, 0.0, %v852
    %v895 = vsel %vm887, 0.0, %v854
    %v896 = vsel %vm887, 0.0, %v856
    %v897 = vsel %vm887, 0.0, %v858
    %v898 = vsel %vm887, 0.0, %v860
    %v899 = vsel %vm887, 0.0, %v862
    %v900 = vsel %vm887, 0.0, %v864
    %v901 = vsel %vm887, 0.0, %v866
    %v902 = vsel %vm887, 0.0, %v868
    %v903 = vsel %vm887, 0.0, %v870
    %v904 = vadd.f32 %v807, %v888
    %v905 = vadd.f32 %v808, %v889
    %v906 = vadd.f32 %v809, %v890
    %v907 = vadd.f32 %v810, %v891
    %v908 = vadd.f32 %v811, %v892
    %v909 = vadd.f32 %v812, %v893
    %v910 = vadd.f32 %v813, %v894
    %v911 = vadd.f32 %v814, %v895
    %v912 = vadd.f32 %v815, %v896
    %v913 = vadd.f32 %v816, %v897
    %v914 = vadd.f32 %v817, %v898
    %v915 = vadd.f32 %v818, %v899
    %v916 = vadd.f32 %v819, %v900
    %v917 = vadd.f32 %v820, %v901
    %v918 = vadd.f32 %v821, %v902
    %v919 = vadd.f32 %v822, %v903
    %936 = vrot.lane.b32.xlu0 %v904, 32
    %v937 = vpop.permute.xlu0 %936
    %938 = vrot.lane.b32.xlu0 %v905, 32
    %v939 = vpop.permute.xlu0 %938
    %940 = vrot.lane.b32.xlu0 %v906, 32
    %v941 = vpop.permute.xlu0 %940
    %942 = vrot.lane.b32.xlu0 %v907, 32
    %v943 = vpop.permute.xlu0 %942
    %944 = vrot.lane.b32.xlu0 %v908, 32
    %v945 = vpop.permute.xlu0 %944
    %946 = vrot.lane.b32.xlu0 %v909, 32
    %v947 = vpop.permute.xlu0 %946
    %948 = vrot.lane.b32.xlu0 %v910, 32
    %v949 = vpop.permute.xlu0 %948
    %950 = vrot.lane.b32.xlu0 %v911, 32
    %v951 = vpop.permute.xlu0 %950
    %952 = vrot.lane.b32.xlu0 %v912, 32
    %v953 = vpop.permute.xlu0 %952
    %954 = vrot.lane.b32.xlu0 %v913, 32
    %v955 = vpop.permute.xlu0 %954
    %956 = vrot.lane.b32.xlu0 %v914, 32
    %v957 = vpop.permute.xlu0 %956
    %958 = vrot.lane.b32.xlu0 %v915, 32
    %v959 = vpop.permute.xlu0 %958
    %960 = vrot.lane.b32.xlu0 %v916, 32
    %v961 = vpop.permute.xlu0 %960
    %962 = vrot.lane.b32.xlu0 %v917, 32
    %v963 = vpop.permute.xlu0 %962
    %964 = vrot.lane.b32.xlu0 %v918, 32
    %v965 = vpop.permute.xlu0 %964
    %966 = vrot.lane.b32.xlu0 %v919, 32
    %v967 = vpop.permute.xlu0 %966
    %vm984 = vcmask 261120
    %v985 = vsel %vm984, 0.0, %v937
    %v986 = vsel %vm984, 0.0, %v939
    %v987 = vsel %vm984, 0.0, %v941
    %v988 = vsel %vm984, 0.0, %v943
    %v989 = vsel %vm984, 0.0, %v945
    %v990 = vsel %vm984, 0.0, %v947
    %v991 = vsel %vm984, 0.0, %v949
    %v992 = vsel %vm984, 0.0, %v951
    %v993 = vsel %vm984, 0.0, %v953
    %v994 = vsel %vm984, 0.0, %v955
    %v995 = vsel %vm984, 0.0, %v957
    %v996 = vsel %vm984, 0.0, %v959
    %v997 = vsel %vm984, 0.0, %v961
    %v998 = vsel %vm984, 0.0, %v963
    %v999 = vsel %vm984, 0.0, %v965
    %v1000 = vsel %vm984, 0.0, %v967
    %v1001 = vadd.f32 %v904, %v985
    %v1002 = vadd.f32 %v905, %v986
    %v1003 = vadd.f32 %v906, %v987
    %v1004 = vadd.f32 %v907, %v988
    %v1005 = vadd.f32 %v908, %v989
    %v1006 = vadd.f32 %v909, %v990
    %v1007 = vadd.f32 %v910, %v991
    %v1008 = vadd.f32 %v911, %v992
    %v1009 = vadd.f32 %v912, %v993
    %v1010 = vadd.f32 %v913, %v994
    %v1011 = vadd.f32 %v914, %v995
    %v1012 = vadd.f32 %v915, %v996
    %v1013 = vadd.f32 %v916, %v997
    %v1014 = vadd.f32 %v917, %v998
    %v1015 = vadd.f32 %v918, %v999
    %v1016 = vadd.f32 %v919, %v1000
    %1033 = vrot.lane.b32.xlu0 %v1001, 64
    %v1034 = vpop.permute.xlu0 %1033
    %1035 = vrot.lane.b32.xlu0 %v1002, 64
    %v1036 = vpop.permute.xlu0 %1035
    %1037 = vrot.lane.b32.xlu0 %v1003, 64
    %v1038 = vpop.permute.xlu0 %1037
    %1039 = vrot.lane.b32.xlu0 %v1004, 64
    %v1040 = vpop.permute.xlu0 %1039
    %1041 = vrot.lane.b32.xlu0 %v1005, 64
    %v1042 = vpop.permute.xlu0 %1041
    %1043 = vrot.lane.b32.xlu0 %v1006, 64
    %v1044 = vpop.permute.xlu0 %1043
    %1045 = vrot.lane.b32.xlu0 %v1007, 64
    %v1046 = vpop.permute.xlu0 %1045
    %1047 = vrot.lane.b32.xlu0 %v1008, 64
    %v1048 = vpop.permute.xlu0 %1047
    %1049 = vrot.lane.b32.xlu0 %v1009, 64
    %v1050 = vpop.permute.xlu0 %1049
    %1051 = vrot.lane.b32.xlu0 %v1010, 64
    %v1052 = vpop.permute.xlu0 %1051
    %1053 = vrot.lane.b32.xlu0 %v1011, 64
    %v1054 = vpop.permute.xlu0 %1053
    %1055 = vrot.lane.b32.xlu0 %v1012, 64
    %v1056 = vpop.permute.xlu0 %1055
    %1057 = vrot.lane.b32.xlu0 %v1013, 64
    %v1058 = vpop.permute.xlu0 %1057
    %1059 = vrot.lane.b32.xlu0 %v1014, 64
    %v1060 = vpop.permute.xlu0 %1059
    %1061 = vrot.lane.b32.xlu0 %v1015, 64
    %v1062 = vpop.permute.xlu0 %1061
    %1063 = vrot.lane.b32.xlu0 %v1016, 64
    %v1064 = vpop.permute.xlu0 %1063
    %vm1081 = vcmask 523264
    %v1082 = vsel %vm1081, 0.0, %v1034
    %v1083 = vsel %vm1081, 0.0, %v1036
    %v1084 = vsel %vm1081, 0.0, %v1038
    %v1085 = vsel %vm1081, 0.0, %v1040
    %v1086 = vsel %vm1081, 0.0, %v1042
    %v1087 = vsel %vm1081, 0.0, %v1044
    %v1088 = vsel %vm1081, 0.0, %v1046
    %v1089 = vsel %vm1081, 0.0, %v1048
    %v1090 = vsel %vm1081, 0.0, %v1050
    %v1091 = vsel %vm1081, 0.0, %v1052
    %v1092 = vsel %vm1081, 0.0, %v1054
    %v1093 = vsel %vm1081, 0.0, %v1056
    %v1094 = vsel %vm1081, 0.0, %v1058
    %v1095 = vsel %vm1081, 0.0, %v1060
    %v1096 = vsel %vm1081, 0.0, %v1062
    %v1097 = vsel %vm1081, 0.0, %v1064
    %v1098 = vadd.f32 %v1001, %v1082
    %v1099 = vadd.f32 %v1002, %v1083
    %v1100 = vadd.f32 %v1003, %v1084
    %v1101 = vadd.f32 %v1004, %v1085
    %v1102 = vadd.f32 %v1005, %v1086
    %v1103 = vadd.f32 %v1006, %v1087
    %v1104 = vadd.f32 %v1007, %v1088
    %v1105 = vadd.f32 %v1008, %v1089
    %v1106 = vadd.f32 %v1009, %v1090
    %v1107 = vadd.f32 %v1010, %v1091
    %v1108 = vadd.f32 %v1011, %v1092
    %v1109 = vadd.f32 %v1012, %v1093
    %v1110 = vadd.f32 %v1013, %v1094
    %v1111 = vadd.f32 %v1014, %v1095
    %v1112 = vadd.f32 %v1015, %v1096
    %v1113 = vadd.f32 %v1016, %v1097
    %vm1114 = vcmp.le.f32.partialorder %v1098, 16.0
    %vm1115 = vcmp.le.f32.partialorder %v1099, 16.0
    %vm1116 = vcmp.le.f32.partialorder %v1100, 16.0
    %vm1117 = vcmp.le.f32.partialorder %v1101, 16.0
    %vm1118 = vcmp.le.f32.partialorder %v1102, 16.0
    %vm1119 = vcmp.le.f32.partialorder %v1103, 16.0
    %vm1120 = vcmp.le.f32.partialorder %v1104, 16.0
    %vm1121 = vcmp.le.f32.partialorder %v1105, 16.0
    %vm1122 = vcmp.le.f32.partialorder %v1106, 16.0
    %vm1123 = vcmp.le.f32.partialorder %v1107, 16.0
    %vm1124 = vcmp.le.f32.partialorder %v1108, 16.0
    %vm1125 = vcmp.le.f32.partialorder %v1109, 16.0
    %vm1126 = vcmp.le.f32.partialorder %v1110, 16.0
    %vm1127 = vcmp.le.f32.partialorder %v1111, 16.0
    %vm1128 = vcmp.le.f32.partialorder %v1112, 16.0
    %vm1129 = vcmp.le.f32.partialorder %v1113, 16.0
    %v1130 = vsel %vm1114, 1, 0
    %v1131 = vsel %vm1115, 1, 0
    %v1132 = vsel %vm1116, 1, 0
    %v1133 = vsel %vm1117, 1, 0
    %v1134 = vsel %vm1118, 1, 0
    %v1135 = vsel %vm1119, 1, 0
    %v1136 = vsel %vm1120, 1, 0
    %v1137 = vsel %vm1121, 1, 0
    %v1138 = vsel %vm1122, 1, 0
    %v1139 = vsel %vm1123, 1, 0
    %v1140 = vsel %vm1124, 1, 0
    %v1141 = vsel %vm1125, 1, 0
    %v1142 = vsel %vm1126, 1, 0
    %v1143 = vsel %vm1127, 1, 0
    %v1144 = vsel %vm1128, 1, 0
    %v1145 = vsel %vm1129, 1, 0
    %v1146 = vcvt.s32.f32 %v1130
    %v1147 = vcvt.s32.f32 %v1131
    %v1148 = vcvt.s32.f32 %v1132
    %v1149 = vcvt.s32.f32 %v1133
    %v1150 = vcvt.s32.f32 %v1134
    %v1151 = vcvt.s32.f32 %v1135
    %v1152 = vcvt.s32.f32 %v1136
    %v1153 = vcvt.s32.f32 %v1137
    %v1154 = vcvt.s32.f32 %v1138
    %v1155 = vcvt.s32.f32 %v1139
    %v1156 = vcvt.s32.f32 %v1140
    %v1157 = vcvt.s32.f32 %v1141
    %v1158 = vcvt.s32.f32 %v1142
    %v1159 = vcvt.s32.f32 %v1143
    %v1160 = vcvt.s32.f32 %v1144
    %v1161 = vcvt.s32.f32 %v1145
    %v1162 = vmul.f32 %v419, %v1146
    %v1163 = vmul.f32 %v420, %v1147
    %v1164 = vmul.f32 %v421, %v1148
    %v1165 = vmul.f32 %v422, %v1149
    %v1166 = vmul.f32 %v423, %v1150
    %v1167 = vmul.f32 %v424, %v1151
    %v1168 = vmul.f32 %v425, %v1152
    %v1169 = vmul.f32 %v426, %v1153
    %v1170 = vmul.f32 %v427, %v1154
    %v1171 = vmul.f32 %v428, %v1155
    %v1172 = vmul.f32 %v429, %v1156
    %v1173 = vmul.f32 %v430, %v1157
    %v1174 = vmul.f32 %v431, %v1158
    %v1175 = vmul.f32 %v432, %v1159
    %v1176 = vmul.f32 %v433, %v1160
    %v1177 = vmul.f32 %v434, %v1161
    %1178 = vadd.xlane.f32.xlu0 %v1162
    %v1179 = vpop.xlane.xlu0 %1178
    %1180 = vadd.xlane.f32.xlu0 %v1163
    %v1181 = vpop.xlane.xlu0 %1180
    %1182 = vadd.xlane.f32.xlu0 %v1164
    %v1183 = vpop.xlane.xlu0 %1182
    %1184 = vadd.xlane.f32.xlu0 %v1165
    %v1185 = vpop.xlane.xlu0 %1184
    %1186 = vadd.xlane.f32.xlu0 %v1166
    %v1187 = vpop.xlane.xlu0 %1186
    %1188 = vadd.xlane.f32.xlu0 %v1167
    %v1189 = vpop.xlane.xlu0 %1188
    %1190 = vadd.xlane.f32.xlu0 %v1168
    %v1191 = vpop.xlane.xlu0 %1190
    %1192 = vadd.xlane.f32.xlu0 %v1169
    %v1193 = vpop.xlane.xlu0 %1192
    %1194 = vadd.xlane.f32.xlu0 %v1170
    %v1195 = vpop.xlane.xlu0 %1194
    %1196 = vadd.xlane.f32.xlu0 %v1171
    %v1197 = vpop.xlane.xlu0 %1196
    %1198 = vadd.xlane.f32.xlu0 %v1172
    %v1199 = vpop.xlane.xlu0 %1198
    %1200 = vadd.xlane.f32.xlu0 %v1173
    %v1201 = vpop.xlane.xlu0 %1200
    %1202 = vadd.xlane.f32.xlu0 %v1174
    %v1203 = vpop.xlane.xlu0 %1202
    %1204 = vadd.xlane.f32.xlu0 %v1175
    %v1205 = vpop.xlane.xlu0 %1204
    %1206 = vadd.xlane.f32.xlu0 %v1176
    %v1207 = vpop.xlane.xlu0 %1206
    %1208 = vadd.xlane.f32.xlu0 %v1177
    %v1209 = vpop.xlane.xlu0 %1208
    %v1211 = vlaneseq
    %v1212 = vshrl.u32 %v1211, 7
    %v1213 = vsub.s32 0, %v1212
    %v1214 = vrot.slane %v38, %v1213
    %v1216 = vmul.f32 %v1162, %v1214
    %v1217 = vmul.f32 %v1163, %v1214
    %v1218 = vmul.f32 %v1164, %v1214
    %v1219 = vmul.f32 %v1165, %v1214
    %v1220 = vmul.f32 %v1166, %v1214
    %v1221 = vmul.f32 %v1167, %v1214
    %v1222 = vmul.f32 %v1168, %v1214
    %v1223 = vmul.f32 %v1169, %v1214
    %v1224 = vmul.f32 %v1170, %v1214
    %v1225 = vmul.f32 %v1171, %v1214
    %v1226 = vmul.f32 %v1172, %v1214
    %v1227 = vmul.f32 %v1173, %v1214
    %v1228 = vmul.f32 %v1174, %v1214
    %v1229 = vmul.f32 %v1175, %v1214
    %v1230 = vmul.f32 %v1176, %v1214
    %v1231 = vmul.f32 %v1177, %v1214
    %1232 = vadd.xlane.f32.xlu0 %v1216
    %v1233 = vpop.xlane.xlu0 %1232
    %1234 = vadd.xlane.f32.xlu0 %v1217
    %v1235 = vpop.xlane.xlu0 %1234
    %1236 = vadd.xlane.f32.xlu0 %v1218
    %v1237 = vpop.xlane.xlu0 %1236
    %1238 = vadd.xlane.f32.xlu0 %v1219
    %v1239 = vpop.xlane.xlu0 %1238
    %1240 = vadd.xlane.f32.xlu0 %v1220
    %v1241 = vpop.xlane.xlu0 %1240
    %1242 = vadd.xlane.f32.xlu0 %v1221
    %v1243 = vpop.xlane.xlu0 %1242
    %1244 = vadd.xlane.f32.xlu0 %v1222
    %v1245 = vpop.xlane.xlu0 %1244
    %1246 = vadd.xlane.f32.xlu0 %v1223
    %v1247 = vpop.xlane.xlu0 %1246
    %1248 = vadd.xlane.f32.xlu0 %v1224
    %v1249 = vpop.xlane.xlu0 %1248
    %1250 = vadd.xlane.f32.xlu0 %v1225
    %v1251 = vpop.xlane.xlu0 %1250
    %1252 = vadd.xlane.f32.xlu0 %v1226
    %v1253 = vpop.xlane.xlu0 %1252
    %1254 = vadd.xlane.f32.xlu0 %v1227
    %v1255 = vpop.xlane.xlu0 %1254
    %1256 = vadd.xlane.f32.xlu0 %v1228
    %v1257 = vpop.xlane.xlu0 %1256
    %1258 = vadd.xlane.f32.xlu0 %v1229
    %v1259 = vpop.xlane.xlu0 %1258
    %1260 = vadd.xlane.f32.xlu0 %v1230
    %v1261 = vpop.xlane.xlu0 %1260
    %1262 = vadd.xlane.f32.xlu0 %v1231
    %v1263 = vpop.xlane.xlu0 %1262
    %v1264 = vmax.f32 %v1179, 1.0
    %v1265 = vmax.f32 %v1181, 1.0
    %v1266 = vmax.f32 %v1183, 1.0
    %v1267 = vmax.f32 %v1185, 1.0
    %v1268 = vmax.f32 %v1187, 1.0
    %v1269 = vmax.f32 %v1189, 1.0
    %v1270 = vmax.f32 %v1191, 1.0
    %v1271 = vmax.f32 %v1193, 1.0
    %v1272 = vmax.f32 %v1195, 1.0
    %v1273 = vmax.f32 %v1197, 1.0
    %v1274 = vmax.f32 %v1199, 1.0
    %v1275 = vmax.f32 %v1201, 1.0
    %v1276 = vmax.f32 %v1203, 1.0
    %v1277 = vmax.f32 %v1205, 1.0
    %v1278 = vmax.f32 %v1207, 1.0
    %v1279 = vmax.f32 %v1209, 1.0
    %v1280 = vrcp.pop %v1264
    %v1281 = vmul.f32 %v1233, %v1280
    %v1282 = vrcp.pop %v1265
    %v1283 = vmul.f32 %v1235, %v1282
    %v1284 = vrcp.pop %v1266
    %v1285 = vmul.f32 %v1237, %v1284
    %v1286 = vrcp.pop %v1267
    %v1287 = vmul.f32 %v1239, %v1286
    %v1288 = vrcp.pop %v1268
    %v1289 = vmul.f32 %v1241, %v1288
    %v1290 = vrcp.pop %v1269
    %v1291 = vmul.f32 %v1243, %v1290
    %v1292 = vrcp.pop %v1270
    %v1293 = vmul.f32 %v1245, %v1292
    %v1294 = vrcp.pop %v1271
    %v1295 = vmul.f32 %v1247, %v1294
    %v1296 = vrcp.pop %v1272
    %v1297 = vmul.f32 %v1249, %v1296
    %v1298 = vrcp.pop %v1273
    %v1299 = vmul.f32 %v1251, %v1298
    %v1300 = vrcp.pop %v1274
    %v1301 = vmul.f32 %v1253, %v1300
    %v1302 = vrcp.pop %v1275
    %v1303 = vmul.f32 %v1255, %v1302
    %v1304 = vrcp.pop %v1276
    %v1305 = vmul.f32 %v1257, %v1304
    %v1306 = vrcp.pop %v1277
    %v1307 = vmul.f32 %v1259, %v1306
    %v1308 = vrcp.pop %v1278
    %v1309 = vmul.f32 %v1261, %v1308
    %v1310 = vrcp.pop %v1279
    %v1311 = vmul.f32 %v1263, %v1310
    %vm1312 = vcmp.gt.f32.partialorder %v1162, 0.0
    %vm1313 = vcmp.gt.f32.partialorder %v1163, 0.0
    %vm1314 = vcmp.gt.f32.partialorder %v1164, 0.0
    %vm1315 = vcmp.gt.f32.partialorder %v1165, 0.0
    %vm1316 = vcmp.gt.f32.partialorder %v1166, 0.0
    %vm1317 = vcmp.gt.f32.partialorder %v1167, 0.0
    %vm1318 = vcmp.gt.f32.partialorder %v1168, 0.0
    %vm1319 = vcmp.gt.f32.partialorder %v1169, 0.0
    %vm1320 = vcmp.gt.f32.partialorder %v1170, 0.0
    %vm1321 = vcmp.gt.f32.partialorder %v1171, 0.0
    %vm1322 = vcmp.gt.f32.partialorder %v1172, 0.0
    %vm1323 = vcmp.gt.f32.partialorder %v1173, 0.0
    %vm1324 = vcmp.gt.f32.partialorder %v1174, 0.0
    %vm1325 = vcmp.gt.f32.partialorder %v1175, 0.0
    %vm1326 = vcmp.gt.f32.partialorder %v1176, 0.0
    %vm1327 = vcmp.gt.f32.partialorder %v1177, 0.0
    %v1328 = vsel %vm1312, %v1214, -1e+30
    %v1329 = vsel %vm1313, %v1214, -1e+30
    %v1330 = vsel %vm1314, %v1214, -1e+30
    %v1331 = vsel %vm1315, %v1214, -1e+30
    %v1332 = vsel %vm1316, %v1214, -1e+30
    %v1333 = vsel %vm1317, %v1214, -1e+30
    %v1334 = vsel %vm1318, %v1214, -1e+30
    %v1335 = vsel %vm1319, %v1214, -1e+30
    %v1336 = vsel %vm1320, %v1214, -1e+30
    %v1337 = vsel %vm1321, %v1214, -1e+30
    %v1338 = vsel %vm1322, %v1214, -1e+30
    %v1339 = vsel %vm1323, %v1214, -1e+30
    %v1340 = vsel %vm1324, %v1214, -1e+30
    %v1341 = vsel %vm1325, %v1214, -1e+30
    %v1342 = vsel %vm1326, %v1214, -1e+30
    %v1343 = vsel %vm1327, %v1214, -1e+30
    %1344 = vmax.xlane.f32.xlu0 %v1328
    %v1345 = vpop.xlane.xlu0 %1344
    %1346 = vmax.xlane.f32.xlu0 %v1329
    %v1347 = vpop.xlane.xlu0 %1346
    %1348 = vmax.xlane.f32.xlu0 %v1330
    %v1349 = vpop.xlane.xlu0 %1348
    %1350 = vmax.xlane.f32.xlu0 %v1331
    %v1351 = vpop.xlane.xlu0 %1350
    %1352 = vmax.xlane.f32.xlu0 %v1332
    %v1353 = vpop.xlane.xlu0 %1352
    %1354 = vmax.xlane.f32.xlu0 %v1333
    %v1355 = vpop.xlane.xlu0 %1354
    %1356 = vmax.xlane.f32.xlu0 %v1334
    %v1357 = vpop.xlane.xlu0 %1356
    %1358 = vmax.xlane.f32.xlu0 %v1335
    %v1359 = vpop.xlane.xlu0 %1358
    %1360 = vmax.xlane.f32.xlu0 %v1336
    %v1361 = vpop.xlane.xlu0 %1360
    %1362 = vmax.xlane.f32.xlu0 %v1337
    %v1363 = vpop.xlane.xlu0 %1362
    %1364 = vmax.xlane.f32.xlu0 %v1338
    %v1365 = vpop.xlane.xlu0 %1364
    %1366 = vmax.xlane.f32.xlu0 %v1339
    %v1367 = vpop.xlane.xlu0 %1366
    %1368 = vmax.xlane.f32.xlu0 %v1340
    %v1369 = vpop.xlane.xlu0 %1368
    %1370 = vmax.xlane.f32.xlu0 %v1341
    %v1371 = vpop.xlane.xlu0 %1370
    %1372 = vmax.xlane.f32.xlu0 %v1342
    %v1373 = vpop.xlane.xlu0 %1372
    %1374 = vmax.xlane.f32.xlu0 %v1343
    %v1375 = vpop.xlane.xlu0 %1374
    %vm1376 = vcmp.lt.f32.partialorder %v1179, 16.0
    %vm1377 = vcmp.lt.f32.partialorder %v1181, 16.0
    %vm1378 = vcmp.lt.f32.partialorder %v1183, 16.0
    %vm1379 = vcmp.lt.f32.partialorder %v1185, 16.0
    %vm1380 = vcmp.lt.f32.partialorder %v1187, 16.0
    %vm1381 = vcmp.lt.f32.partialorder %v1189, 16.0
    %vm1382 = vcmp.lt.f32.partialorder %v1191, 16.0
    %vm1383 = vcmp.lt.f32.partialorder %v1193, 16.0
    %vm1384 = vcmp.lt.f32.partialorder %v1195, 16.0
    %vm1385 = vcmp.lt.f32.partialorder %v1197, 16.0
    %vm1386 = vcmp.lt.f32.partialorder %v1199, 16.0
    %vm1387 = vcmp.lt.f32.partialorder %v1201, 16.0
    %vm1388 = vcmp.lt.f32.partialorder %v1203, 16.0
    %vm1389 = vcmp.lt.f32.partialorder %v1205, 16.0
    %vm1390 = vcmp.lt.f32.partialorder %v1207, 16.0
    %vm1391 = vcmp.lt.f32.partialorder %v1209, 16.0
    %v1392 = vsel %vm1376, 0.0, -1e+30
    %v1393 = vsel %vm1377, 0.0, -1e+30
    %v1394 = vsel %vm1378, 0.0, -1e+30
    %v1395 = vsel %vm1379, 0.0, -1e+30
    %v1396 = vsel %vm1380, 0.0, -1e+30
    %v1397 = vsel %vm1381, 0.0, -1e+30
    %v1398 = vsel %vm1382, 0.0, -1e+30
    %v1399 = vsel %vm1383, 0.0, -1e+30
    %v1400 = vsel %vm1384, 0.0, -1e+30
    %v1401 = vsel %vm1385, 0.0, -1e+30
    %v1402 = vsel %vm1386, 0.0, -1e+30
    %v1403 = vsel %vm1387, 0.0, -1e+30
    %v1404 = vsel %vm1388, 0.0, -1e+30
    %v1405 = vsel %vm1389, 0.0, -1e+30
    %v1406 = vsel %vm1390, 0.0, -1e+30
    %v1407 = vsel %vm1391, 0.0, -1e+30
    %v1408 = vmax.f32 %v1345, %v1392
    %v1409 = vmax.f32 %v1347, %v1393
    %v1410 = vmax.f32 %v1349, %v1394
    %v1411 = vmax.f32 %v1351, %v1395
    %v1412 = vmax.f32 %v1353, %v1396
    %v1413 = vmax.f32 %v1355, %v1397
    %v1414 = vmax.f32 %v1357, %v1398
    %v1415 = vmax.f32 %v1359, %v1399
    %v1416 = vmax.f32 %v1361, %v1400
    %v1417 = vmax.f32 %v1363, %v1401
    %v1418 = vmax.f32 %v1365, %v1402
    %v1419 = vmax.f32 %v1367, %v1403
    %v1420 = vmax.f32 %v1369, %v1404
    %v1421 = vmax.f32 %v1371, %v1405
    %v1422 = vmax.f32 %v1373, %v1406
    %v1423 = vmax.f32 %v1375, %v1407
    %v1424 = vsub.f32 %v1281, %v1408
    %v1425 = vsub.f32 %v1283, %v1409
    %v1426 = vsub.f32 %v1285, %v1410
    %v1427 = vsub.f32 %v1287, %v1411
    %v1428 = vsub.f32 %v1289, %v1412
    %v1429 = vsub.f32 %v1291, %v1413
    %v1430 = vsub.f32 %v1293, %v1414
    %v1431 = vsub.f32 %v1295, %v1415
    %v1432 = vsub.f32 %v1297, %v1416
    %v1433 = vsub.f32 %v1299, %v1417
    %v1434 = vsub.f32 %v1301, %v1418
    %v1435 = vsub.f32 %v1303, %v1419
    %v1436 = vsub.f32 %v1305, %v1420
    %v1437 = vsub.f32 %v1307, %v1421
    %v1438 = vsub.f32 %v1309, %v1422
    %v1439 = vsub.f32 %v1311, %v1423
    %v1440 = vadd.f32 %v1424, 0.1
    %v1441 = vadd.f32 %v1425, 0.1
    %v1442 = vadd.f32 %v1426, 0.1
    %v1443 = vadd.f32 %v1427, 0.1
    %v1444 = vadd.f32 %v1428, 0.1
    %v1445 = vadd.f32 %v1429, 0.1
    %v1446 = vadd.f32 %v1430, 0.1
    %v1447 = vadd.f32 %v1431, 0.1
    %v1448 = vadd.f32 %v1432, 0.1
    %v1449 = vadd.f32 %v1433, 0.1
    %v1450 = vadd.f32 %v1434, 0.1
    %v1451 = vadd.f32 %v1435, 0.1
    %v1452 = vadd.f32 %v1436, 0.1
    %v1453 = vadd.f32 %v1437, 0.1
    %v1454 = vadd.f32 %v1438, 0.1
    %v1455 = vadd.f32 %v1439, 0.1
    %v1456 = vmax.f32 %v1440, 0.0
    %v1457 = vmax.f32 %v1441, 0.0
    %v1458 = vmax.f32 %v1442, 0.0
    %v1459 = vmax.f32 %v1443, 0.0
    %v1460 = vmax.f32 %v1444, 0.0
    %v1461 = vmax.f32 %v1445, 0.0
    %v1462 = vmax.f32 %v1446, 0.0
    %v1463 = vmax.f32 %v1447, 0.0
    %v1464 = vmax.f32 %v1448, 0.0
    %v1465 = vmax.f32 %v1449, 0.0
    %v1466 = vmax.f32 %v1450, 0.0
    %v1467 = vmax.f32 %v1451, 0.0
    %v1468 = vmax.f32 %v1452, 0.0
    %v1469 = vmax.f32 %v1453, 0.0
    %v1470 = vmax.f32 %v1454, 0.0
    %v1471 = vmax.f32 %v1455, 0.0
    %v1472 = vld [vmem:[#allocation2] sm:$0x1]
    %v1473 = vadd.f32 %v1456, %v1457
    %v1474 = vadd.f32 %v1473, %v1458
    %v1475 = vadd.f32 %v1474, %v1459
    %v1476 = vadd.f32 %v1475, %v1460
    %v1477 = vadd.f32 %v1476, %v1461
    %v1478 = vadd.f32 %v1477, %v1462
    %v1479 = vadd.f32 %v1478, %v1463
    %v1480 = vadd.f32 %v1479, %v1464
    %v1481 = vadd.f32 %v1480, %v1465
    %v1482 = vadd.f32 %v1481, %v1466
    %v1483 = vadd.f32 %v1482, %v1467
    %v1484 = vadd.f32 %v1483, %v1468
    %v1485 = vadd.f32 %v1484, %v1469
    %v1486 = vadd.f32 %v1485, %v1470
    %v1487 = vadd.f32 %v1486, %v1471
    %v1488 = vrot.slane %v1487, 4
    %v1489 = vadd.f32 %v1487, %v1488
    %v1490 = vrot.slane %v1489, 2
    %v1491 = vadd.f32 %v1489, %v1490
    %v1492 = vrot.slane %v1491, 1
    %v1493 = vadd.f32 %v1491, %v1492
    %v1494 = vmul.f32 %v1493, 0.0078125
    %v1495 = vadd.f32 %v1472, %v1494
    %vm1496 = vcmask 0
    %1497 = vst.msk [vmem:[#allocation2] sm:$0x1] %vm1496, %v1495
    // Predicated region
    $region18: #{_vote_loss_impl.5} parent=1 // pred_check
      _
    $region19: #{_vote_loss_impl.5} parent=1 // pred_check_branch
      %1499 = sbr.rel (0) target = $region21
    $region20: #{_vote_loss_impl.5} parent=1 // pred_region
      %s1501 = ssub.s32 16, 16
      %1502 = vsyncadd [#allocation3], %s1501
      %s1504 = sshll.u32 [#allocation2], 4
      %s1505 = int_to_ptr.vmem [resolvable:$true] %s1504
      %1507 = dma.vmem_to_hbm [thread:$0]  %s1505, 16, %s3, [#allocation3]
    $region21: #{_vote_loss_impl.5} parent=1 // pred_fallthru
      _
    // Predicated region
    $region22: #{_vote_loss_impl.5} parent=1 // pred_check
      _
    $region23: #{_vote_loss_impl.5} parent=1 // pred_check_branch
      %1509 = sbr.rel (0) target = $region25
    $region24: #{_vote_loss_impl.5} parent=1 // pred_region
      %1510 = dma.done [#allocation3], 16
    $region25: #{_vote_loss_impl.5} parent=1 // pred_fallthru
      _
    %1511 = vsyncpa [#allocation3], 1

</llo_original>
